<compile_context>
chip_gen: v5e
topology: v5e:2x2
jax: 0.10.0
libtpu: 0.0.40
codegen_flags: <defaults>
</compile_context>

<pallas_src>
import jax
import jax.numpy as jnp
from jax.experimental import pallas as pl
from jax.experimental.pallas import tpu as pltpu

IN_FEATURES = 32 * 32 * 3   # 3072
HIDDEN = 1500
OUT_FEATURES = 10

HIDDEN_P = 1536             # 12 * 128  (lane-dense hidden)
OUT_P = 128                 # lane-dense output, sliced back to 10
TK = 512                    # K tile over IN_FEATURES (3072 / 512 = 6 steps)


def _ffnn_kernel(x_ref, w1_ref, b1_ref, w2_ref, b2_ref, o_ref, acc_ref):
    """Grid = (M_tiles, K_tiles); K is the reduction axis (last / 'arbitrary').

    acc_ref: f32 (BM, HIDDEN_P) scratch accumulator for fc1, resident across K.
    o_ref  : (BM, OUT_P) output block, resident across K (index_map ignores k),
             written once in the k==last epilogue (single lane-dense store).
    """
    k = pl.program_id(1)

    @pl.when(k == 0)
    def _():
        # Fold the fc1 bias into the accumulator init; padded columns are 0.
        acc_ref[...] = jnp.broadcast_to(b1_ref[...], acc_ref.shape)

    # fc1 partial: bf16 x bf16 on the MXU, f32 accumulation.
    acc_ref[...] += jnp.dot(
        x_ref[...], w1_ref[...], preferred_element_type=jnp.float32
    )

    @pl.when(k == pl.num_programs(1) - 1)
    def _():
        # Epilogue: sigmoid in f32 (EUP, v5e-safe), then fc2 (+ bias, sigmoid).
        h = jax.nn.sigmoid(acc_ref[...])                              # f32
        o = jnp.dot(h.astype(w2_ref.dtype), w2_ref[...],
                    preferred_element_type=jnp.float32)
        o_ref[...] = jax.nn.sigmoid(o + b2_ref[...]).astype(o_ref.dtype)


def feedforward_nn(x_nchw, w1, b1, w2, b2):
    """x_nchw: (B, 3, 32, 32) f32; w1: (3072, 1500); b1: (1, 1500);
    w2: (1500, 10); b2: (1, 10). Returns (B, 10) f32."""
    B = x_nchw.shape[0]
    x_flat = x_nchw.reshape(B, -1)          # == torch x.view(B, -1)

    # --- batch padding / M tiling ------------------------------------------
    B_pad = ((B + 7) // 8) * 8              # sublane-aligned batch
    BM = min(256, B_pad)                    # M tile (bigger -> fewer W1 passes)
    B_pad = ((B_pad + BM - 1) // BM) * BM   # make divisible by BM

    # --- bf16 streaming + lane-dense padding (zeros keep numerics exact) ----
    x_p = jnp.zeros((B_pad, IN_FEATURES), jnp.bfloat16)
    x_p = x_p.at[:B].set(x_flat.astype(jnp.bfloat16))

    w1_p = jnp.zeros((IN_FEATURES, HIDDEN_P), jnp.bfloat16)
    w1_p = w1_p.at[:, :HIDDEN].set(w1.astype(jnp.bfloat16))
    b1_p = jnp.zeros((1, HIDDEN_P), jnp.float32)
    b1_p = b1_p.at[:, :HIDDEN].set(b1.astype(jnp.float32))

    # Padded hidden columns produce sigmoid(0)=0.5; the matching W2 rows are
    # zero so they contribute nothing to the output.
    w2_p = jnp.zeros((HIDDEN_P, OUT_P), jnp.bfloat16)
    w2_p = w2_p.at[:HIDDEN, :OUT_FEATURES].set(w2.astype(jnp.bfloat16))
    b2_p = jnp.zeros((1, OUT_P), jnp.float32)
    b2_p = b2_p.at[:, :OUT_FEATURES].set(b2.astype(jnp.float32))

    grid = (B_pad // BM, IN_FEATURES // TK)

    out_padded = pl.pallas_call(
        _ffnn_kernel,
        out_shape=jax.ShapeDtypeStruct((B_pad, OUT_P), jnp.float32),
        grid_spec=pltpu.PrefetchScalarGridSpec(
            num_scalar_prefetch=0,
            grid=grid,
            in_specs=[
                pl.BlockSpec((BM, TK),          lambda m, k: (m, k)),  # x
                pl.BlockSpec((TK, HIDDEN_P),    lambda m, k: (k, 0)),  # w1
                pl.BlockSpec((1, HIDDEN_P),     lambda m, k: (0, 0)),  # b1
                pl.BlockSpec((HIDDEN_P, OUT_P), lambda m, k: (0, 0)),  # w2
                pl.BlockSpec((1, OUT_P),        lambda m, k: (0, 0)),  # b2
            ],
            # Output block index is independent of k -> stays resident across
            # the reduction; written once in the epilogue.
            out_specs=pl.BlockSpec((BM, OUT_P), lambda m, k: (m, 0)),
            scratch_shapes=[pltpu.VMEM((BM, HIDDEN_P), jnp.float32)],
        ),
        compiler_params=pltpu.CompilerParams(
            dimension_semantics=("parallel", "arbitrary"),
        ),
    )(x_p, w1_p, b1_p, w2_p, b2_p)

    return out_padded[:B, :OUT_FEATURES]


def init_params(key):
    """Deterministic init matching nn.Linear's default U(-1/sqrt(fan_in), +1/sqrt(fan_in)).
    Weights stored as (in_features, out_features) = PyTorch weight.T."""
    k1, k2, k3, k4 = jax.random.split(key, 4)
    bound1 = 1.0 / jnp.sqrt(jnp.float32(IN_FEATURES))
    bound2 = 1.0 / jnp.sqrt(jnp.float32(HIDDEN))
    w1 = jax.random.uniform(k1, (IN_FEATURES, HIDDEN), jnp.float32, -bound1, bound1)
    b1 = jax.random.uniform(k2, (1, HIDDEN), jnp.float32, -bound1, bound1)
    w2 = jax.random.uniform(k3, (HIDDEN, OUT_FEATURES), jnp.float32, -bound2, bound2)
    b2 = jax.random.uniform(k4, (1, OUT_FEATURES), jnp.float32, -bound2, bound2)
    return w1, b1, w2, b2


if __name__ == "__main__":
    key = jax.random.PRNGKey(0)
    kx, kp = jax.random.split(key)

    # Small CIFAR-like batch: (B=2, C=3, H=32, W=32) — spatial dims fixed by
    # the module (fc1 expects 32*32*3 inputs).
    x = jax.random.normal(kx, (2, 3, 32, 32), dtype=jnp.float32)
    w1, b1, w2, b2 = init_params(kp)

    out = feedforward_nn(x, w1, b1, w2, b2)
    out = jax.block_until_ready(out)
    assert out.shape == (2, 10)

    # Reference 1: same bf16 weight/activation streaming as the kernel
    # (validates the kernel itself; tight tolerance).
    xb = x.reshape(x.shape[0], -1).astype(jnp.bfloat16)
    h_bf = jax.nn.sigmoid(
        jnp.dot(xb, w1.astype(jnp.bfloat16), preferred_element_type=jnp.float32) + b1)
    ref_bf = jax.nn.sigmoid(
        jnp.dot(h_bf.astype(jnp.bfloat16), w2.astype(jnp.bfloat16),
                preferred_element_type=jnp.float32) + b2)
    assert jnp.allclose(out, ref_bf, atol=1e-4, rtol=1e-4), "mismatch vs bf16 reference"

    # Reference 2: full-f32 PyTorch-equivalent forward (semantic sanity; loose
    # tolerance covers bf16 weight quantization).
    ref_f32 = jax.nn.sigmoid(x.reshape(x.shape[0], -1) @ w1 + b1)
    ref_f32 = jax.nn.sigmoid(ref_f32 @ w2 + b2)
    assert jnp.allclose(out, ref_f32, atol=2e-2, rtol=2e-2), "mismatch vs f32 reference"

    print("KERNEL_OK")
</pallas_src>

<mosaic_0001>
module attributes {stable_mosaic.version = 11 : i64} {
  func.func @_ffnn_kernel(%arg0: i32, %arg1: i32, %arg2: memref<8x512xbf16, #tpu.memory_space<vmem>>, %arg3: memref<512x1536xbf16, #tpu.memory_space<vmem>>, %arg4: memref<1x1536xf32, #tpu.memory_space<vmem>>, %arg5: memref<1536x128xbf16, #tpu.memory_space<vmem>>, %arg6: memref<1x128xf32, #tpu.memory_space<vmem>>, %arg7: memref<8x128xf32, #tpu.memory_space<vmem>>, %arg8: memref<8x1536xf32, #tpu.memory_space<vmem>>) attributes {dimension_semantics = [#tpu.dimension_semantics<parallel>, #tpu.dimension_semantics<arbitrary>], iteration_bounds = array<i64: 1, 6>, scalar_prefetch = 0 : i64, scratch_operands = 1 : i64, tpu.core_type = #tpu.core_type<tc>, window_params = [{transform_indices = @transform_0, window_bounds = array<i64: 8, 512>}, {transform_indices = @transform_1, window_bounds = array<i64: 512, 1536>}, {pipeline_mode = #tpu.pipeline_mode<synchronous>, transform_indices = @transform_2, window_bounds = array<i64: 1, 1536>}, {pipeline_mode = #tpu.pipeline_mode<synchronous>, transform_indices = @transform_3, window_bounds = array<i64: 1536, 128>}, {pipeline_mode = #tpu.pipeline_mode<synchronous>, transform_indices = @transform_4, window_bounds = array<i64: 1, 128>}, {transform_indices = @transform_5, window_bounds = array<i64: 8, 128>}]} {
    %c0_i32 = arith.constant 0 : i32
    %0 = arith.cmpi eq, %arg1, %c0_i32 : i32
    %1 = arith.extui %0 : i1 to i32
    %c0_i32_0 = arith.constant 0 : i32
    %2 = arith.cmpi ne, %1, %c0_i32_0 : i32
    scf.if %2 {
      %c0_9 = arith.constant 0 : index
      %c0_10 = arith.constant 0 : index
      %12 = vector.load %arg4[%c0_9, %c0_10] : memref<1x1536xf32, #tpu.memory_space<vmem>>, vector<1x1536xf32>
      %13 = vector.shape_cast %12 : vector<1x1536xf32> to vector<1x1536xf32>
      %14 = vector.broadcast %13 : vector<1x1536xf32> to vector<8x1536xf32>
      %c0_11 = arith.constant 0 : index
      %c0_12 = arith.constant 0 : index
      %15 = vector.load %arg8[%c0_11, %c0_12] : memref<8x1536xf32, #tpu.memory_space<vmem>>, vector<8x1536xf32>
      tpu.vector_store %arg8[%c0_11, %c0_12], %14 {strides = array<i32>} : memref<8x1536xf32, #tpu.memory_space<vmem>>, vector<8x1536xf32>,
    } else {
    }
    %c0 = arith.constant 0 : index
    %c0_1 = arith.constant 0 : index
    %3 = vector.load %arg8[%c0, %c0_1] : memref<8x1536xf32, #tpu.memory_space<vmem>>, vector<8x1536xf32>
    %c0_2 = arith.constant 0 : index
    %c0_3 = arith.constant 0 : index
    %4 = vector.load %arg2[%c0_2, %c0_3] : memref<8x512xbf16, #tpu.memory_space<vmem>>, vector<8x512xbf16>
    %c0_4 = arith.constant 0 : index
    %c0_5 = arith.constant 0 : index
    %5 = vector.load %arg3[%c0_4, %c0_5] : memref<512x1536xbf16, #tpu.memory_space<vmem>>, vector<512x1536xbf16>
    %cst = arith.constant dense<0.000000e+00> : vector<8x1536xf32>
    %6 = tpu.matmul %4, %5, %cst {dimension_numbers = #tpu.dot_dimension_numbers<[1], [0], [0], [1], [0, 0, 1, 1], [], []>} : vector<8x512xbf16>, vector<512x1536xbf16>, vector<8x1536xf32> -> vector<8x1536xf32>
    %7 = arith.addf %3, %6 : vector<8x1536xf32>
    %c0_6 = arith.constant 0 : index
    %c0_7 = arith.constant 0 : index
    %8 = vector.load %arg8[%c0_6, %c0_7] : memref<8x1536xf32, #tpu.memory_space<vmem>>, vector<8x1536xf32>
    tpu.vector_store %arg8[%c0_6, %c0_7], %7 {strides = array<i32>} : memref<8x1536xf32, #tpu.memory_space<vmem>>, vector<8x1536xf32>,
    %c5_i32 = arith.constant 5 : i32
    %9 = arith.cmpi eq, %arg1, %c5_i32 : i32
    %10 = arith.extui %9 : i1 to i32
    %c0_i32_8 = arith.constant 0 : i32
    %11 = arith.cmpi ne, %10, %c0_i32_8 : i32
    scf.if %11 {
      %c0_9 = arith.constant 0 : index
      %c0_10 = arith.constant 0 : index
      %12 = vector.load %arg8[%c0_9, %c0_10] : memref<8x1536xf32, #tpu.memory_space<vmem>>, vector<8x1536xf32>
      %13 = arith.negf %12 : vector<8x1536xf32>
      %14 = math.exp %13 : vector<8x1536xf32>
      %cst_11 = arith.constant 1.000000e+00 : f32
      %15 = vector.broadcast %cst_11 : f32 to vector<8x1536xf32>
      %16 = arith.addf %15, %14 : vector<8x1536xf32>
      %17 = arith.divf %15, %16 : vector<8x1536xf32>
      %18 = arith.truncf %17 : vector<8x1536xf32> to vector<8x1536xbf16>
      %c0_12 = arith.constant 0 : index
      %c0_13 = arith.constant 0 : index
      %19 = vector.load %arg5[%c0_12, %c0_13] : memref<1536x128xbf16, #tpu.memory_space<vmem>>, vector<1536x128xbf16>
      %cst_14 = arith.constant dense<0.000000e+00> : vector<8x128xf32>
      %20 = tpu.matmul %18, %19, %cst_14 {dimension_numbers = #tpu.dot_dimension_numbers<[1], [0], [0], [1], [0, 0, 1, 1], [], []>} : vector<8x1536xbf16>, vector<1536x128xbf16>, vector<8x128xf32> -> vector<8x128xf32>
      %c0_15 = arith.constant 0 : index
      %c0_16 = arith.constant 0 : index
      %21 = vector.load %arg6[%c0_15, %c0_16] : memref<1x128xf32, #tpu.memory_space<vmem>>, vector<1x128xf32>
      %22 = vector.broadcast %21 : vector<1x128xf32> to vector<8x128xf32>
      %23 = arith.addf %20, %22 : vector<8x128xf32>
      %24 = arith.negf %23 : vector<8x128xf32>
      %25 = math.exp %24 : vector<8x128xf32>
      %cst_17 = arith.constant 1.000000e+00 : f32
      %26 = vector.broadcast %cst_17 : f32 to vector<8x128xf32>
      %27 = arith.addf %26, %25 : vector<8x128xf32>
      %28 = arith.divf %26, %27 : vector<8x128xf32>
      %c0_18 = arith.constant 0 : index
      %c0_19 = arith.constant 0 : index
      %29 = vector.load %arg7[%c0_18, %c0_19] : memref<8x128xf32, #tpu.memory_space<vmem>>, vector<8x128xf32>
      tpu.vector_store %arg7[%c0_18, %c0_19], %28 {strides = array<i32>} : memref<8x128xf32, #tpu.memory_space<vmem>>, vector<8x128xf32>,
    } else {
    }
    return
  }
  func.func @transform_0(%arg0: i32, %arg1: i32) -> (i32, i32) {
    %c0_i32 = arith.constant 0 : i32
    return %arg0, %arg1 : i32, i32
  }
  func.func @transform_1(%arg0: i32, %arg1: i32) -> (i32, i32) {
    %c0_i32 = arith.constant 0 : i32
    %c0_i32_0 = arith.constant 0 : i32
    return %arg1, %c0_i32 : i32, i32
  }
  func.func @transform_2(%arg0: i32, %arg1: i32) -> (i32, i32) {
    %c0_i32 = arith.constant 0 : i32
    %c0_i32_0 = arith.constant 0 : i32
    %c0_i32_1 = arith.constant 0 : i32
    return %c0_i32, %c0_i32_0 : i32, i32
  }
  func.func @transform_3(%arg0: i32, %arg1: i32) -> (i32, i32) {
    %c0_i32 = arith.constant 0 : i32
    %c0_i32_0 = arith.constant 0 : i32
    %c0_i32_1 = arith.constant 0 : i32
    return %c0_i32, %c0_i32_0 : i32, i32
  }
  func.func @transform_4(%arg0: i32, %arg1: i32) -> (i32, i32) {
    %c0_i32 = arith.constant 0 : i32
    %c0_i32_0 = arith.constant 0 : i32
    %c0_i32_1 = arith.constant 0 : i32
    return %c0_i32, %c0_i32_0 : i32, i32
  }
  func.func @transform_5(%arg0: i32, %arg1: i32) -> (i32, i32) {
    %c0_i32 = arith.constant 0 : i32
    %c0_i32_0 = arith.constant 0 : i32
    return %arg0, %c0_i32 : i32, i32
  }
}

</mosaic_0001>

<llo_original>
// kernel: tpu_custom_call.1
$region0: #{tpu_custom_call.1}
  #allocation0 [shape = 'u32[]', space=smem, size = 0x4, offset = 0x4, fixed_abs, tag = 'smem constant byte address 0x4 - core index']
  #allocation1 [shape = 'u32[72,128]{1,0:T(1,128)}', space=vmem, size = 0x9000, scoped, tag = 'internal scratch']
  #allocation2 [shape = 'f32[8,1536]{1,0:T(8,128)}', space=vmem, size = 0xc000, scoped, tag = 'scratch operand']
  %s0 = inlined_call_operand.hbm [shape: bf16[8,3072], index: 0, kind: input, shape index: {}]
  %s1 = inlined_call_operand.hbm [shape: bf16[3072,1536], index: 1, kind: input, shape index: {}]
  %s2 = inlined_call_operand.hbm [shape: f32[1,1536], index: 2, kind: input, shape index: {}]
  %s3 = inlined_call_operand.hbm [shape: bf16[1536,128], index: 3, kind: input, shape index: {}]
  %s4 = inlined_call_operand.hbm [shape: f32[1,128], index: 4, kind: input, shape index: {}]
  %s5 = inlined_call_operand.hbm [shape: f32[8,128], index: 5, kind: output, shape index: {}]
  %s6 = sld [smem:[#allocation0]]
  $region81: #{tpu_custom_call.1} parent=0
    _
  %s8 = ssub.s32 1, %s6
  %s9 = scalar_select 0, %s8, %s6
  $region1: #{tpu_custom_call.1} parent=0
    #allocation3 [shape = 'u8[16384]{0}', space=vmem, size = 0x4000, scoped, tag = 'input window, operand 0']
    #allocation4 [shape = 's32[2]{0}', space=sflag, size = 0x8, scoped, tag = 'scoped memory for tpu_custom_call.1']
    #allocation5 [shape = 's32[2]{0}', space=sflag, size = 0x8, scoped, tag = 'scoped memory for tpu_custom_call.1']
    #allocation6 [shape = 'u8[3145728]{0}', space=vmem, size = 0x300000, scoped, tag = 'input window, operand 1']
    #allocation7 [shape = 's32[2]{0}', space=sflag, size = 0x8, scoped, tag = 'scoped memory for tpu_custom_call.1']
    #allocation8 [shape = 'u8[6144]{0}', space=vmem, size = 0x1800, scoped, tag = 'input window, operand 2, single buffered']
    #allocation9 [shape = 'u8[393216]{0}', space=vmem, size = 0x60000, scoped, tag = 'input window, operand 3, single buffered']
    #allocation10 [shape = 's32[1]{0}', space=sflag, size = 0x4, scoped, tag = 'scoped memory for tpu_custom_call.1']
    #allocation11 [shape = 'u8[512]{0}', space=vmem, size = 0x400, scoped, tag = 'input window, operand 4, single buffered']
    #allocation12 [shape = 'u8[4096]{0}', space=vmem, size = 0x1000, scoped, tag = 'output window, operand 0, single buffered']
    %10 = vsyncpa [#allocation4], 0
    %s11 = scalar_lea.sflag [#allocation4], 1
    %12 = vsyncpa %s11, 0
    %13 = vsyncpa [#allocation7], 0
    %s14 = scalar_lea.sflag [#allocation7], 1
    %15 = vsyncpa %s14, 0
    %16 = vsyncpa [#allocation10], 0
    %17 = vsyncpa [#allocation5], 0
    loop: start=0, step=1, limit=8
    $region2: #{tpu_custom_call.1} parent=1 // loop_pre_header
      _
    $region3: #{tpu_custom_call.1} parent=1 // loop_header
      %s19 = sphi 0, %s23
      %p20 = scmp.ge.s32.totalorder %s19, 8
      %s26 = sphi 0, %s38
      %s27 = sphi 0, %s34
      %s28 = sphi 0, %s26
      %s29 = sphi 0, %s27
      %s30 = sphi 0, %s28
      %s31 = sphi 0, %s29
      %s43 = sphi 0, %s45
      %s46 = sphi 0, %s43
      %s47 = sphi 0, %s46
      %s63 = sphi 0, %s47
      %s69 = sphi 0, %s71
      %s72 = sphi 0, %s69
      %s73 = sphi 0, %s72
      %s89 = sphi 0, %s73
      %s93 = sphi 0, %s93
      %s95 = sphi 0, %s93
      %s96 = sphi 0, %s95
      %s110 = sphi 0, %s96
      %s114 = sphi 0, %s114
      %s116 = sphi 0, %s114
      %s117 = sphi 0, %s116
      %s131 = sphi 0, %s117
      %s135 = sphi 0, %s135
      %s137 = sphi 0, %s135
      %s138 = sphi 0, %s137
      %s152 = sphi 0, %s138
      %s158 = sphi 0, %s160
      %s161 = sphi 0, %s158
      %s162 = sphi 0, %s161
      %s178 = sphi 0, %s162
    $region4: #{tpu_custom_call.1} parent=1 // loop_header_branch
      %22 = sbr.rel (%p20) target = $region8
    $region5: #{tpu_custom_call.1} parent=1 // loop_body
      %s24 = ssub.s32 %s19, 1
      %s25 = ssub.s32 %s19, 2
      %s32 = sadd.s32 1, %s27
      %p33 = scmp.ge.s32.totalorder %s32, 6
      %s34 = scalar_select %p33, 0, %s32
      %s35 = sadd.s32 1, %s26
      %s36 = scalar_select %p33, %s35, %s26
      %p37 = scmp.ge.s32.totalorder %s36, 1
      %s38 = scalar_select %p37, 0, %s36
      %s39 = ssub.s32 %s26, %s38
      %s40 = ssub.s32 %s27, %s34
      %s41 = sor.u32 %s39, %s40
      %p42 = scmp.eq.s32.totalorder %s41, 0
      %s44 = sadd.s32 %s43, 1
      %s45 = scalar_select %p42, %s43, %s44
      %p48 = pneg %p42
      %p49 = scmp.eq.s32.totalorder %s19, 5
      %p50 = por %p48, %p49
      %p51 = scmp.ne.s32.totalorder %s43, %s46
      %p52 = scmp.eq.s32.totalorder %s19, 0
      %p53 = por %p51, %p52
      %p54 = scmp.ne.s32.totalorder %s43, %s46
      %p55 = scmp.eq.s32.totalorder %s24, 5
      %p56 = por %p54, %p55
      %p57 = scmp.ne.s32.totalorder %s46, %s47
      %p58 = scmp.eq.s32.totalorder %s24, 0
      %p59 = por %p57, %p58
      %p60 = scmp.ne.s32.totalorder %s46, %s47
      %p61 = scmp.eq.s32.totalorder %s25, 5
      %p62 = por %p60, %p61
      %p64 = scmp.ne.s32.totalorder %s47, %s63
      %p65 = scmp.eq.s32.totalorder %s25, 0
      %p66 = por %p64, %p65
      %s67 = ssub.s32 %s27, %s34
      %p68 = scmp.eq.s32.totalorder %s67, 0
      %s70 = sadd.s32 %s69, 1
      %s71 = scalar_select %p68, %s69, %s70
      %p74 = pneg %p68
      %p75 = scmp.eq.s32.totalorder %s19, 5
      %p76 = por %p74, %p75
      %p77 = scmp.ne.s32.totalorder %s69, %s72
      %p78 = scmp.eq.s32.totalorder %s19, 0
      %p79 = por %p77, %p78
      %p80 = scmp.ne.s32.totalorder %s69, %s72
      %p81 = scmp.eq.s32.totalorder %s24, 5
      %p82 = por %p80, %p81
      %p83 = scmp.ne.s32.totalorder %s72, %s73
      %p84 = scmp.eq.s32.totalorder %s24, 0
      %p85 = por %p83, %p84
      %p86 = scmp.ne.s32.totalorder %s72, %s73
      %p87 = scmp.eq.s32.totalorder %s25, 5
      %p88 = por %p86, %p87
      %p90 = scmp.ne.s32.totalorder %s73, %s89
      %p91 = scmp.eq.s32.totalorder %s25, 0
      %p92 = por %p90, %p91
      %s94 = sadd.s32 %s93, 1
      %p97 = scmp.eq.s32.totalorder %s19, 5
      %p98 = scmp.ne.s32.totalorder %s93, %s95
      %p99 = scmp.eq.s32.totalorder %s19, 0
      %p100 = por %p98, %p99
      %p101 = scmp.ne.s32.totalorder %s93, %s95
      %p102 = scmp.eq.s32.totalorder %s24, 5
      %p103 = por %p101, %p102
      %p104 = scmp.ne.s32.totalorder %s95, %s96
      %p105 = scmp.eq.s32.totalorder %s24, 0
      %p106 = por %p104, %p105
      %p107 = scmp.ne.s32.totalorder %s95, %s96
      %p108 = scmp.eq.s32.totalorder %s25, 5
      %p109 = por %p107, %p108
      %p111 = scmp.ne.s32.totalorder %s96, %s110
      %p112 = scmp.eq.s32.totalorder %s25, 0
      %p113 = por %p111, %p112
      %s115 = sadd.s32 %s114, 1
      %p118 = scmp.eq.s32.totalorder %s19, 5
      %p119 = scmp.ne.s32.totalorder %s114, %s116
      %p120 = scmp.eq.s32.totalorder %s19, 0
      %p121 = por %p119, %p120
      %p122 = scmp.ne.s32.totalorder %s114, %s116
      %p123 = scmp.eq.s32.totalorder %s24, 5
      %p124 = por %p122, %p123
      %p125 = scmp.ne.s32.totalorder %s116, %s117
      %p126 = scmp.eq.s32.totalorder %s24, 0
      %p127 = por %p125, %p126
      %p128 = scmp.ne.s32.totalorder %s116, %s117
      %p129 = scmp.eq.s32.totalorder %s25, 5
      %p130 = por %p128, %p129
      %p132 = scmp.ne.s32.totalorder %s117, %s131
      %p133 = scmp.eq.s32.totalorder %s25, 0
      %p134 = por %p132, %p133
      %s136 = sadd.s32 %s135, 1
      %p139 = scmp.eq.s32.totalorder %s19, 5
      %p140 = scmp.ne.s32.totalorder %s135, %s137
      %p141 = scmp.eq.s32.totalorder %s19, 0
      %p142 = por %p140, %p141
      %p143 = scmp.ne.s32.totalorder %s135, %s137
      %p144 = scmp.eq.s32.totalorder %s24, 5
      %p145 = por %p143, %p144
      %p146 = scmp.ne.s32.totalorder %s137, %s138
      %p147 = scmp.eq.s32.totalorder %s24, 0
      %p148 = por %p146, %p147
      %p149 = scmp.ne.s32.totalorder %s137, %s138
      %p150 = scmp.eq.s32.totalorder %s25, 5
      %p151 = por %p149, %p150
      %p153 = scmp.ne.s32.totalorder %s138, %s152
      %p154 = scmp.eq.s32.totalorder %s25, 0
      %p155 = por %p153, %p154
      %s156 = ssub.s32 %s26, %s38
      %p157 = scmp.eq.s32.totalorder %s156, 0
      %s159 = sadd.s32 %s158, 1
      %s160 = scalar_select %p157, %s158, %s159
      %p163 = pneg %p157
      %p164 = scmp.eq.s32.totalorder %s19, 5
      %p165 = por %p163, %p164
      %p166 = scmp.ne.s32.totalorder %s158, %s161
      %p167 = scmp.eq.s32.totalorder %s19, 0
      %p168 = por %p166, %p167
      %p169 = scmp.ne.s32.totalorder %s158, %s161
      %p170 = scmp.eq.s32.totalorder %s24, 5
      %p171 = por %p169, %p170
      %p172 = scmp.ne.s32.totalorder %s161, %s162
      %p173 = scmp.eq.s32.totalorder %s24, 0
      %p174 = por %p172, %p173
      %p175 = scmp.ne.s32.totalorder %s161, %s162
      %p176 = scmp.eq.s32.totalorder %s25, 5
      %p177 = por %p175, %p176
      %p179 = scmp.ne.s32.totalorder %s162, %s178
      %p180 = scmp.eq.s32.totalorder %s25, 0
      %p181 = por %p179, %p180
      %p182 = scmp.le.s32.totalorder 1, %s19
      %p183 = scmp.lt.s32.totalorder %s19, 7
      %p184 = pnand %p182, %p183
      %p185 = pneg %p184
      // Predicated region
      $region9: #{tpu_custom_call.1} parent=5 // pred_check
        _
      $region10: #{tpu_custom_call.1} parent=5 // pred_check_branch
        %187 = sbr.rel (%p184) target = $region12
      $region11: #{tpu_custom_call.1} parent=5 // pred_region
        %s188 = ssub.s32 %s19, 1
        // Predicated region
        $region13: #{tpu_custom_call.1} parent=11 // pred_check
          %p189 = pneg %p106
        $region14: #{tpu_custom_call.1} parent=11 // pred_check_branch
          %191 = sbr.rel (%p189) target = $region16
        $region15: #{tpu_custom_call.1} parent=11 // pred_region
          %193 = vsyncadd [#allocation7], 0
          %s195 = sshll.u32 %s2, 4
          %s196 = int_to_ptr.hbm [resolvable:$true] %s195
          %s197 = sshll.u32 [#allocation8], 4
          %s198 = int_to_ptr.vmem [resolvable:$true] %s197
          %200 = dma.hbm_to_vmem [thread:$0]  %s196, 192, %s198, [#allocation7]
        $region16: #{tpu_custom_call.1} parent=11 // pred_fallthru
          _
        // Predicated region
        $region17: #{tpu_custom_call.1} parent=11 // pred_check
          %p201 = pneg %p127
        $region18: #{tpu_custom_call.1} parent=11 // pred_check_branch
          %203 = sbr.rel (%p201) target = $region20
        $region19: #{tpu_custom_call.1} parent=11 // pred_region
          %205 = vsyncadd [#allocation10], 0
          %s206 = sshll.u32 %s3, 4
          %s207 = int_to_ptr.hbm [resolvable:$true] %s206
          %s208 = sshll.u32 [#allocation9], 4
          %s209 = int_to_ptr.vmem [resolvable:$true] %s208
          %214 = dma.hbm_to_vmem [thread:$0]  %s207, 12288, %s209, [#allocation10], 64, 64, 4
        $region20: #{tpu_custom_call.1} parent=11 // pred_fallthru
          _
        // Predicated region
        $region21: #{tpu_custom_call.1} parent=11 // pred_check
          %p215 = pneg %p148
        $region22: #{tpu_custom_call.1} parent=11 // pred_check_branch
          %217 = sbr.rel (%p215) target = $region24
        $region23: #{tpu_custom_call.1} parent=11 // pred_region
          %219 = vsyncadd [#allocation10], 0
          %s221 = sshll.u32 %s4, 4
          %s222 = int_to_ptr.hbm [resolvable:$true] %s221
          %s223 = sshll.u32 [#allocation11], 4
          %s224 = int_to_ptr.vmem [resolvable:$true] %s223
          %226 = dma.hbm_to_vmem [thread:$0]  %s222, 16, %s224, [#allocation10]
        $region24: #{tpu_custom_call.1} parent=11 // pred_fallthru
          _
      $region12: #{tpu_custom_call.1} parent=5 // pred_fallthru
        _
      %p227 = scmp.lt.s32.totalorder %s19, 6
      // Predicated region
      $region25: #{tpu_custom_call.1} parent=5 // pred_check
        %p228 = pneg %p227
      $region26: #{tpu_custom_call.1} parent=5 // pred_check_branch
        %230 = sbr.rel (%p228) target = $region28
      $region27: #{tpu_custom_call.1} parent=5 // pred_region
        // Predicated region
        $region29: #{tpu_custom_call.1} parent=27 // pred_check
          %p231 = pneg %p53
        $region30: #{tpu_custom_call.1} parent=27 // pred_check_branch
          %233 = sbr.rel (%p231) target = $region32
        $region31: #{tpu_custom_call.1} parent=27 // pred_region
          %s234 = sand.u32 %s43, 1
          %s235 = scalar_lea.sflag [#allocation4], %s234
          %s236 = sand.u32 %s43, 1
          %s237 = smul.addr %s236, 16
          %s238 = scalar_lea.vmem [#allocation3], %s237
          %s239 = smul.u32 4, %s27
          %241 = vsyncadd %s235, 0
          %s242 = smul.addr %s26, 24
          %s243 = sadd.s32 %s239, %s242
          %s244 = smul.addr %s243, 4
          %s245 = scalar_lea.hbm %s0, %s244
          %s247 = sshll.u32 %s245, 4
          %s248 = int_to_ptr.hbm [resolvable:$true] %s247
          %s249 = sshll.u32 %s238, 4
          %s250 = int_to_ptr.vmem [resolvable:$true] %s249
          %252 = dma.hbm_to_vmem [thread:$0]  %s248, 256, %s250, %s235
        $region32: #{tpu_custom_call.1} parent=27 // pred_fallthru
          _
        // Predicated region
        $region33: #{tpu_custom_call.1} parent=27 // pred_check
          %p253 = pneg %p79
        $region34: #{tpu_custom_call.1} parent=27 // pred_check_branch
          %255 = sbr.rel (%p253) target = $region36
        $region35: #{tpu_custom_call.1} parent=27 // pred_region
          %s256 = sand.u32 %s19, 1
          %s257 = scalar_lea.sflag [#allocation7], %s256
          %s258 = sand.u32 %s69, 1
          %s259 = smul.addr %s258, 3072
          %s260 = scalar_lea.vmem [#allocation6], %s259
          %s261 = smul.u32 64, %s27
          %263 = vsyncadd %s257, 0
          %s264 = smul.addr %s261, 12
          %s265 = smul.addr %s264, 4
          %s266 = scalar_lea.hbm %s1, %s265
          %s267 = sshll.u32 %s266, 4
          %s268 = int_to_ptr.hbm [resolvable:$true] %s267
          %s269 = sshll.u32 %s260, 4
          %s270 = int_to_ptr.vmem [resolvable:$true] %s269
          %275 = dma.hbm_to_vmem [thread:$0]  %s268, 49152, %s270, %s257, 768, 768, 48
        $region36: #{tpu_custom_call.1} parent=27 // pred_fallthru
          _
      $region28: #{tpu_custom_call.1} parent=5 // pred_fallthru
        _
      %p276 = scmp.le.s32.totalorder 1, %s19
      %p277 = scmp.lt.s32.totalorder %s19, 7
      %p278 = pnand %p276, %p277
      %p279 = pneg %p278
      // Predicated region
      $region37: #{tpu_custom_call.1} parent=5 // pred_check
        _
      $region38: #{tpu_custom_call.1} parent=5 // pred_check_branch
        %281 = sbr.rel (%p278) target = $region40
      $region39: #{tpu_custom_call.1} parent=5 // pred_region
        %s282 = ssub.s32 %s19, 1
        %s283 = sand.u32 %s46, 1
        %s284 = scalar_lea.sflag [#allocation4], %s283
        %s285 = sand.u32 %s46, 1
        %s286 = smul.addr %s285, 16
        %s287 = scalar_lea.vmem [#allocation3], %s286
        // Predicated region
        $region41: #{tpu_custom_call.1} parent=39 // pred_check
          %p288 = pneg %p59
        $region42: #{tpu_custom_call.1} parent=39 // pred_check_branch
          %290 = sbr.rel (%p288) target = $region44
        $region43: #{tpu_custom_call.1} parent=39 // pred_region
          %292 = dma.done %s284, 256
        $region44: #{tpu_custom_call.1} parent=39 // pred_fallthru
          _
        %s293 = sand.u32 %s24, 1
        %s294 = scalar_lea.sflag [#allocation7], %s293
        %s295 = sand.u32 %s72, 1
        %s296 = smul.addr %s295, 3072
        %s297 = scalar_lea.vmem [#allocation6], %s296
        // Predicated region
        $region45: #{tpu_custom_call.1} parent=39 // pred_check
          %p298 = pneg %p85
        $region46: #{tpu_custom_call.1} parent=39 // pred_check_branch
          %300 = sbr.rel (%p298) target = $region48
        $region47: #{tpu_custom_call.1} parent=39 // pred_region
          %302 = dma.done %s294, 49152
        $region48: #{tpu_custom_call.1} parent=39 // pred_fallthru
          _
        // Predicated region
        $region49: #{tpu_custom_call.1} parent=39 // pred_check
          %p303 = pneg %p106
        $region50: #{tpu_custom_call.1} parent=39 // pred_check_branch
          %305 = sbr.rel (%p303) target = $region52
        $region51: #{tpu_custom_call.1} parent=39 // pred_region
          %307 = dma.done [#allocation7], 192
        $region52: #{tpu_custom_call.1} parent=39 // pred_fallthru
          _
        // Predicated region
        $region53: #{tpu_custom_call.1} parent=39 // pred_check
          %p308 = pneg %p127
        $region54: #{tpu_custom_call.1} parent=39 // pred_check_branch
          %310 = sbr.rel (%p308) target = $region56
        $region55: #{tpu_custom_call.1} parent=39 // pred_region
          %312 = dma.done [#allocation10], 12288
        $region56: #{tpu_custom_call.1} parent=39 // pred_fallthru
          _
        // Predicated region
        $region57: #{tpu_custom_call.1} parent=39 // pred_check
          %p313 = pneg %p148
        $region58: #{tpu_custom_call.1} parent=39 // pred_check_branch
          %315 = sbr.rel (%p313) target = $region60
        $region59: #{tpu_custom_call.1} parent=39 // pred_region
          %317 = dma.done [#allocation10], 16
        $region60: #{tpu_custom_call.1} parent=39 // pred_fallthru
          _
        %s318 = sand.u32 %s46, 1
        %s319 = scalar_lea.sflag [#allocation4], %s318
        %s320 = sand.u32 %s46, 1
        %s321 = smul.addr %s320, 16
        %s322 = scalar_lea.vmem [#allocation3], %s321
        %p323 = pneg %p59
        %p324 = pneg %p56
        %s325 = sand.u32 %s24, 1
        %s326 = scalar_lea.sflag [#allocation7], %s325
        %s327 = sand.u32 %s72, 1
        %s328 = smul.addr %s327, 3072
        %s329 = scalar_lea.vmem [#allocation6], %s328
        %p330 = pneg %p85
        %p331 = pneg %p82
        %p332 = pneg %p106
        %p333 = pneg %p103
        %p334 = pneg %p127
        %p335 = pneg %p124
        %p336 = pneg %p148
        %p337 = pneg %p145
        %p338 = pneg %p174
        %p339 = pneg %p171
        %s340 = smul.u32 4, %s29
        %s341 = smul.u32 64, %s29
        %p342 = scmp.eq.s32.totalorder %s29, 0
        // Predicated region
        $region61: #{tpu_custom_call.1} parent=39 // pred_check
          %p343 = pneg %p342
        $region62: #{tpu_custom_call.1} parent=39 // pred_check_branch
          %345 = sbr.rel (%p343) target = $region64
        $region63: #{tpu_custom_call.1} parent=39 // pred_region
          %v346 = vld [vmem:[#allocation8] sm:$0xff]
          %v347 = vld [vmem:[#allocation8 + $0x8] sm:$0xf]
          %v350 = vperm.slane %v346, 0
          %v351 = vperm.slane %v346, 1
          %v352 = vperm.slane %v346, 2
          %v353 = vperm.slane %v346, 3
          %v354 = vperm.slane %v346, 4
          %v355 = vperm.slane %v346, 5
          %v356 = vperm.slane %v346, 6
          %v357 = vperm.slane %v346, 7
          %v358 = vperm.slane %v347, 0
          %v359 = vperm.slane %v347, 1
          %v360 = vperm.slane %v347, 2
          %v361 = vperm.slane %v347, 3
          %374 = vst [vmem:[#allocation2] sm:$0xff] %v350
          %375 = vst [vmem:[#allocation2 + $0x8] sm:$0xff] %v351
          %376 = vst [vmem:[#allocation2 + $0x10] sm:$0xff] %v352
          %377 = vst [vmem:[#allocation2 + $0x18] sm:$0xff] %v353
          %378 = vst [vmem:[#allocation2 + $0x20] sm:$0xff] %v354
          %379 = vst [vmem:[#allocation2 + $0x28] sm:$0xff] %v355
          %380 = vst [vmem:[#allocation2 + $0x30] sm:$0xff] %v356
          %381 = vst [vmem:[#allocation2 + $0x38] sm:$0xff] %v357
          %382 = vst [vmem:[#allocation2 + $0x40] sm:$0xff] %v358
          %383 = vst [vmem:[#allocation2 + $0x48] sm:$0xff] %v359
          %384 = vst [vmem:[#allocation2 + $0x50] sm:$0xff] %v360
          %385 = vst [vmem:[#allocation2 + $0x58] sm:$0xff] %v361
        $region64: #{tpu_custom_call.1} parent=39 // pred_fallthru
          _
        %v386 = vld [vmem:[#allocation2] sm:$0xff]
        %v387 = vld [vmem:[#allocation2 + $0x8] sm:$0xff]
        %v388 = vld [vmem:[#allocation2 + $0x10] sm:$0xff]
        %v389 = vld [vmem:[#allocation2 + $0x18] sm:$0xff]
        %v390 = vld [vmem:[#allocation2 + $0x20] sm:$0xff]
        %v391 = vld [vmem:[#allocation2 + $0x28] sm:$0xff]
        %v392 = vld [vmem:[#allocation2 + $0x30] sm:$0xff]
        %v393 = vld [vmem:[#allocation2 + $0x38] sm:$0xff]
        %v394 = vld [vmem:[#allocation2 + $0x40] sm:$0xff]
        %v395 = vld [vmem:[#allocation2 + $0x48] sm:$0xff]
        %v396 = vld [vmem:[#allocation2 + $0x50] sm:$0xff]
        %v397 = vld [vmem:[#allocation2 + $0x58] sm:$0xff]
        %v398 = vld [vmem:[%s287] sm:$0xff]
        %v399 = vld [vmem:[%s287 + $0x8] sm:$0xff]
        %v400 = vld [vmem:[%s297] sm:$0xff]
        %v401 = vld [vmem:[%s297 + $0x8] sm:$0xff]
        %v402 = vld [vmem:[%s297 + $0x10] sm:$0xff]
        %v403 = vld [vmem:[%s297 + $0x18] sm:$0xff]
        %v404 = vld [vmem:[%s297 + $0x20] sm:$0xff]
        %v405 = vld [vmem:[%s297 + $0x28] sm:$0xff]
        %v406 = vld [vmem:[%s297 + $0x30] sm:$0xff]
        %v407 = vld [vmem:[%s297 + $0x38] sm:$0xff]
        %v408 = vld [vmem:[%s297 + $0x40] sm:$0xff]
        %v409 = vld [vmem:[%s297 + $0x48] sm:$0xff]
        %v410 = vld [vmem:[%s297 + $0x50] sm:$0xff]
        %v411 = vld [vmem:[%s297 + $0x58] sm:$0xff]
        %v412 = vld [vmem:[%s297 + $0x60] sm:$0xff]
        %v413 = vld [vmem:[%s297 + $0x68] sm:$0xff]
        %v414 = vld [vmem:[%s297 + $0x70] sm:$0xff]
        %v415 = vld [vmem:[%s297 + $0x78] sm:$0xff]
        %v416 = vld [vmem:[%s297 + $0x80] sm:$0xff]
        %v417 = vld [vmem:[%s297 + $0x88] sm:$0xff]
        %v418 = vld [vmem:[%s297 + $0x90] sm:$0xff]
        %v419 = vld [vmem:[%s297 + $0x98] sm:$0xff]
        %v420 = vld [vmem:[%s297 + $0xa0] sm:$0xff]
        %v421 = vld [vmem:[%s297 + $0xa8] sm:$0xff]
        %v422 = vld [vmem:[%s297 + $0xb0] sm:$0xff]
        %v423 = vld [vmem:[%s297 + $0xb8] sm:$0xff]
        %v424 = vld [vmem:[%s297 + $0xc0] sm:$0xff]
        %v425 = vld [vmem:[%s297 + $0xc8] sm:$0xff]
        %v426 = vld [vmem:[%s297 + $0xd0] sm:$0xff]
        %v427 = vld [vmem:[%s297 + $0xd8] sm:$0xff]
        %v428 = vld [vmem:[%s297 + $0xe0] sm:$0xff]
        %v429 = vld [vmem:[%s297 + $0xe8] sm:$0xff]
        %v430 = vld [vmem:[%s297 + $0xf0] sm:$0xff]
        %v431 = vld [vmem:[%s297 + $0xf8] sm:$0xff]
        %v432 = vld [vmem:[%s297 + $0x100] sm:$0xff]
        %v433 = vld [vmem:[%s297 + $0x108] sm:$0xff]
        %v434 = vld [vmem:[%s297 + $0x110] sm:$0xff]
        %v435 = vld [vmem:[%s297 + $0x118] sm:$0xff]
        %v436 = vld [vmem:[%s297 + $0x120] sm:$0xff]
        %v437 = vld [vmem:[%s297 + $0x128] sm:$0xff]
        %v438 = vld [vmem:[%s297 + $0x130] sm:$0xff]
        %v439 = vld [vmem:[%s297 + $0x138] sm:$0xff]
        %v440 = vld [vmem:[%s297 + $0x140] sm:$0xff]
        %v441 = vld [vmem:[%s297 + $0x148] sm:$0xff]
        %v442 = vld [vmem:[%s297 + $0x150] sm:$0xff]
        %v443 = vld [vmem:[%s297 + $0x158] sm:$0xff]
        %v444 = vld [vmem:[%s297 + $0x160] sm:$0xff]
        %v445 = vld [vmem:[%s297 + $0x168] sm:$0xff]
        %v446 = vld [vmem:[%s297 + $0x170] sm:$0xff]
        %v447 = vld [vmem:[%s297 + $0x178] sm:$0xff]
        %v448 = vld [vmem:[%s297 + $0x180] sm:$0xff]
        %v449 = vld [vmem:[%s297 + $0x188] sm:$0xff]
        %v450 = vld [vmem:[%s297 + $0x190] sm:$0xff]
        %v451 = vld [vmem:[%s297 + $0x198] sm:$0xff]
        %v452 = vld [vmem:[%s297 + $0x1a0] sm:$0xff]
        %v453 = vld [vmem:[%s297 + $0x1a8] sm:$0xff]
        %v454 = vld [vmem:[%s297 + $0x1b0] sm:$0xff]
        %v455 = vld [vmem:[%s297 + $0x1b8] sm:$0xff]
        %v456 = vld [vmem:[%s297 + $0x1c0] sm:$0xff]
        %v457 = vld [vmem:[%s297 + $0x1c8] sm:$0xff]
        %v458 = vld [vmem:[%s297 + $0x1d0] sm:$0xff]
        %v459 = vld [vmem:[%s297 + $0x1d8] sm:$0xff]
        %v460 = vld [vmem:[%s297 + $0x1e0] sm:$0xff]
        %v461 = vld [vmem:[%s297 + $0x1e8] sm:$0xff]
        %v462 = vld [vmem:[%s297 + $0x1f0] sm:$0xff]
        %v463 = vld [vmem:[%s297 + $0x1f8] sm:$0xff]
        %v464 = vld [vmem:[%s297 + $0x200] sm:$0xff]
        %v465 = vld [vmem:[%s297 + $0x208] sm:$0xff]
        %v466 = vld [vmem:[%s297 + $0x210] sm:$0xff]
        %v467 = vld [vmem:[%s297 + $0x218] sm:$0xff]
        %v468 = vld [vmem:[%s297 + $0x220] sm:$0xff]
        %v469 = vld [vmem:[%s297 + $0x228] sm:$0xff]
        %v470 = vld [vmem:[%s297 + $0x230] sm:$0xff]
        %v471 = vld [vmem:[%s297 + $0x238] sm:$0xff]
        %v472 = vld [vmem:[%s297 + $0x240] sm:$0xff]
        %v473 = vld [vmem:[%s297 + $0x248] sm:$0xff]
        %v474 = vld [vmem:[%s297 + $0x250] sm:$0xff]
        %v475 = vld [vmem:[%s297 + $0x258] sm:$0xff]
        %v476 = vld [vmem:[%s297 + $0x260] sm:$0xff]
        %v477 = vld [vmem:[%s297 + $0x268] sm:$0xff]
        %v478 = vld [vmem:[%s297 + $0x270] sm:$0xff]
        %v479 = vld [vmem:[%s297 + $0x278] sm:$0xff]
        %v480 = vld [vmem:[%s297 + $0x280] sm:$0xff]
        %v481 = vld [vmem:[%s297 + $0x288] sm:$0xff]
        %v482 = vld [vmem:[%s297 + $0x290] sm:$0xff]
        %v483 = vld [vmem:[%s297 + $0x298] sm:$0xff]
        %v484 = vld [vmem:[%s297 + $0x2a0] sm:$0xff]
        %v485 = vld [vmem:[%s297 + $0x2a8] sm:$0xff]
        %v486 = vld [vmem:[%s297 + $0x2b0] sm:$0xff]
        %v487 = vld [vmem:[%s297 + $0x2b8] sm:$0xff]
        %v488 = vld [vmem:[%s297 + $0x2c0] sm:$0xff]
        %v489 = vld [vmem:[%s297 + $0x2c8] sm:$0xff]
        %v490 = vld [vmem:[%s297 + $0x2d0] sm:$0xff]
        %v491 = vld [vmem:[%s297 + $0x2d8] sm:$0xff]
        %v492 = vld [vmem:[%s297 + $0x2e0] sm:$0xff]
        %v493 = vld [vmem:[%s297 + $0x2e8] sm:$0xff]
        %v494 = vld [vmem:[%s297 + $0x2f0] sm:$0xff]
        %v495 = vld [vmem:[%s297 + $0x2f8] sm:$0xff]
        %v496 = vld [vmem:[%s297 + $0x300] sm:$0xff]
        %v497 = vld [vmem:[%s297 + $0x308] sm:$0xff]
        %v498 = vld [vmem:[%s297 + $0x310] sm:$0xff]
        %v499 = vld [vmem:[%s297 + $0x318] sm:$0xff]
        %v500 = vld [vmem:[%s297 + $0x320] sm:$0xff]
        %v501 = vld [vmem:[%s297 + $0x328] sm:$0xff]
        %v502 = vld [vmem:[%s297 + $0x330] sm:$0xff]
        %v503 = vld [vmem:[%s297 + $0x338] sm:$0xff]
        %v504 = vld [vmem:[%s297 + $0x340] sm:$0xff]
        %v505 = vld [vmem:[%s297 + $0x348] sm:$0xff]
        %v506 = vld [vmem:[%s297 + $0x350] sm:$0xff]
        %v507 = vld [vmem:[%s297 + $0x358] sm:$0xff]
        %v508 = vld [vmem:[%s297 + $0x360] sm:$0xff]
        %v509 = vld [vmem:[%s297 + $0x368] sm:$0xff]
        %v510 = vld [vmem:[%s297 + $0x370] sm:$0xff]
        %v511 = vld [vmem:[%s297 + $0x378] sm:$0xff]
        %v512 = vld [vmem:[%s297 + $0x380] sm:$0xff]
        %v513 = vld [vmem:[%s297 + $0x388] sm:$0xff]
        %v514 = vld [vmem:[%s297 + $0x390] sm:$0xff]
        %v515 = vld [vmem:[%s297 + $0x398] sm:$0xff]
        %v516 = vld [vmem:[%s297 + $0x3a0] sm:$0xff]
        %v517 = vld [vmem:[%s297 + $0x3a8] sm:$0xff]
        %v518 = vld [vmem:[%s297 + $0x3b0] sm:$0xff]
        %v519 = vld [vmem:[%s297 + $0x3b8] sm:$0xff]
        %v520 = vld [vmem:[%s297 + $0x3c0] sm:$0xff]
        %v521 = vld [vmem:[%s297 + $0x3c8] sm:$0xff]
        %v522 = vld [vmem:[%s297 + $0x3d0] sm:$0xff]
        %v523 = vld [vmem:[%s297 + $0x3d8] sm:$0xff]
        %v524 = vld [vmem:[%s297 + $0x3e0] sm:$0xff]
        %v525 = vld [vmem:[%s297 + $0x3e8] sm:$0xff]
        %v526 = vld [vmem:[%s297 + $0x3f0] sm:$0xff]
        %v527 = vld [vmem:[%s297 + $0x3f8] sm:$0xff]
        %v528 = vld [vmem:[%s297 + $0x400] sm:$0xff]
        %v529 = vld [vmem:[%s297 + $0x408] sm:$0xff]
        %v530 = vld [vmem:[%s297 + $0x410] sm:$0xff]
        %v531 = vld [vmem:[%s297 + $0x418] sm:$0xff]
        %v532 = vld [vmem:[%s297 + $0x420] sm:$0xff]
        %v533 = vld [vmem:[%s297 + $0x428] sm:$0xff]
        %v534 = vld [vmem:[%s297 + $0x430] sm:$0xff]
        %v535 = vld [vmem:[%s297 + $0x438] sm:$0xff]
        %v536 = vld [vmem:[%s297 + $0x440] sm:$0xff]
        %v537 = vld [vmem:[%s297 + $0x448] sm:$0xff]
        %v538 = vld [vmem:[%s297 + $0x450] sm:$0xff]
        %v539 = vld [vmem:[%s297 + $0x458] sm:$0xff]
        %v540 = vld [vmem:[%s297 + $0x460] sm:$0xff]
        %v541 = vld [vmem:[%s297 + $0x468] sm:$0xff]
        %v542 = vld [vmem:[%s297 + $0x470] sm:$0xff]
        %v543 = vld [vmem:[%s297 + $0x478] sm:$0xff]
        %v544 = vld [vmem:[%s297 + $0x480] sm:$0xff]
        %v545 = vld [vmem:[%s297 + $0x488] sm:$0xff]
        %v546 = vld [vmem:[%s297 + $0x490] sm:$0xff]
        %v547 = vld [vmem:[%s297 + $0x498] sm:$0xff]
        %v548 = vld [vmem:[%s297 + $0x4a0] sm:$0xff]
        %v549 = vld [vmem:[%s297 + $0x4a8] sm:$0xff]
        %v550 = vld [vmem:[%s297 + $0x4b0] sm:$0xff]
        %v551 = vld [vmem:[%s297 + $0x4b8] sm:$0xff]
        %v552 = vld [vmem:[%s297 + $0x4c0] sm:$0xff]
        %v553 = vld [vmem:[%s297 + $0x4c8] sm:$0xff]
        %v554 = vld [vmem:[%s297 + $0x4d0] sm:$0xff]
        %v555 = vld [vmem:[%s297 + $0x4d8] sm:$0xff]
        %v556 = vld [vmem:[%s297 + $0x4e0] sm:$0xff]
        %v557 = vld [vmem:[%s297 + $0x4e8] sm:$0xff]
        %v558 = vld [vmem:[%s297 + $0x4f0] sm:$0xff]
        %v559 = vld [vmem:[%s297 + $0x4f8] sm:$0xff]
        %v560 = vld [vmem:[%s297 + $0x500] sm:$0xff]
        %v561 = vld [vmem:[%s297 + $0x508] sm:$0xff]
        %v562 = vld [vmem:[%s297 + $0x510] sm:$0xff]
        %v563 = vld [vmem:[%s297 + $0x518] sm:$0xff]
        %v564 = vld [vmem:[%s297 + $0x520] sm:$0xff]
        %v565 = vld [vmem:[%s297 + $0x528] sm:$0xff]
        %v566 = vld [vmem:[%s297 + $0x530] sm:$0xff]
        %v567 = vld [vmem:[%s297 + $0x538] sm:$0xff]
        %v568 = vld [vmem:[%s297 + $0x540] sm:$0xff]
        %v569 = vld [vmem:[%s297 + $0x548] sm:$0xff]
        %v570 = vld [vmem:[%s297 + $0x550] sm:$0xff]
        %v571 = vld [vmem:[%s297 + $0x558] sm:$0xff]
        %v572 = vld [vmem:[%s297 + $0x560] sm:$0xff]
        %v573 = vld [vmem:[%s297 + $0x568] sm:$0xff]
        %v574 = vld [vmem:[%s297 + $0x570] sm:$0xff]
        %v575 = vld [vmem:[%s297 + $0x578] sm:$0xff]
        %v576 = vld [vmem:[%s297 + $0x580] sm:$0xff]
        %v577 = vld [vmem:[%s297 + $0x588] sm:$0xff]
        %v578 = vld [vmem:[%s297 + $0x590] sm:$0xff]
        %v579 = vld [vmem:[%s297 + $0x598] sm:$0xff]
        %v580 = vld [vmem:[%s297 + $0x5a0] sm:$0xff]
        %v581 = vld [vmem:[%s297 + $0x5a8] sm:$0xff]
        %v582 = vld [vmem:[%s297 + $0x5b0] sm:$0xff]
        %v583 = vld [vmem:[%s297 + $0x5b8] sm:$0xff]
        %v584 = vld [vmem:[%s297 + $0x5c0] sm:$0xff]
        %v585 = vld [vmem:[%s297 + $0x5c8] sm:$0xff]
        %v586 = vld [vmem:[%s297 + $0x5d0] sm:$0xff]
        %v587 = vld [vmem:[%s297 + $0x5d8] sm:$0xff]
        %v588 = vld [vmem:[%s297 + $0x5e0] sm:$0xff]
        %v589 = vld [vmem:[%s297 + $0x5e8] sm:$0xff]
        %v590 = vld [vmem:[%s297 + $0x5f0] sm:$0xff]
        %v591 = vld [vmem:[%s297 + $0x5f8] sm:$0xff]
        %v592 = vld [vmem:[%s297 + $0x600] sm:$0xff]
        %v593 = vld [vmem:[%s297 + $0x608] sm:$0xff]
        %v594 = vld [vmem:[%s297 + $0x610] sm:$0xff]
        %v595 = vld [vmem:[%s297 + $0x618] sm:$0xff]
        %v596 = vld [vmem:[%s297 + $0x620] sm:$0xff]
        %v597 = vld [vmem:[%s297 + $0x628] sm:$0xff]
        %v598 = vld [vmem:[%s297 + $0x630] sm:$0xff]
        %v599 = vld [vmem:[%s297 + $0x638] sm:$0xff]
        %v600 = vld [vmem:[%s297 + $0x640] sm:$0xff]
        %v601 = vld [vmem:[%s297 + $0x648] sm:$0xff]
        %v602 = vld [vmem:[%s297 + $0x650] sm:$0xff]
        %v603 = vld [vmem:[%s297 + $0x658] sm:$0xff]
        %v604 = vld [vmem:[%s297 + $0x660] sm:$0xff]
        %v605 = vld [vmem:[%s297 + $0x668] sm:$0xff]
        %v606 = vld [vmem:[%s297 + $0x670] sm:$0xff]
        %v607 = vld [vmem:[%s297 + $0x678] sm:$0xff]
        %v608 = vld [vmem:[%s297 + $0x680] sm:$0xff]
        %v609 = vld [vmem:[%s297 + $0x688] sm:$0xff]
        %v610 = vld [vmem:[%s297 + $0x690] sm:$0xff]
        %v611 = vld [vmem:[%s297 + $0x698] sm:$0xff]
        %v612 = vld [vmem:[%s297 + $0x6a0] sm:$0xff]
        %v613 = vld [vmem:[%s297 + $0x6a8] sm:$0xff]
        %v614 = vld [vmem:[%s297 + $0x6b0] sm:$0xff]
        %v615 = vld [vmem:[%s297 + $0x6b8] sm:$0xff]
        %v616 = vld [vmem:[%s297 + $0x6c0] sm:$0xff]
        %v617 = vld [vmem:[%s297 + $0x6c8] sm:$0xff]
        %v618 = vld [vmem:[%s297 + $0x6d0] sm:$0xff]
        %v619 = vld [vmem:[%s297 + $0x6d8] sm:$0xff]
        %v620 = vld [vmem:[%s297 + $0x6e0] sm:$0xff]
        %v621 = vld [vmem:[%s297 + $0x6e8] sm:$0xff]
        %v622 = vld [vmem:[%s297 + $0x6f0] sm:$0xff]
        %v623 = vld [vmem:[%s297 + $0x6f8] sm:$0xff]
        %v624 = vld [vmem:[%s297 + $0x700] sm:$0xff]
        %v625 = vld [vmem:[%s297 + $0x708] sm:$0xff]
        %v626 = vld [vmem:[%s297 + $0x710] sm:$0xff]
        %v627 = vld [vmem:[%s297 + $0x718] sm:$0xff]
        %v628 = vld [vmem:[%s297 + $0x720] sm:$0xff]
        %v629 = vld [vmem:[%s297 + $0x728] sm:$0xff]
        %v630 = vld [vmem:[%s297 + $0x730] sm:$0xff]
        %v631 = vld [vmem:[%s297 + $0x738] sm:$0xff]
        %v632 = vld [vmem:[%s297 + $0x740] sm:$0xff]
        %v633 = vld [vmem:[%s297 + $0x748] sm:$0xff]
        %v634 = vld [vmem:[%s297 + $0x750] sm:$0xff]
        %v635 = vld [vmem:[%s297 + $0x758] sm:$0xff]
        %v636 = vld [vmem:[%s297 + $0x760] sm:$0xff]
        %v637 = vld [vmem:[%s297 + $0x768] sm:$0xff]
        %v638 = vld [vmem:[%s297 + $0x770] sm:$0xff]
        %v639 = vld [vmem:[%s297 + $0x778] sm:$0xff]
        %v640 = vld [vmem:[%s297 + $0x780] sm:$0xff]
        %v641 = vld [vmem:[%s297 + $0x788] sm:$0xff]
        %v642 = vld [vmem:[%s297 + $0x790] sm:$0xff]
        %v643 = vld [vmem:[%s297 + $0x798] sm:$0xff]
        %v644 = vld [vmem:[%s297 + $0x7a0] sm:$0xff]
        %v645 = vld [vmem:[%s297 + $0x7a8] sm:$0xff]
        %v646 = vld [vmem:[%s297 + $0x7b0] sm:$0xff]
        %v647 = vld [vmem:[%s297 + $0x7b8] sm:$0xff]
        %v648 = vld [vmem:[%s297 + $0x7c0] sm:$0xff]
        %v649 = vld [vmem:[%s297 + $0x7c8] sm:$0xff]
        %v650 = vld [vmem:[%s297 + $0x7d0] sm:$0xff]
        %v651 = vld [vmem:[%s297 + $0x7d8] sm:$0xff]
        %v652 = vld [vmem:[%s297 + $0x7e0] sm:$0xff]
        %v653 = vld [vmem:[%s297 + $0x7e8] sm:$0xff]
        %v654 = vld [vmem:[%s297 + $0x7f0] sm:$0xff]
        %v655 = vld [vmem:[%s297 + $0x7f8] sm:$0xff]
        %v656 = vld [vmem:[%s297 + $0x800] sm:$0xff]
        %v657 = vld [vmem:[%s297 + $0x808] sm:$0xff]
        %v658 = vld [vmem:[%s297 + $0x810] sm:$0xff]
        %v659 = vld [vmem:[%s297 + $0x818] sm:$0xff]
        %v660 = vld [vmem:[%s297 + $0x820] sm:$0xff]
        %v661 = vld [vmem:[%s297 + $0x828] sm:$0xff]
        %v662 = vld [vmem:[%s297 + $0x830] sm:$0xff]
        %v663 = vld [vmem:[%s297 + $0x838] sm:$0xff]
        %v664 = vld [vmem:[%s297 + $0x840] sm:$0xff]
        %v665 = vld [vmem:[%s297 + $0x848] sm:$0xff]
        %v666 = vld [vmem:[%s297 + $0x850] sm:$0xff]
        %v667 = vld [vmem:[%s297 + $0x858] sm:$0xff]
        %v668 = vld [vmem:[%s297 + $0x860] sm:$0xff]
        %v669 = vld [vmem:[%s297 + $0x868] sm:$0xff]
        %v670 = vld [vmem:[%s297 + $0x870] sm:$0xff]
        %v671 = vld [vmem:[%s297 + $0x878] sm:$0xff]
        %v672 = vld [vmem:[%s297 + $0x880] sm:$0xff]
        %v673 = vld [vmem:[%s297 + $0x888] sm:$0xff]
        %v674 = vld [vmem:[%s297 + $0x890] sm:$0xff]
        %v675 = vld [vmem:[%s297 + $0x898] sm:$0xff]
        %v676 = vld [vmem:[%s297 + $0x8a0] sm:$0xff]
        %v677 = vld [vmem:[%s297 + $0x8a8] sm:$0xff]
        %v678 = vld [vmem:[%s297 + $0x8b0] sm:$0xff]
        %v679 = vld [vmem:[%s297 + $0x8b8] sm:$0xff]
        %v680 = vld [vmem:[%s297 + $0x8c0] sm:$0xff]
        %v681 = vld [vmem:[%s297 + $0x8c8] sm:$0xff]
        %v682 = vld [vmem:[%s297 + $0x8d0] sm:$0xff]
        %v683 = vld [vmem:[%s297 + $0x8d8] sm:$0xff]
        %v684 = vld [vmem:[%s297 + $0x8e0] sm:$0xff]
        %v685 = vld [vmem:[%s297 + $0x8e8] sm:$0xff]
        %v686 = vld [vmem:[%s297 + $0x8f0] sm:$0xff]
        %v687 = vld [vmem:[%s297 + $0x8f8] sm:$0xff]
        %v688 = vld [vmem:[%s297 + $0x900] sm:$0xff]
        %v689 = vld [vmem:[%s297 + $0x908] sm:$0xff]
        %v690 = vld [vmem:[%s297 + $0x910] sm:$0xff]
        %v691 = vld [vmem:[%s297 + $0x918] sm:$0xff]
        %v692 = vld [vmem:[%s297 + $0x920] sm:$0xff]
        %v693 = vld [vmem:[%s297 + $0x928] sm:$0xff]
        %v694 = vld [vmem:[%s297 + $0x930] sm:$0xff]
        %v695 = vld [vmem:[%s297 + $0x938] sm:$0xff]
        %v696 = vld [vmem:[%s297 + $0x940] sm:$0xff]
        %v697 = vld [vmem:[%s297 + $0x948] sm:$0xff]
        %v698 = vld [vmem:[%s297 + $0x950] sm:$0xff]
        %v699 = vld [vmem:[%s297 + $0x958] sm:$0xff]
        %v700 = vld [vmem:[%s297 + $0x960] sm:$0xff]
        %v701 = vld [vmem:[%s297 + $0x968] sm:$0xff]
        %v702 = vld [vmem:[%s297 + $0x970] sm:$0xff]
        %v703 = vld [vmem:[%s297 + $0x978] sm:$0xff]
        %v704 = vld [vmem:[%s297 + $0x980] sm:$0xff]
        %v705 = vld [vmem:[%s297 + $0x988] sm:$0xff]
        %v706 = vld [vmem:[%s297 + $0x990] sm:$0xff]
        %v707 = vld [vmem:[%s297 + $0x998] sm:$0xff]
        %v708 = vld [vmem:[%s297 + $0x9a0] sm:$0xff]
        %v709 = vld [vmem:[%s297 + $0x9a8] sm:$0xff]
        %v710 = vld [vmem:[%s297 + $0x9b0] sm:$0xff]
        %v711 = vld [vmem:[%s297 + $0x9b8] sm:$0xff]
        %v712 = vld [vmem:[%s297 + $0x9c0] sm:$0xff]
        %v713 = vld [vmem:[%s297 + $0x9c8] sm:$0xff]
        %v714 = vld [vmem:[%s297 + $0x9d0] sm:$0xff]
        %v715 = vld [vmem:[%s297 + $0x9d8] sm:$0xff]
        %v716 = vld [vmem:[%s297 + $0x9e0] sm:$0xff]
        %v717 = vld [vmem:[%s297 + $0x9e8] sm:$0xff]
        %v718 = vld [vmem:[%s297 + $0x9f0] sm:$0xff]
        %v719 = vld [vmem:[%s297 + $0x9f8] sm:$0xff]
        %v720 = vld [vmem:[%s297 + $0xa00] sm:$0xff]
        %v721 = vld [vmem:[%s297 + $0xa08] sm:$0xff]
        %v722 = vld [vmem:[%s297 + $0xa10] sm:$0xff]
        %v723 = vld [vmem:[%s297 + $0xa18] sm:$0xff]
        %v724 = vld [vmem:[%s297 + $0xa20] sm:$0xff]
        %v725 = vld [vmem:[%s297 + $0xa28] sm:$0xff]
        %v726 = vld [vmem:[%s297 + $0xa30] sm:$0xff]
        %v727 = vld [vmem:[%s297 + $0xa38] sm:$0xff]
        %v728 = vld [vmem:[%s297 + $0xa40] sm:$0xff]
        %v729 = vld [vmem:[%s297 + $0xa48] sm:$0xff]
        %v730 = vld [vmem:[%s297 + $0xa50] sm:$0xff]
        %v731 = vld [vmem:[%s297 + $0xa58] sm:$0xff]
        %v732 = vld [vmem:[%s297 + $0xa60] sm:$0xff]
        %v733 = vld [vmem:[%s297 + $0xa68] sm:$0xff]
        %v734 = vld [vmem:[%s297 + $0xa70] sm:$0xff]
        %v735 = vld [vmem:[%s297 + $0xa78] sm:$0xff]
        %v736 = vld [vmem:[%s297 + $0xa80] sm:$0xff]
        %v737 = vld [vmem:[%s297 + $0xa88] sm:$0xff]
        %v738 = vld [vmem:[%s297 + $0xa90] sm:$0xff]
        %v739 = vld [vmem:[%s297 + $0xa98] sm:$0xff]
        %v740 = vld [vmem:[%s297 + $0xaa0] sm:$0xff]
        %v741 = vld [vmem:[%s297 + $0xaa8] sm:$0xff]
        %v742 = vld [vmem:[%s297 + $0xab0] sm:$0xff]
        %v743 = vld [vmem:[%s297 + $0xab8] sm:$0xff]
        %v744 = vld [vmem:[%s297 + $0xac0] sm:$0xff]
        %v745 = vld [vmem:[%s297 + $0xac8] sm:$0xff]
        %v746 = vld [vmem:[%s297 + $0xad0] sm:$0xff]
        %v747 = vld [vmem:[%s297 + $0xad8] sm:$0xff]
        %v748 = vld [vmem:[%s297 + $0xae0] sm:$0xff]
        %v749 = vld [vmem:[%s297 + $0xae8] sm:$0xff]
        %v750 = vld [vmem:[%s297 + $0xaf0] sm:$0xff]
        %v751 = vld [vmem:[%s297 + $0xaf8] sm:$0xff]
        %v752 = vld [vmem:[%s297 + $0xb00] sm:$0xff]
        %v753 = vld [vmem:[%s297 + $0xb08] sm:$0xff]
        %v754 = vld [vmem:[%s297 + $0xb10] sm:$0xff]
        %v755 = vld [vmem:[%s297 + $0xb18] sm:$0xff]
        %v756 = vld [vmem:[%s297 + $0xb20] sm:$0xff]
        %v757 = vld [vmem:[%s297 + $0xb28] sm:$0xff]
        %v758 = vld [vmem:[%s297 + $0xb30] sm:$0xff]
        %v759 = vld [vmem:[%s297 + $0xb38] sm:$0xff]
        %v760 = vld [vmem:[%s297 + $0xb40] sm:$0xff]
        %v761 = vld [vmem:[%s297 + $0xb48] sm:$0xff]
        %v762 = vld [vmem:[%s297 + $0xb50] sm:$0xff]
        %v763 = vld [vmem:[%s297 + $0xb58] sm:$0xff]
        %v764 = vld [vmem:[%s297 + $0xb60] sm:$0xff]
        %v765 = vld [vmem:[%s297 + $0xb68] sm:$0xff]
        %v766 = vld [vmem:[%s297 + $0xb70] sm:$0xff]
        %v767 = vld [vmem:[%s297 + $0xb78] sm:$0xff]
        %v768 = vld [vmem:[%s297 + $0xb80] sm:$0xff]
        %v769 = vld [vmem:[%s297 + $0xb88] sm:$0xff]
        %v770 = vld [vmem:[%s297 + $0xb90] sm:$0xff]
        %v771 = vld [vmem:[%s297 + $0xb98] sm:$0xff]
        %v772 = vld [vmem:[%s297 + $0xba0] sm:$0xff]
        %v773 = vld [vmem:[%s297 + $0xba8] sm:$0xff]
        %v774 = vld [vmem:[%s297 + $0xbb0] sm:$0xff]
        %v775 = vld [vmem:[%s297 + $0xbb8] sm:$0xff]
        %v776 = vld [vmem:[%s297 + $0xbc0] sm:$0xff]
        %v777 = vld [vmem:[%s297 + $0xbc8] sm:$0xff]
        %v778 = vld [vmem:[%s297 + $0xbd0] sm:$0xff]
        %v779 = vld [vmem:[%s297 + $0xbd8] sm:$0xff]
        %v780 = vld [vmem:[%s297 + $0xbe0] sm:$0xff]
        %v781 = vld [vmem:[%s297 + $0xbe8] sm:$0xff]
        %v782 = vld [vmem:[%s297 + $0xbf0] sm:$0xff]
        %v783 = vld [vmem:[%s297 + $0xbf8] sm:$0xff]
        %v786 = vunpack.c.l.b16 %v398
        %v787 = vunpack.c.h.b16 %v398
        %v788 = vunpack.c.l.b16 %v399
        %v789 = vunpack.c.h.b16 %v399
        %v790 = vpack.c.b16 %v786, %v786
        %v791 = vpack.c.b16 %v787, %v787
        %v792 = vpack.c.b16 %v788, %v788
        %v793 = vpack.c.b16 %v789, %v789
        %v1182 = vunpack.c.l.b16 %v400
        %v1183 = vunpack.c.h.b16 %v400
        %v1184 = vunpack.c.l.b16 %v401
        %v1185 = vunpack.c.h.b16 %v401
        %v1186 = vunpack.c.l.b16 %v402
        %v1187 = vunpack.c.h.b16 %v402
        %v1188 = vunpack.c.l.b16 %v403
        %v1189 = vunpack.c.h.b16 %v403
        %v1190 = vunpack.c.l.b16 %v404
        %v1191 = vunpack.c.h.b16 %v404
        %v1192 = vunpack.c.l.b16 %v405
        %v1193 = vunpack.c.h.b16 %v405
        %v1194 = vunpack.c.l.b16 %v406
        %v1195 = vunpack.c.h.b16 %v406
        %v1196 = vunpack.c.l.b16 %v407
        %v1197 = vunpack.c.h.b16 %v407
        %v1198 = vunpack.c.l.b16 %v408
        %v1199 = vunpack.c.h.b16 %v408
        %v1200 = vunpack.c.l.b16 %v409
        %v1201 = vunpack.c.h.b16 %v409
        %v1202 = vunpack.c.l.b16 %v410
        %v1203 = vunpack.c.h.b16 %v410
        %v1204 = vunpack.c.l.b16 %v411
        %v1205 = vunpack.c.h.b16 %v411
        %v1206 = vunpack.c.l.b16 %v412
        %v1207 = vunpack.c.h.b16 %v412
        %v1208 = vunpack.c.l.b16 %v413
        %v1209 = vunpack.c.h.b16 %v413
        %v1210 = vunpack.c.l.b16 %v414
        %v1211 = vunpack.c.h.b16 %v414
        %v1212 = vunpack.c.l.b16 %v415
        %v1213 = vunpack.c.h.b16 %v415
        %v1214 = vunpack.c.l.b16 %v416
        %v1215 = vunpack.c.h.b16 %v416
        %v1216 = vunpack.c.l.b16 %v417
        %v1217 = vunpack.c.h.b16 %v417
        %v1218 = vunpack.c.l.b16 %v418
        %v1219 = vunpack.c.h.b16 %v418
        %v1220 = vunpack.c.l.b16 %v419
        %v1221 = vunpack.c.h.b16 %v419
        %v1222 = vunpack.c.l.b16 %v420
        %v1223 = vunpack.c.h.b16 %v420
        %v1224 = vunpack.c.l.b16 %v421
        %v1225 = vunpack.c.h.b16 %v421
        %v1226 = vunpack.c.l.b16 %v422
        %v1227 = vunpack.c.h.b16 %v422
        %v1228 = vunpack.c.l.b16 %v423
        %v1229 = vunpack.c.h.b16 %v423
        %v1230 = vunpack.c.l.b16 %v424
        %v1231 = vunpack.c.h.b16 %v424
        %v1232 = vunpack.c.l.b16 %v425
        %v1233 = vunpack.c.h.b16 %v425
        %v1234 = vunpack.c.l.b16 %v426
        %v1235 = vunpack.c.h.b16 %v426
        %v1236 = vunpack.c.l.b16 %v427
        %v1237 = vunpack.c.h.b16 %v427
        %v1238 = vunpack.c.l.b16 %v428
        %v1239 = vunpack.c.h.b16 %v428
        %v1240 = vunpack.c.l.b16 %v429
        %v1241 = vunpack.c.h.b16 %v429
        %v1242 = vunpack.c.l.b16 %v430
        %v1243 = vunpack.c.h.b16 %v430
        %v1244 = vunpack.c.l.b16 %v431
        %v1245 = vunpack.c.h.b16 %v431
        %v1246 = vunpack.c.l.b16 %v432
        %v1247 = vunpack.c.h.b16 %v432
        %v1248 = vunpack.c.l.b16 %v433
        %v1249 = vunpack.c.h.b16 %v433
        %v1250 = vunpack.c.l.b16 %v434
        %v1251 = vunpack.c.h.b16 %v434
        %v1252 = vunpack.c.l.b16 %v435
        %v1253 = vunpack.c.h.b16 %v435
        %v1254 = vunpack.c.l.b16 %v436
        %v1255 = vunpack.c.h.b16 %v436
        %v1256 = vunpack.c.l.b16 %v437
        %v1257 = vunpack.c.h.b16 %v437
        %v1258 = vunpack.c.l.b16 %v438
        %v1259 = vunpack.c.h.b16 %v438
        %v1260 = vunpack.c.l.b16 %v439
        %v1261 = vunpack.c.h.b16 %v439
        %v1262 = vunpack.c.l.b16 %v440
        %v1263 = vunpack.c.h.b16 %v440
        %v1264 = vunpack.c.l.b16 %v441
        %v1265 = vunpack.c.h.b16 %v441
        %v1266 = vunpack.c.l.b16 %v442
        %v1267 = vunpack.c.h.b16 %v442
        %v1268 = vunpack.c.l.b16 %v443
        %v1269 = vunpack.c.h.b16 %v443
        %v1270 = vunpack.c.l.b16 %v444
        %v1271 = vunpack.c.h.b16 %v444
        %v1272 = vunpack.c.l.b16 %v445
        %v1273 = vunpack.c.h.b16 %v445
        %v1274 = vunpack.c.l.b16 %v446
        %v1275 = vunpack.c.h.b16 %v446
        %v1276 = vunpack.c.l.b16 %v447
        %v1277 = vunpack.c.h.b16 %v447
        %v1278 = vunpack.c.l.b16 %v448
        %v1279 = vunpack.c.h.b16 %v448
        %v1280 = vunpack.c.l.b16 %v449
        %v1281 = vunpack.c.h.b16 %v449
        %v1282 = vunpack.c.l.b16 %v450
        %v1283 = vunpack.c.h.b16 %v450
        %v1284 = vunpack.c.l.b16 %v451
        %v1285 = vunpack.c.h.b16 %v451
        %v1286 = vunpack.c.l.b16 %v452
        %v1287 = vunpack.c.h.b16 %v452
        %v1288 = vunpack.c.l.b16 %v453
        %v1289 = vunpack.c.h.b16 %v453
        %v1290 = vunpack.c.l.b16 %v454
        %v1291 = vunpack.c.h.b16 %v454
        %v1292 = vunpack.c.l.b16 %v455
        %v1293 = vunpack.c.h.b16 %v455
        %v1294 = vunpack.c.l.b16 %v456
        %v1295 = vunpack.c.h.b16 %v456
        %v1296 = vunpack.c.l.b16 %v457
        %v1297 = vunpack.c.h.b16 %v457
        %v1298 = vunpack.c.l.b16 %v458
        %v1299 = vunpack.c.h.b16 %v458
        %v1300 = vunpack.c.l.b16 %v459
        %v1301 = vunpack.c.h.b16 %v459
        %v1302 = vunpack.c.l.b16 %v460
        %v1303 = vunpack.c.h.b16 %v460
        %v1304 = vunpack.c.l.b16 %v461
        %v1305 = vunpack.c.h.b16 %v461
        %v1306 = vunpack.c.l.b16 %v462
        %v1307 = vunpack.c.h.b16 %v462
        %v1308 = vunpack.c.l.b16 %v463
        %v1309 = vunpack.c.h.b16 %v463
        %v1310 = vunpack.c.l.b16 %v464
        %v1311 = vunpack.c.h.b16 %v464
        %v1312 = vunpack.c.l.b16 %v465
        %v1313 = vunpack.c.h.b16 %v465
        %v1314 = vunpack.c.l.b16 %v466
        %v1315 = vunpack.c.h.b16 %v466
        %v1316 = vunpack.c.l.b16 %v467
        %v1317 = vunpack.c.h.b16 %v467
        %v1318 = vunpack.c.l.b16 %v468
        %v1319 = vunpack.c.h.b16 %v468
        %v1320 = vunpack.c.l.b16 %v469
        %v1321 = vunpack.c.h.b16 %v469
        %v1322 = vunpack.c.l.b16 %v470
        %v1323 = vunpack.c.h.b16 %v470
        %v1324 = vunpack.c.l.b16 %v471
        %v1325 = vunpack.c.h.b16 %v471
        %v1326 = vunpack.c.l.b16 %v472
        %v1327 = vunpack.c.h.b16 %v472
        %v1328 = vunpack.c.l.b16 %v473
        %v1329 = vunpack.c.h.b16 %v473
        %v1330 = vunpack.c.l.b16 %v474
        %v1331 = vunpack.c.h.b16 %v474
        %v1332 = vunpack.c.l.b16 %v475
        %v1333 = vunpack.c.h.b16 %v475
        %v1334 = vunpack.c.l.b16 %v476
        %v1335 = vunpack.c.h.b16 %v476
        %v1336 = vunpack.c.l.b16 %v477
        %v1337 = vunpack.c.h.b16 %v477
        %v1338 = vunpack.c.l.b16 %v478
        %v1339 = vunpack.c.h.b16 %v478
        %v1340 = vunpack.c.l.b16 %v479
        %v1341 = vunpack.c.h.b16 %v479
        %v1342 = vunpack.c.l.b16 %v480
        %v1343 = vunpack.c.h.b16 %v480
        %v1344 = vunpack.c.l.b16 %v481
        %v1345 = vunpack.c.h.b16 %v481
        %v1346 = vunpack.c.l.b16 %v482
        %v1347 = vunpack.c.h.b16 %v482
        %v1348 = vunpack.c.l.b16 %v483
        %v1349 = vunpack.c.h.b16 %v483
        %v1350 = vunpack.c.l.b16 %v484
        %v1351 = vunpack.c.h.b16 %v484
        %v1352 = vunpack.c.l.b16 %v485
        %v1353 = vunpack.c.h.b16 %v485
        %v1354 = vunpack.c.l.b16 %v486
        %v1355 = vunpack.c.h.b16 %v486
        %v1356 = vunpack.c.l.b16 %v487
        %v1357 = vunpack.c.h.b16 %v487
        %v1358 = vunpack.c.l.b16 %v488
        %v1359 = vunpack.c.h.b16 %v488
        %v1360 = vunpack.c.l.b16 %v489
        %v1361 = vunpack.c.h.b16 %v489
        %v1362 = vunpack.c.l.b16 %v490
        %v1363 = vunpack.c.h.b16 %v490
        %v1364 = vunpack.c.l.b16 %v491
        %v1365 = vunpack.c.h.b16 %v491
        %v1366 = vunpack.c.l.b16 %v492
        %v1367 = vunpack.c.h.b16 %v492
        %v1368 = vunpack.c.l.b16 %v493
        %v1369 = vunpack.c.h.b16 %v493
        %v1370 = vunpack.c.l.b16 %v494
        %v1371 = vunpack.c.h.b16 %v494
        %v1372 = vunpack.c.l.b16 %v495
        %v1373 = vunpack.c.h.b16 %v495
        %v1374 = vunpack.c.l.b16 %v496
        %v1375 = vunpack.c.h.b16 %v496
        %v1376 = vunpack.c.l.b16 %v497
        %v1377 = vunpack.c.h.b16 %v497
        %v1378 = vunpack.c.l.b16 %v498
        %v1379 = vunpack.c.h.b16 %v498
        %v1380 = vunpack.c.l.b16 %v499
        %v1381 = vunpack.c.h.b16 %v499
        %v1382 = vunpack.c.l.b16 %v500
        %v1383 = vunpack.c.h.b16 %v500
        %v1384 = vunpack.c.l.b16 %v501
        %v1385 = vunpack.c.h.b16 %v501
        %v1386 = vunpack.c.l.b16 %v502
        %v1387 = vunpack.c.h.b16 %v502
        %v1388 = vunpack.c.l.b16 %v503
        %v1389 = vunpack.c.h.b16 %v503
        %v1390 = vunpack.c.l.b16 %v504
        %v1391 = vunpack.c.h.b16 %v504
        %v1392 = vunpack.c.l.b16 %v505
        %v1393 = vunpack.c.h.b16 %v505
        %v1394 = vunpack.c.l.b16 %v506
        %v1395 = vunpack.c.h.b16 %v506
        %v1396 = vunpack.c.l.b16 %v507
        %v1397 = vunpack.c.h.b16 %v507
        %v1398 = vunpack.c.l.b16 %v508
        %v1399 = vunpack.c.h.b16 %v508
        %v1400 = vunpack.c.l.b16 %v509
        %v1401 = vunpack.c.h.b16 %v509
        %v1402 = vunpack.c.l.b16 %v510
        %v1403 = vunpack.c.h.b16 %v510
        %v1404 = vunpack.c.l.b16 %v511
        %v1405 = vunpack.c.h.b16 %v511
        %v1406 = vunpack.c.l.b16 %v512
        %v1407 = vunpack.c.h.b16 %v512
        %v1408 = vunpack.c.l.b16 %v513
        %v1409 = vunpack.c.h.b16 %v513
        %v1410 = vunpack.c.l.b16 %v514
        %v1411 = vunpack.c.h.b16 %v514
        %v1412 = vunpack.c.l.b16 %v515
        %v1413 = vunpack.c.h.b16 %v515
        %v1414 = vunpack.c.l.b16 %v516
        %v1415 = vunpack.c.h.b16 %v516
        %v1416 = vunpack.c.l.b16 %v517
        %v1417 = vunpack.c.h.b16 %v517
        %v1418 = vunpack.c.l.b16 %v518
        %v1419 = vunpack.c.h.b16 %v518
        %v1420 = vunpack.c.l.b16 %v519
        %v1421 = vunpack.c.h.b16 %v519
        %v1422 = vunpack.c.l.b16 %v520
        %v1423 = vunpack.c.h.b16 %v520
        %v1424 = vunpack.c.l.b16 %v521
        %v1425 = vunpack.c.h.b16 %v521
        %v1426 = vunpack.c.l.b16 %v522
        %v1427 = vunpack.c.h.b16 %v522
        %v1428 = vunpack.c.l.b16 %v523
        %v1429 = vunpack.c.h.b16 %v523
        %v1430 = vunpack.c.l.b16 %v524
        %v1431 = vunpack.c.h.b16 %v524
        %v1432 = vunpack.c.l.b16 %v525
        %v1433 = vunpack.c.h.b16 %v525
        %v1434 = vunpack.c.l.b16 %v526
        %v1435 = vunpack.c.h.b16 %v526
        %v1436 = vunpack.c.l.b16 %v527
        %v1437 = vunpack.c.h.b16 %v527
        %v1438 = vunpack.c.l.b16 %v528
        %v1439 = vunpack.c.h.b16 %v528
        %v1440 = vunpack.c.l.b16 %v529
        %v1441 = vunpack.c.h.b16 %v529
        %v1442 = vunpack.c.l.b16 %v530
        %v1443 = vunpack.c.h.b16 %v530
        %v1444 = vunpack.c.l.b16 %v531
        %v1445 = vunpack.c.h.b16 %v531
        %v1446 = vunpack.c.l.b16 %v532
        %v1447 = vunpack.c.h.b16 %v532
        %v1448 = vunpack.c.l.b16 %v533
        %v1449 = vunpack.c.h.b16 %v533
        %v1450 = vunpack.c.l.b16 %v534
        %v1451 = vunpack.c.h.b16 %v534
        %v1452 = vunpack.c.l.b16 %v535
        %v1453 = vunpack.c.h.b16 %v535
        %v1454 = vunpack.c.l.b16 %v536
        %v1455 = vunpack.c.h.b16 %v536
        %v1456 = vunpack.c.l.b16 %v537
        %v1457 = vunpack.c.h.b16 %v537
        %v1458 = vunpack.c.l.b16 %v538
        %v1459 = vunpack.c.h.b16 %v538
        %v1460 = vunpack.c.l.b16 %v539
        %v1461 = vunpack.c.h.b16 %v539
        %v1462 = vunpack.c.l.b16 %v540
        %v1463 = vunpack.c.h.b16 %v540
        %v1464 = vunpack.c.l.b16 %v541
        %v1465 = vunpack.c.h.b16 %v541
        %v1466 = vunpack.c.l.b16 %v542
        %v1467 = vunpack.c.h.b16 %v542
        %v1468 = vunpack.c.l.b16 %v543
        %v1469 = vunpack.c.h.b16 %v543
        %v1470 = vunpack.c.l.b16 %v544
        %v1471 = vunpack.c.h.b16 %v544
        %v1472 = vunpack.c.l.b16 %v545
        %v1473 = vunpack.c.h.b16 %v545
        %v1474 = vunpack.c.l.b16 %v546
        %v1475 = vunpack.c.h.b16 %v546
        %v1476 = vunpack.c.l.b16 %v547
        %v1477 = vunpack.c.h.b16 %v547
        %v1478 = vunpack.c.l.b16 %v548
        %v1479 = vunpack.c.h.b16 %v548
        %v1480 = vunpack.c.l.b16 %v549
        %v1481 = vunpack.c.h.b16 %v549
        %v1482 = vunpack.c.l.b16 %v550
        %v1483 = vunpack.c.h.b16 %v550
        %v1484 = vunpack.c.l.b16 %v551
        %v1485 = vunpack.c.h.b16 %v551
        %v1486 = vunpack.c.l.b16 %v552
        %v1487 = vunpack.c.h.b16 %v552
        %v1488 = vunpack.c.l.b16 %v553
        %v1489 = vunpack.c.h.b16 %v553
        %v1490 = vunpack.c.l.b16 %v554
        %v1491 = vunpack.c.h.b16 %v554
        %v1492 = vunpack.c.l.b16 %v555
        %v1493 = vunpack.c.h.b16 %v555
        %v1494 = vunpack.c.l.b16 %v556
        %v1495 = vunpack.c.h.b16 %v556
        %v1496 = vunpack.c.l.b16 %v557
        %v1497 = vunpack.c.h.b16 %v557
        %v1498 = vunpack.c.l.b16 %v558
        %v1499 = vunpack.c.h.b16 %v558
        %v1500 = vunpack.c.l.b16 %v559
        %v1501 = vunpack.c.h.b16 %v559
        %v1502 = vunpack.c.l.b16 %v560
        %v1503 = vunpack.c.h.b16 %v560
        %v1504 = vunpack.c.l.b16 %v561
        %v1505 = vunpack.c.h.b16 %v561
        %v1506 = vunpack.c.l.b16 %v562
        %v1507 = vunpack.c.h.b16 %v562
        %v1508 = vunpack.c.l.b16 %v563
        %v1509 = vunpack.c.h.b16 %v563
        %v1510 = vunpack.c.l.b16 %v564
        %v1511 = vunpack.c.h.b16 %v564
        %v1512 = vunpack.c.l.b16 %v565
        %v1513 = vunpack.c.h.b16 %v565
        %v1514 = vunpack.c.l.b16 %v566
        %v1515 = vunpack.c.h.b16 %v566
        %v1516 = vunpack.c.l.b16 %v567
        %v1517 = vunpack.c.h.b16 %v567
        %v1518 = vunpack.c.l.b16 %v568
        %v1519 = vunpack.c.h.b16 %v568
        %v1520 = vunpack.c.l.b16 %v569
        %v1521 = vunpack.c.h.b16 %v569
        %v1522 = vunpack.c.l.b16 %v570
        %v1523 = vunpack.c.h.b16 %v570
        %v1524 = vunpack.c.l.b16 %v571
        %v1525 = vunpack.c.h.b16 %v571
        %v1526 = vunpack.c.l.b16 %v572
        %v1527 = vunpack.c.h.b16 %v572
        %v1528 = vunpack.c.l.b16 %v573
        %v1529 = vunpack.c.h.b16 %v573
        %v1530 = vunpack.c.l.b16 %v574
        %v1531 = vunpack.c.h.b16 %v574
        %v1532 = vunpack.c.l.b16 %v575
        %v1533 = vunpack.c.h.b16 %v575
        %v1534 = vunpack.c.l.b16 %v576
        %v1535 = vunpack.c.h.b16 %v576
        %v1536 = vunpack.c.l.b16 %v577
        %v1537 = vunpack.c.h.b16 %v577
        %v1538 = vunpack.c.l.b16 %v578
        %v1539 = vunpack.c.h.b16 %v578
        %v1540 = vunpack.c.l.b16 %v579
        %v1541 = vunpack.c.h.b16 %v579
        %v1542 = vunpack.c.l.b16 %v580
        %v1543 = vunpack.c.h.b16 %v580
        %v1544 = vunpack.c.l.b16 %v581
        %v1545 = vunpack.c.h.b16 %v581
        %v1546 = vunpack.c.l.b16 %v582
        %v1547 = vunpack.c.h.b16 %v582
        %v1548 = vunpack.c.l.b16 %v583
        %v1549 = vunpack.c.h.b16 %v583
        %v1550 = vunpack.c.l.b16 %v584
        %v1551 = vunpack.c.h.b16 %v584
        %v1552 = vunpack.c.l.b16 %v585
        %v1553 = vunpack.c.h.b16 %v585
        %v1554 = vunpack.c.l.b16 %v586
        %v1555 = vunpack.c.h.b16 %v586
        %v1556 = vunpack.c.l.b16 %v587
        %v1557 = vunpack.c.h.b16 %v587
        %v1558 = vunpack.c.l.b16 %v588
        %v1559 = vunpack.c.h.b16 %v588
        %v1560 = vunpack.c.l.b16 %v589
        %v1561 = vunpack.c.h.b16 %v589
        %v1562 = vunpack.c.l.b16 %v590
        %v1563 = vunpack.c.h.b16 %v590
        %v1564 = vunpack.c.l.b16 %v591
        %v1565 = vunpack.c.h.b16 %v591
        %v1566 = vunpack.c.l.b16 %v592
        %v1567 = vunpack.c.h.b16 %v592
        %v1568 = vunpack.c.l.b16 %v593
        %v1569 = vunpack.c.h.b16 %v593
        %v1570 = vunpack.c.l.b16 %v594
        %v1571 = vunpack.c.h.b16 %v594
        %v1572 = vunpack.c.l.b16 %v595
        %v1573 = vunpack.c.h.b16 %v595
        %v1574 = vunpack.c.l.b16 %v596
        %v1575 = vunpack.c.h.b16 %v596
        %v1576 = vunpack.c.l.b16 %v597
        %v1577 = vunpack.c.h.b16 %v597
        %v1578 = vunpack.c.l.b16 %v598
        %v1579 = vunpack.c.h.b16 %v598
        %v1580 = vunpack.c.l.b16 %v599
        %v1581 = vunpack.c.h.b16 %v599
        %v1582 = vunpack.c.l.b16 %v600
        %v1583 = vunpack.c.h.b16 %v600
        %v1584 = vunpack.c.l.b16 %v601
        %v1585 = vunpack.c.h.b16 %v601
        %v1586 = vunpack.c.l.b16 %v602
        %v1587 = vunpack.c.h.b16 %v602
        %v1588 = vunpack.c.l.b16 %v603
        %v1589 = vunpack.c.h.b16 %v603
        %v1590 = vunpack.c.l.b16 %v604
        %v1591 = vunpack.c.h.b16 %v604
        %v1592 = vunpack.c.l.b16 %v605
        %v1593 = vunpack.c.h.b16 %v605
        %v1594 = vunpack.c.l.b16 %v606
        %v1595 = vunpack.c.h.b16 %v606
        %v1596 = vunpack.c.l.b16 %v607
        %v1597 = vunpack.c.h.b16 %v607
        %v1598 = vunpack.c.l.b16 %v608
        %v1599 = vunpack.c.h.b16 %v608
        %v1600 = vunpack.c.l.b16 %v609
        %v1601 = vunpack.c.h.b16 %v609
        %v1602 = vunpack.c.l.b16 %v610
        %v1603 = vunpack.c.h.b16 %v610
        %v1604 = vunpack.c.l.b16 %v611
        %v1605 = vunpack.c.h.b16 %v611
        %v1606 = vunpack.c.l.b16 %v612
        %v1607 = vunpack.c.h.b16 %v612
        %v1608 = vunpack.c.l.b16 %v613
        %v1609 = vunpack.c.h.b16 %v613
        %v1610 = vunpack.c.l.b16 %v614
        %v1611 = vunpack.c.h.b16 %v614
        %v1612 = vunpack.c.l.b16 %v615
        %v1613 = vunpack.c.h.b16 %v615
        %v1614 = vunpack.c.l.b16 %v616
        %v1615 = vunpack.c.h.b16 %v616
        %v1616 = vunpack.c.l.b16 %v617
        %v1617 = vunpack.c.h.b16 %v617
        %v1618 = vunpack.c.l.b16 %v618
        %v1619 = vunpack.c.h.b16 %v618
        %v1620 = vunpack.c.l.b16 %v619
        %v1621 = vunpack.c.h.b16 %v619
        %v1622 = vunpack.c.l.b16 %v620
        %v1623 = vunpack.c.h.b16 %v620
        %v1624 = vunpack.c.l.b16 %v621
        %v1625 = vunpack.c.h.b16 %v621
        %v1626 = vunpack.c.l.b16 %v622
        %v1627 = vunpack.c.h.b16 %v622
        %v1628 = vunpack.c.l.b16 %v623
        %v1629 = vunpack.c.h.b16 %v623
        %v1630 = vunpack.c.l.b16 %v624
        %v1631 = vunpack.c.h.b16 %v624
        %v1632 = vunpack.c.l.b16 %v625
        %v1633 = vunpack.c.h.b16 %v625
        %v1634 = vunpack.c.l.b16 %v626
        %v1635 = vunpack.c.h.b16 %v626
        %v1636 = vunpack.c.l.b16 %v627
        %v1637 = vunpack.c.h.b16 %v627
        %v1638 = vunpack.c.l.b16 %v628
        %v1639 = vunpack.c.h.b16 %v628
        %v1640 = vunpack.c.l.b16 %v629
        %v1641 = vunpack.c.h.b16 %v629
        %v1642 = vunpack.c.l.b16 %v630
        %v1643 = vunpack.c.h.b16 %v630
        %v1644 = vunpack.c.l.b16 %v631
        %v1645 = vunpack.c.h.b16 %v631
        %v1646 = vunpack.c.l.b16 %v632
        %v1647 = vunpack.c.h.b16 %v632
        %v1648 = vunpack.c.l.b16 %v633
        %v1649 = vunpack.c.h.b16 %v633
        %v1650 = vunpack.c.l.b16 %v634
        %v1651 = vunpack.c.h.b16 %v634
        %v1652 = vunpack.c.l.b16 %v635
        %v1653 = vunpack.c.h.b16 %v635
        %v1654 = vunpack.c.l.b16 %v636
        %v1655 = vunpack.c.h.b16 %v636
        %v1656 = vunpack.c.l.b16 %v637
        %v1657 = vunpack.c.h.b16 %v637
        %v1658 = vunpack.c.l.b16 %v638
        %v1659 = vunpack.c.h.b16 %v638
        %v1660 = vunpack.c.l.b16 %v639
        %v1661 = vunpack.c.h.b16 %v639
        %v1662 = vunpack.c.l.b16 %v640
        %v1663 = vunpack.c.h.b16 %v640
        %v1664 = vunpack.c.l.b16 %v641
        %v1665 = vunpack.c.h.b16 %v641
        %v1666 = vunpack.c.l.b16 %v642
        %v1667 = vunpack.c.h.b16 %v642
        %v1668 = vunpack.c.l.b16 %v643
        %v1669 = vunpack.c.h.b16 %v643
        %v1670 = vunpack.c.l.b16 %v644
        %v1671 = vunpack.c.h.b16 %v644
        %v1672 = vunpack.c.l.b16 %v645
        %v1673 = vunpack.c.h.b16 %v645
        %v1674 = vunpack.c.l.b16 %v646
        %v1675 = vunpack.c.h.b16 %v646
        %v1676 = vunpack.c.l.b16 %v647
        %v1677 = vunpack.c.h.b16 %v647
        %v1678 = vunpack.c.l.b16 %v648
        %v1679 = vunpack.c.h.b16 %v648
        %v1680 = vunpack.c.l.b16 %v649
        %v1681 = vunpack.c.h.b16 %v649
        %v1682 = vunpack.c.l.b16 %v650
        %v1683 = vunpack.c.h.b16 %v650
        %v1684 = vunpack.c.l.b16 %v651
        %v1685 = vunpack.c.h.b16 %v651
        %v1686 = vunpack.c.l.b16 %v652
        %v1687 = vunpack.c.h.b16 %v652
        %v1688 = vunpack.c.l.b16 %v653
        %v1689 = vunpack.c.h.b16 %v653
        %v1690 = vunpack.c.l.b16 %v654
        %v1691 = vunpack.c.h.b16 %v654
        %v1692 = vunpack.c.l.b16 %v655
        %v1693 = vunpack.c.h.b16 %v655
        %v1694 = vunpack.c.l.b16 %v656
        %v1695 = vunpack.c.h.b16 %v656
        %v1696 = vunpack.c.l.b16 %v657
        %v1697 = vunpack.c.h.b16 %v657
        %v1698 = vunpack.c.l.b16 %v658
        %v1699 = vunpack.c.h.b16 %v658
        %v1700 = vunpack.c.l.b16 %v659
        %v1701 = vunpack.c.h.b16 %v659
        %v1702 = vunpack.c.l.b16 %v660
        %v1703 = vunpack.c.h.b16 %v660
        %v1704 = vunpack.c.l.b16 %v661
        %v1705 = vunpack.c.h.b16 %v661
        %v1706 = vunpack.c.l.b16 %v662
        %v1707 = vunpack.c.h.b16 %v662
        %v1708 = vunpack.c.l.b16 %v663
        %v1709 = vunpack.c.h.b16 %v663
        %v1710 = vunpack.c.l.b16 %v664
        %v1711 = vunpack.c.h.b16 %v664
        %v1712 = vunpack.c.l.b16 %v665
        %v1713 = vunpack.c.h.b16 %v665
        %v1714 = vunpack.c.l.b16 %v666
        %v1715 = vunpack.c.h.b16 %v666
        %v1716 = vunpack.c.l.b16 %v667
        %v1717 = vunpack.c.h.b16 %v667
        %v1718 = vunpack.c.l.b16 %v668
        %v1719 = vunpack.c.h.b16 %v668
        %v1720 = vunpack.c.l.b16 %v669
        %v1721 = vunpack.c.h.b16 %v669
        %v1722 = vunpack.c.l.b16 %v670
        %v1723 = vunpack.c.h.b16 %v670
        %v1724 = vunpack.c.l.b16 %v671
        %v1725 = vunpack.c.h.b16 %v671
        %v1726 = vunpack.c.l.b16 %v672
        %v1727 = vunpack.c.h.b16 %v672
        %v1728 = vunpack.c.l.b16 %v673
        %v1729 = vunpack.c.h.b16 %v673
        %v1730 = vunpack.c.l.b16 %v674
        %v1731 = vunpack.c.h.b16 %v674
        %v1732 = vunpack.c.l.b16 %v675
        %v1733 = vunpack.c.h.b16 %v675
        %v1734 = vunpack.c.l.b16 %v676
        %v1735 = vunpack.c.h.b16 %v676
        %v1736 = vunpack.c.l.b16 %v677
        %v1737 = vunpack.c.h.b16 %v677
        %v1738 = vunpack.c.l.b16 %v678
        %v1739 = vunpack.c.h.b16 %v678
        %v1740 = vunpack.c.l.b16 %v679
        %v1741 = vunpack.c.h.b16 %v679
        %v1742 = vunpack.c.l.b16 %v680
        %v1743 = vunpack.c.h.b16 %v680
        %v1744 = vunpack.c.l.b16 %v681
        %v1745 = vunpack.c.h.b16 %v681
        %v1746 = vunpack.c.l.b16 %v682
        %v1747 = vunpack.c.h.b16 %v682
        %v1748 = vunpack.c.l.b16 %v683
        %v1749 = vunpack.c.h.b16 %v683
        %v1750 = vunpack.c.l.b16 %v684
        %v1751 = vunpack.c.h.b16 %v684
        %v1752 = vunpack.c.l.b16 %v685
        %v1753 = vunpack.c.h.b16 %v685
        %v1754 = vunpack.c.l.b16 %v686
        %v1755 = vunpack.c.h.b16 %v686
        %v1756 = vunpack.c.l.b16 %v687
        %v1757 = vunpack.c.h.b16 %v687
        %v1758 = vunpack.c.l.b16 %v688
        %v1759 = vunpack.c.h.b16 %v688
        %v1760 = vunpack.c.l.b16 %v689
        %v1761 = vunpack.c.h.b16 %v689
        %v1762 = vunpack.c.l.b16 %v690
        %v1763 = vunpack.c.h.b16 %v690
        %v1764 = vunpack.c.l.b16 %v691
        %v1765 = vunpack.c.h.b16 %v691
        %v1766 = vunpack.c.l.b16 %v692
        %v1767 = vunpack.c.h.b16 %v692
        %v1768 = vunpack.c.l.b16 %v693
        %v1769 = vunpack.c.h.b16 %v693
        %v1770 = vunpack.c.l.b16 %v694
        %v1771 = vunpack.c.h.b16 %v694
        %v1772 = vunpack.c.l.b16 %v695
        %v1773 = vunpack.c.h.b16 %v695
        %v1774 = vunpack.c.l.b16 %v696
        %v1775 = vunpack.c.h.b16 %v696
        %v1776 = vunpack.c.l.b16 %v697
        %v1777 = vunpack.c.h.b16 %v697
        %v1778 = vunpack.c.l.b16 %v698
        %v1779 = vunpack.c.h.b16 %v698
        %v1780 = vunpack.c.l.b16 %v699
        %v1781 = vunpack.c.h.b16 %v699
        %v1782 = vunpack.c.l.b16 %v700
        %v1783 = vunpack.c.h.b16 %v700
        %v1784 = vunpack.c.l.b16 %v701
        %v1785 = vunpack.c.h.b16 %v701
        %v1786 = vunpack.c.l.b16 %v702
        %v1787 = vunpack.c.h.b16 %v702
        %v1788 = vunpack.c.l.b16 %v703
        %v1789 = vunpack.c.h.b16 %v703
        %v1790 = vunpack.c.l.b16 %v704
        %v1791 = vunpack.c.h.b16 %v704
        %v1792 = vunpack.c.l.b16 %v705
        %v1793 = vunpack.c.h.b16 %v705
        %v1794 = vunpack.c.l.b16 %v706
        %v1795 = vunpack.c.h.b16 %v706
        %v1796 = vunpack.c.l.b16 %v707
        %v1797 = vunpack.c.h.b16 %v707
        %v1798 = vunpack.c.l.b16 %v708
        %v1799 = vunpack.c.h.b16 %v708
        %v1800 = vunpack.c.l.b16 %v709
        %v1801 = vunpack.c.h.b16 %v709
        %v1802 = vunpack.c.l.b16 %v710
        %v1803 = vunpack.c.h.b16 %v710
        %v1804 = vunpack.c.l.b16 %v711
        %v1805 = vunpack.c.h.b16 %v711
        %v1806 = vunpack.c.l.b16 %v712
        %v1807 = vunpack.c.h.b16 %v712
        %v1808 = vunpack.c.l.b16 %v713
        %v1809 = vunpack.c.h.b16 %v713
        %v1810 = vunpack.c.l.b16 %v714
        %v1811 = vunpack.c.h.b16 %v714
        %v1812 = vunpack.c.l.b16 %v715
        %v1813 = vunpack.c.h.b16 %v715
        %v1814 = vunpack.c.l.b16 %v716
        %v1815 = vunpack.c.h.b16 %v716
        %v1816 = vunpack.c.l.b16 %v717
        %v1817 = vunpack.c.h.b16 %v717
        %v1818 = vunpack.c.l.b16 %v718
        %v1819 = vunpack.c.h.b16 %v718
        %v1820 = vunpack.c.l.b16 %v719
        %v1821 = vunpack.c.h.b16 %v719
        %v1822 = vunpack.c.l.b16 %v720
        %v1823 = vunpack.c.h.b16 %v720
        %v1824 = vunpack.c.l.b16 %v721
        %v1825 = vunpack.c.h.b16 %v721
        %v1826 = vunpack.c.l.b16 %v722
        %v1827 = vunpack.c.h.b16 %v722
        %v1828 = vunpack.c.l.b16 %v723
        %v1829 = vunpack.c.h.b16 %v723
        %v1830 = vunpack.c.l.b16 %v724
        %v1831 = vunpack.c.h.b16 %v724
        %v1832 = vunpack.c.l.b16 %v725
        %v1833 = vunpack.c.h.b16 %v725
        %v1834 = vunpack.c.l.b16 %v726
        %v1835 = vunpack.c.h.b16 %v726
        %v1836 = vunpack.c.l.b16 %v727
        %v1837 = vunpack.c.h.b16 %v727
        %v1838 = vunpack.c.l.b16 %v728
        %v1839 = vunpack.c.h.b16 %v728
        %v1840 = vunpack.c.l.b16 %v729
        %v1841 = vunpack.c.h.b16 %v729
        %v1842 = vunpack.c.l.b16 %v730
        %v1843 = vunpack.c.h.b16 %v730
        %v1844 = vunpack.c.l.b16 %v731
        %v1845 = vunpack.c.h.b16 %v731
        %v1846 = vunpack.c.l.b16 %v732
        %v1847 = vunpack.c.h.b16 %v732
        %v1848 = vunpack.c.l.b16 %v733
        %v1849 = vunpack.c.h.b16 %v733
        %v1850 = vunpack.c.l.b16 %v734
        %v1851 = vunpack.c.h.b16 %v734
        %v1852 = vunpack.c.l.b16 %v735
        %v1853 = vunpack.c.h.b16 %v735
        %v1854 = vunpack.c.l.b16 %v736
        %v1855 = vunpack.c.h.b16 %v736
        %v1856 = vunpack.c.l.b16 %v737
        %v1857 = vunpack.c.h.b16 %v737
        %v1858 = vunpack.c.l.b16 %v738
        %v1859 = vunpack.c.h.b16 %v738
        %v1860 = vunpack.c.l.b16 %v739
        %v1861 = vunpack.c.h.b16 %v739
        %v1862 = vunpack.c.l.b16 %v740
        %v1863 = vunpack.c.h.b16 %v740
        %v1864 = vunpack.c.l.b16 %v741
        %v1865 = vunpack.c.h.b16 %v741
        %v1866 = vunpack.c.l.b16 %v742
        %v1867 = vunpack.c.h.b16 %v742
        %v1868 = vunpack.c.l.b16 %v743
        %v1869 = vunpack.c.h.b16 %v743
        %v1870 = vunpack.c.l.b16 %v744
        %v1871 = vunpack.c.h.b16 %v744
        %v1872 = vunpack.c.l.b16 %v745
        %v1873 = vunpack.c.h.b16 %v745
        %v1874 = vunpack.c.l.b16 %v746
        %v1875 = vunpack.c.h.b16 %v746
        %v1876 = vunpack.c.l.b16 %v747
        %v1877 = vunpack.c.h.b16 %v747
        %v1878 = vunpack.c.l.b16 %v748
        %v1879 = vunpack.c.h.b16 %v748
        %v1880 = vunpack.c.l.b16 %v749
        %v1881 = vunpack.c.h.b16 %v749
        %v1882 = vunpack.c.l.b16 %v750
        %v1883 = vunpack.c.h.b16 %v750
        %v1884 = vunpack.c.l.b16 %v751
        %v1885 = vunpack.c.h.b16 %v751
        %v1886 = vunpack.c.l.b16 %v752
        %v1887 = vunpack.c.h.b16 %v752
        %v1888 = vunpack.c.l.b16 %v753
        %v1889 = vunpack.c.h.b16 %v753
        %v1890 = vunpack.c.l.b16 %v754
        %v1891 = vunpack.c.h.b16 %v754
        %v1892 = vunpack.c.l.b16 %v755
        %v1893 = vunpack.c.h.b16 %v755
        %v1894 = vunpack.c.l.b16 %v756
        %v1895 = vunpack.c.h.b16 %v756
        %v1896 = vunpack.c.l.b16 %v757
        %v1897 = vunpack.c.h.b16 %v757
        %v1898 = vunpack.c.l.b16 %v758
        %v1899 = vunpack.c.h.b16 %v758
        %v1900 = vunpack.c.l.b16 %v759
        %v1901 = vunpack.c.h.b16 %v759
        %v1902 = vunpack.c.l.b16 %v760
        %v1903 = vunpack.c.h.b16 %v760
        %v1904 = vunpack.c.l.b16 %v761
        %v1905 = vunpack.c.h.b16 %v761
        %v1906 = vunpack.c.l.b16 %v762
        %v1907 = vunpack.c.h.b16 %v762
        %v1908 = vunpack.c.l.b16 %v763
        %v1909 = vunpack.c.h.b16 %v763
        %v1910 = vunpack.c.l.b16 %v764
        %v1911 = vunpack.c.h.b16 %v764
        %v1912 = vunpack.c.l.b16 %v765
        %v1913 = vunpack.c.h.b16 %v765
        %v1914 = vunpack.c.l.b16 %v766
        %v1915 = vunpack.c.h.b16 %v766
        %v1916 = vunpack.c.l.b16 %v767
        %v1917 = vunpack.c.h.b16 %v767
        %v1918 = vunpack.c.l.b16 %v768
        %v1919 = vunpack.c.h.b16 %v768
        %v1920 = vunpack.c.l.b16 %v769
        %v1921 = vunpack.c.h.b16 %v769
        %v1922 = vunpack.c.l.b16 %v770
        %v1923 = vunpack.c.h.b16 %v770
        %v1924 = vunpack.c.l.b16 %v771
        %v1925 = vunpack.c.h.b16 %v771
        %v1926 = vunpack.c.l.b16 %v772
        %v1927 = vunpack.c.h.b16 %v772
        %v1928 = vunpack.c.l.b16 %v773
        %v1929 = vunpack.c.h.b16 %v773
        %v1930 = vunpack.c.l.b16 %v774
        %v1931 = vunpack.c.h.b16 %v774
        %v1932 = vunpack.c.l.b16 %v775
        %v1933 = vunpack.c.h.b16 %v775
        %v1934 = vunpack.c.l.b16 %v776
        %v1935 = vunpack.c.h.b16 %v776
        %v1936 = vunpack.c.l.b16 %v777
        %v1937 = vunpack.c.h.b16 %v777
        %v1938 = vunpack.c.l.b16 %v778
        %v1939 = vunpack.c.h.b16 %v778
        %v1940 = vunpack.c.l.b16 %v779
        %v1941 = vunpack.c.h.b16 %v779
        %v1942 = vunpack.c.l.b16 %v780
        %v1943 = vunpack.c.h.b16 %v780
        %v1944 = vunpack.c.l.b16 %v781
        %v1945 = vunpack.c.h.b16 %v781
        %v1946 = vunpack.c.l.b16 %v782
        %v1947 = vunpack.c.h.b16 %v782
        %v1948 = vunpack.c.l.b16 %v783
        %v1949 = vunpack.c.h.b16 %v783
        %v1950 = vpack.c.b16 %v1194, %v1182
        %v1951 = vpack.c.b16 %v1195, %v1183
        %v1952 = vpack.c.b16 %v1196, %v1184
        %v1953 = vpack.c.b16 %v1197, %v1185
        %v1954 = vpack.c.b16 %v1198, %v1186
        %v1955 = vpack.c.b16 %v1199, %v1187
        %v1956 = vpack.c.b16 %v1200, %v1188
        %v1957 = vpack.c.b16 %v1201, %v1189
        %v1958 = vpack.c.b16 %v1202, %v1190
        %v1959 = vpack.c.b16 %v1203, %v1191
        %v1960 = vpack.c.b16 %v1204, %v1192
        %v1961 = vpack.c.b16 %v1205, %v1193
        %v1962 = vpack.c.b16 %v1218, %v1206
        %v1963 = vpack.c.b16 %v1219, %v1207
        %v1964 = vpack.c.b16 %v1220, %v1208
        %v1965 = vpack.c.b16 %v1221, %v1209
        %v1966 = vpack.c.b16 %v1222, %v1210
        %v1967 = vpack.c.b16 %v1223, %v1211
        %v1968 = vpack.c.b16 %v1224, %v1212
        %v1969 = vpack.c.b16 %v1225, %v1213
        %v1970 = vpack.c.b16 %v1226, %v1214
        %v1971 = vpack.c.b16 %v1227, %v1215
        %v1972 = vpack.c.b16 %v1228, %v1216
        %v1973 = vpack.c.b16 %v1229, %v1217
        %v1974 = vpack.c.b16 %v1242, %v1230
        %v1975 = vpack.c.b16 %v1243, %v1231
        %v1976 = vpack.c.b16 %v1244, %v1232
        %v1977 = vpack.c.b16 %v1245, %v1233
        %v1978 = vpack.c.b16 %v1246, %v1234
        %v1979 = vpack.c.b16 %v1247, %v1235
        %v1980 = vpack.c.b16 %v1248, %v1236
        %v1981 = vpack.c.b16 %v1249, %v1237
        %v1982 = vpack.c.b16 %v1250, %v1238
        %v1983 = vpack.c.b16 %v1251, %v1239
        %v1984 = vpack.c.b16 %v1252, %v1240
        %v1985 = vpack.c.b16 %v1253, %v1241
        %v1986 = vpack.c.b16 %v1266, %v1254
        %v1987 = vpack.c.b16 %v1267, %v1255
        %v1988 = vpack.c.b16 %v1268, %v1256
        %v1989 = vpack.c.b16 %v1269, %v1257
        %v1990 = vpack.c.b16 %v1270, %v1258
        %v1991 = vpack.c.b16 %v1271, %v1259
        %v1992 = vpack.c.b16 %v1272, %v1260
        %v1993 = vpack.c.b16 %v1273, %v1261
        %v1994 = vpack.c.b16 %v1274, %v1262
        %v1995 = vpack.c.b16 %v1275, %v1263
        %v1996 = vpack.c.b16 %v1276, %v1264
        %v1997 = vpack.c.b16 %v1277, %v1265
        %v1998 = vpack.c.b16 %v1290, %v1278
        %v1999 = vpack.c.b16 %v1291, %v1279
        %v2000 = vpack.c.b16 %v1292, %v1280
        %v2001 = vpack.c.b16 %v1293, %v1281
        %v2002 = vpack.c.b16 %v1294, %v1282
        %v2003 = vpack.c.b16 %v1295, %v1283
        %v2004 = vpack.c.b16 %v1296, %v1284
        %v2005 = vpack.c.b16 %v1297, %v1285
        %v2006 = vpack.c.b16 %v1298, %v1286
        %v2007 = vpack.c.b16 %v1299, %v1287
        %v2008 = vpack.c.b16 %v1300, %v1288
        %v2009 = vpack.c.b16 %v1301, %v1289
        %v2010 = vpack.c.b16 %v1314, %v1302
        %v2011 = vpack.c.b16 %v1315, %v1303
        %v2012 = vpack.c.b16 %v1316, %v1304
        %v2013 = vpack.c.b16 %v1317, %v1305
        %v2014 = vpack.c.b16 %v1318, %v1306
        %v2015 = vpack.c.b16 %v1319, %v1307
        %v2016 = vpack.c.b16 %v1320, %v1308
        %v2017 = vpack.c.b16 %v1321, %v1309
        %v2018 = vpack.c.b16 %v1322, %v1310
        %v2019 = vpack.c.b16 %v1323, %v1311
        %v2020 = vpack.c.b16 %v1324, %v1312
        %v2021 = vpack.c.b16 %v1325, %v1313
        %v2022 = vpack.c.b16 %v1338, %v1326
        %v2023 = vpack.c.b16 %v1339, %v1327
        %v2024 = vpack.c.b16 %v1340, %v1328
        %v2025 = vpack.c.b16 %v1341, %v1329
        %v2026 = vpack.c.b16 %v1342, %v1330
        %v2027 = vpack.c.b16 %v1343, %v1331
        %v2028 = vpack.c.b16 %v1344, %v1332
        %v2029 = vpack.c.b16 %v1345, %v1333
        %v2030 = vpack.c.b16 %v1346, %v1334
        %v2031 = vpack.c.b16 %v1347, %v1335
        %v2032 = vpack.c.b16 %v1348, %v1336
        %v2033 = vpack.c.b16 %v1349, %v1337
        %v2034 = vpack.c.b16 %v1362, %v1350
        %v2035 = vpack.c.b16 %v1363, %v1351
        %v2036 = vpack.c.b16 %v1364, %v1352
        %v2037 = vpack.c.b16 %v1365, %v1353
        %v2038 = vpack.c.b16 %v1366, %v1354
        %v2039 = vpack.c.b16 %v1367, %v1355
        %v2040 = vpack.c.b16 %v1368, %v1356
        %v2041 = vpack.c.b16 %v1369, %v1357
        %v2042 = vpack.c.b16 %v1370, %v1358
        %v2043 = vpack.c.b16 %v1371, %v1359
        %v2044 = vpack.c.b16 %v1372, %v1360
        %v2045 = vpack.c.b16 %v1373, %v1361
        %v2046 = vpack.c.b16 %v1386, %v1374
        %v2047 = vpack.c.b16 %v1387, %v1375
        %v2048 = vpack.c.b16 %v1388, %v1376
        %v2049 = vpack.c.b16 %v1389, %v1377
        %v2050 = vpack.c.b16 %v1390, %v1378
        %v2051 = vpack.c.b16 %v1391, %v1379
        %v2052 = vpack.c.b16 %v1392, %v1380
        %v2053 = vpack.c.b16 %v1393, %v1381
        %v2054 = vpack.c.b16 %v1394, %v1382
        %v2055 = vpack.c.b16 %v1395, %v1383
        %v2056 = vpack.c.b16 %v1396, %v1384
        %v2057 = vpack.c.b16 %v1397, %v1385
        %v2058 = vpack.c.b16 %v1410, %v1398
        %v2059 = vpack.c.b16 %v1411, %v1399
        %v2060 = vpack.c.b16 %v1412, %v1400
        %v2061 = vpack.c.b16 %v1413, %v1401
        %v2062 = vpack.c.b16 %v1414, %v1402
        %v2063 = vpack.c.b16 %v1415, %v1403
        %v2064 = vpack.c.b16 %v1416, %v1404
        %v2065 = vpack.c.b16 %v1417, %v1405
        %v2066 = vpack.c.b16 %v1418, %v1406
        %v2067 = vpack.c.b16 %v1419, %v1407
        %v2068 = vpack.c.b16 %v1420, %v1408
        %v2069 = vpack.c.b16 %v1421, %v1409
        %v2070 = vpack.c.b16 %v1434, %v1422
        %v2071 = vpack.c.b16 %v1435, %v1423
        %v2072 = vpack.c.b16 %v1436, %v1424
        %v2073 = vpack.c.b16 %v1437, %v1425
        %v2074 = vpack.c.b16 %v1438, %v1426
        %v2075 = vpack.c.b16 %v1439, %v1427
        %v2076 = vpack.c.b16 %v1440, %v1428
        %v2077 = vpack.c.b16 %v1441, %v1429
        %v2078 = vpack.c.b16 %v1442, %v1430
        %v2079 = vpack.c.b16 %v1443, %v1431
        %v2080 = vpack.c.b16 %v1444, %v1432
        %v2081 = vpack.c.b16 %v1445, %v1433
        %v2082 = vpack.c.b16 %v1458, %v1446
        %v2083 = vpack.c.b16 %v1459, %v1447
        %v2084 = vpack.c.b16 %v1460, %v1448
        %v2085 = vpack.c.b16 %v1461, %v1449
        %v2086 = vpack.c.b16 %v1462, %v1450
        %v2087 = vpack.c.b16 %v1463, %v1451
        %v2088 = vpack.c.b16 %v1464, %v1452
        %v2089 = vpack.c.b16 %v1465, %v1453
        %v2090 = vpack.c.b16 %v1466, %v1454
        %v2091 = vpack.c.b16 %v1467, %v1455
        %v2092 = vpack.c.b16 %v1468, %v1456
        %v2093 = vpack.c.b16 %v1469, %v1457
        %v2094 = vpack.c.b16 %v1482, %v1470
        %v2095 = vpack.c.b16 %v1483, %v1471
        %v2096 = vpack.c.b16 %v1484, %v1472
        %v2097 = vpack.c.b16 %v1485, %v1473
        %v2098 = vpack.c.b16 %v1486, %v1474
        %v2099 = vpack.c.b16 %v1487, %v1475
        %v2100 = vpack.c.b16 %v1488, %v1476
        %v2101 = vpack.c.b16 %v1489, %v1477
        %v2102 = vpack.c.b16 %v1490, %v1478
        %v2103 = vpack.c.b16 %v1491, %v1479
        %v2104 = vpack.c.b16 %v1492, %v1480
        %v2105 = vpack.c.b16 %v1493, %v1481
        %v2106 = vpack.c.b16 %v1506, %v1494
        %v2107 = vpack.c.b16 %v1507, %v1495
        %v2108 = vpack.c.b16 %v1508, %v1496
        %v2109 = vpack.c.b16 %v1509, %v1497
        %v2110 = vpack.c.b16 %v1510, %v1498
        %v2111 = vpack.c.b16 %v1511, %v1499
        %v2112 = vpack.c.b16 %v1512, %v1500
        %v2113 = vpack.c.b16 %v1513, %v1501
        %v2114 = vpack.c.b16 %v1514, %v1502
        %v2115 = vpack.c.b16 %v1515, %v1503
        %v2116 = vpack.c.b16 %v1516, %v1504
        %v2117 = vpack.c.b16 %v1517, %v1505
        %v2118 = vpack.c.b16 %v1530, %v1518
        %v2119 = vpack.c.b16 %v1531, %v1519
        %v2120 = vpack.c.b16 %v1532, %v1520
        %v2121 = vpack.c.b16 %v1533, %v1521
        %v2122 = vpack.c.b16 %v1534, %v1522
        %v2123 = vpack.c.b16 %v1535, %v1523
        %v2124 = vpack.c.b16 %v1536, %v1524
        %v2125 = vpack.c.b16 %v1537, %v1525
        %v2126 = vpack.c.b16 %v1538, %v1526
        %v2127 = vpack.c.b16 %v1539, %v1527
        %v2128 = vpack.c.b16 %v1540, %v1528
        %v2129 = vpack.c.b16 %v1541, %v1529
        %v2130 = vpack.c.b16 %v1554, %v1542
        %v2131 = vpack.c.b16 %v1555, %v1543
        %v2132 = vpack.c.b16 %v1556, %v1544
        %v2133 = vpack.c.b16 %v1557, %v1545
        %v2134 = vpack.c.b16 %v1558, %v1546
        %v2135 = vpack.c.b16 %v1559, %v1547
        %v2136 = vpack.c.b16 %v1560, %v1548
        %v2137 = vpack.c.b16 %v1561, %v1549
        %v2138 = vpack.c.b16 %v1562, %v1550
        %v2139 = vpack.c.b16 %v1563, %v1551
        %v2140 = vpack.c.b16 %v1564, %v1552
        %v2141 = vpack.c.b16 %v1565, %v1553
        %v2142 = vpack.c.b16 %v1578, %v1566
        %v2143 = vpack.c.b16 %v1579, %v1567
        %v2144 = vpack.c.b16 %v1580, %v1568
        %v2145 = vpack.c.b16 %v1581, %v1569
        %v2146 = vpack.c.b16 %v1582, %v1570
        %v2147 = vpack.c.b16 %v1583, %v1571
        %v2148 = vpack.c.b16 %v1584, %v1572
        %v2149 = vpack.c.b16 %v1585, %v1573
        %v2150 = vpack.c.b16 %v1586, %v1574
        %v2151 = vpack.c.b16 %v1587, %v1575
        %v2152 = vpack.c.b16 %v1588, %v1576
        %v2153 = vpack.c.b16 %v1589, %v1577
        %v2154 = vpack.c.b16 %v1602, %v1590
        %v2155 = vpack.c.b16 %v1603, %v1591
        %v2156 = vpack.c.b16 %v1604, %v1592
        %v2157 = vpack.c.b16 %v1605, %v1593
        %v2158 = vpack.c.b16 %v1606, %v1594
        %v2159 = vpack.c.b16 %v1607, %v1595
        %v2160 = vpack.c.b16 %v1608, %v1596
        %v2161 = vpack.c.b16 %v1609, %v1597
        %v2162 = vpack.c.b16 %v1610, %v1598
        %v2163 = vpack.c.b16 %v1611, %v1599
        %v2164 = vpack.c.b16 %v1612, %v1600
        %v2165 = vpack.c.b16 %v1613, %v1601
        %v2166 = vpack.c.b16 %v1626, %v1614
        %v2167 = vpack.c.b16 %v1627, %v1615
        %v2168 = vpack.c.b16 %v1628, %v1616
        %v2169 = vpack.c.b16 %v1629, %v1617
        %v2170 = vpack.c.b16 %v1630, %v1618
        %v2171 = vpack.c.b16 %v1631, %v1619
        %v2172 = vpack.c.b16 %v1632, %v1620
        %v2173 = vpack.c.b16 %v1633, %v1621
        %v2174 = vpack.c.b16 %v1634, %v1622
        %v2175 = vpack.c.b16 %v1635, %v1623
        %v2176 = vpack.c.b16 %v1636, %v1624
        %v2177 = vpack.c.b16 %v1637, %v1625
        %v2178 = vpack.c.b16 %v1650, %v1638
        %v2179 = vpack.c.b16 %v1651, %v1639
        %v2180 = vpack.c.b16 %v1652, %v1640
        %v2181 = vpack.c.b16 %v1653, %v1641
        %v2182 = vpack.c.b16 %v1654, %v1642
        %v2183 = vpack.c.b16 %v1655, %v1643
        %v2184 = vpack.c.b16 %v1656, %v1644
        %v2185 = vpack.c.b16 %v1657, %v1645
        %v2186 = vpack.c.b16 %v1658, %v1646
        %v2187 = vpack.c.b16 %v1659, %v1647
        %v2188 = vpack.c.b16 %v1660, %v1648
        %v2189 = vpack.c.b16 %v1661, %v1649
        %v2190 = vpack.c.b16 %v1674, %v1662
        %v2191 = vpack.c.b16 %v1675, %v1663
        %v2192 = vpack.c.b16 %v1676, %v1664
        %v2193 = vpack.c.b16 %v1677, %v1665
        %v2194 = vpack.c.b16 %v1678, %v1666
        %v2195 = vpack.c.b16 %v1679, %v1667
        %v2196 = vpack.c.b16 %v1680, %v1668
        %v2197 = vpack.c.b16 %v1681, %v1669
        %v2198 = vpack.c.b16 %v1682, %v1670
        %v2199 = vpack.c.b16 %v1683, %v1671
        %v2200 = vpack.c.b16 %v1684, %v1672
        %v2201 = vpack.c.b16 %v1685, %v1673
        %v2202 = vpack.c.b16 %v1698, %v1686
        %v2203 = vpack.c.b16 %v1699, %v1687
        %v2204 = vpack.c.b16 %v1700, %v1688
        %v2205 = vpack.c.b16 %v1701, %v1689
        %v2206 = vpack.c.b16 %v1702, %v1690
        %v2207 = vpack.c.b16 %v1703, %v1691
        %v2208 = vpack.c.b16 %v1704, %v1692
        %v2209 = vpack.c.b16 %v1705, %v1693
        %v2210 = vpack.c.b16 %v1706, %v1694
        %v2211 = vpack.c.b16 %v1707, %v1695
        %v2212 = vpack.c.b16 %v1708, %v1696
        %v2213 = vpack.c.b16 %v1709, %v1697
        %v2214 = vpack.c.b16 %v1722, %v1710
        %v2215 = vpack.c.b16 %v1723, %v1711
        %v2216 = vpack.c.b16 %v1724, %v1712
        %v2217 = vpack.c.b16 %v1725, %v1713
        %v2218 = vpack.c.b16 %v1726, %v1714
        %v2219 = vpack.c.b16 %v1727, %v1715
        %v2220 = vpack.c.b16 %v1728, %v1716
        %v2221 = vpack.c.b16 %v1729, %v1717
        %v2222 = vpack.c.b16 %v1730, %v1718
        %v2223 = vpack.c.b16 %v1731, %v1719
        %v2224 = vpack.c.b16 %v1732, %v1720
        %v2225 = vpack.c.b16 %v1733, %v1721
        %v2226 = vpack.c.b16 %v1746, %v1734
        %v2227 = vpack.c.b16 %v1747, %v1735
        %v2228 = vpack.c.b16 %v1748, %v1736
        %v2229 = vpack.c.b16 %v1749, %v1737
        %v2230 = vpack.c.b16 %v1750, %v1738
        %v2231 = vpack.c.b16 %v1751, %v1739
        %v2232 = vpack.c.b16 %v1752, %v1740
        %v2233 = vpack.c.b16 %v1753, %v1741
        %v2234 = vpack.c.b16 %v1754, %v1742
        %v2235 = vpack.c.b16 %v1755, %v1743
        %v2236 = vpack.c.b16 %v1756, %v1744
        %v2237 = vpack.c.b16 %v1757, %v1745
        %v2238 = vpack.c.b16 %v1770, %v1758
        %v2239 = vpack.c.b16 %v1771, %v1759
        %v2240 = vpack.c.b16 %v1772, %v1760
        %v2241 = vpack.c.b16 %v1773, %v1761
        %v2242 = vpack.c.b16 %v1774, %v1762
        %v2243 = vpack.c.b16 %v1775, %v1763
        %v2244 = vpack.c.b16 %v1776, %v1764
        %v2245 = vpack.c.b16 %v1777, %v1765
        %v2246 = vpack.c.b16 %v1778, %v1766
        %v2247 = vpack.c.b16 %v1779, %v1767
        %v2248 = vpack.c.b16 %v1780, %v1768
        %v2249 = vpack.c.b16 %v1781, %v1769
        %v2250 = vpack.c.b16 %v1794, %v1782
        %v2251 = vpack.c.b16 %v1795, %v1783
        %v2252 = vpack.c.b16 %v1796, %v1784
        %v2253 = vpack.c.b16 %v1797, %v1785
        %v2254 = vpack.c.b16 %v1798, %v1786
        %v2255 = vpack.c.b16 %v1799, %v1787
        %v2256 = vpack.c.b16 %v1800, %v1788
        %v2257 = vpack.c.b16 %v1801, %v1789
        %v2258 = vpack.c.b16 %v1802, %v1790
        %v2259 = vpack.c.b16 %v1803, %v1791
        %v2260 = vpack.c.b16 %v1804, %v1792
        %v2261 = vpack.c.b16 %v1805, %v1793
        %v2262 = vpack.c.b16 %v1818, %v1806
        %v2263 = vpack.c.b16 %v1819, %v1807
        %v2264 = vpack.c.b16 %v1820, %v1808
        %v2265 = vpack.c.b16 %v1821, %v1809
        %v2266 = vpack.c.b16 %v1822, %v1810
        %v2267 = vpack.c.b16 %v1823, %v1811
        %v2268 = vpack.c.b16 %v1824, %v1812
        %v2269 = vpack.c.b16 %v1825, %v1813
        %v2270 = vpack.c.b16 %v1826, %v1814
        %v2271 = vpack.c.b16 %v1827, %v1815
        %v2272 = vpack.c.b16 %v1828, %v1816
        %v2273 = vpack.c.b16 %v1829, %v1817
        %v2274 = vpack.c.b16 %v1842, %v1830
        %v2275 = vpack.c.b16 %v1843, %v1831
        %v2276 = vpack.c.b16 %v1844, %v1832
        %v2277 = vpack.c.b16 %v1845, %v1833
        %v2278 = vpack.c.b16 %v1846, %v1834
        %v2279 = vpack.c.b16 %v1847, %v1835
        %v2280 = vpack.c.b16 %v1848, %v1836
        %v2281 = vpack.c.b16 %v1849, %v1837
        %v2282 = vpack.c.b16 %v1850, %v1838
        %v2283 = vpack.c.b16 %v1851, %v1839
        %v2284 = vpack.c.b16 %v1852, %v1840
        %v2285 = vpack.c.b16 %v1853, %v1841
        %v2286 = vpack.c.b16 %v1866, %v1854
        %v2287 = vpack.c.b16 %v1867, %v1855
        %v2288 = vpack.c.b16 %v1868, %v1856
        %v2289 = vpack.c.b16 %v1869, %v1857
        %v2290 = vpack.c.b16 %v1870, %v1858
        %v2291 = vpack.c.b16 %v1871, %v1859
        %v2292 = vpack.c.b16 %v1872, %v1860
        %v2293 = vpack.c.b16 %v1873, %v1861
        %v2294 = vpack.c.b16 %v1874, %v1862
        %v2295 = vpack.c.b16 %v1875, %v1863
        %v2296 = vpack.c.b16 %v1876, %v1864
        %v2297 = vpack.c.b16 %v1877, %v1865
        %v2298 = vpack.c.b16 %v1890, %v1878
        %v2299 = vpack.c.b16 %v1891, %v1879
        %v2300 = vpack.c.b16 %v1892, %v1880
        %v2301 = vpack.c.b16 %v1893, %v1881
        %v2302 = vpack.c.b16 %v1894, %v1882
        %v2303 = vpack.c.b16 %v1895, %v1883
        %v2304 = vpack.c.b16 %v1896, %v1884
        %v2305 = vpack.c.b16 %v1897, %v1885
        %v2306 = vpack.c.b16 %v1898, %v1886
        %v2307 = vpack.c.b16 %v1899, %v1887
        %v2308 = vpack.c.b16 %v1900, %v1888
        %v2309 = vpack.c.b16 %v1901, %v1889
        %v2310 = vpack.c.b16 %v1914, %v1902
        %v2311 = vpack.c.b16 %v1915, %v1903
        %v2312 = vpack.c.b16 %v1916, %v1904
        %v2313 = vpack.c.b16 %v1917, %v1905
        %v2314 = vpack.c.b16 %v1918, %v1906
        %v2315 = vpack.c.b16 %v1919, %v1907
        %v2316 = vpack.c.b16 %v1920, %v1908
        %v2317 = vpack.c.b16 %v1921, %v1909
        %v2318 = vpack.c.b16 %v1922, %v1910
        %v2319 = vpack.c.b16 %v1923, %v1911
        %v2320 = vpack.c.b16 %v1924, %v1912
        %v2321 = vpack.c.b16 %v1925, %v1913
        %v2322 = vpack.c.b16 %v1938, %v1926
        %v2323 = vpack.c.b16 %v1939, %v1927
        %v2324 = vpack.c.b16 %v1940, %v1928
        %v2325 = vpack.c.b16 %v1941, %v1929
        %v2326 = vpack.c.b16 %v1942, %v1930
        %v2327 = vpack.c.b16 %v1943, %v1931
        %v2328 = vpack.c.b16 %v1944, %v1932
        %v2329 = vpack.c.b16 %v1945, %v1933
        %v2330 = vpack.c.b16 %v1946, %v1934
        %v2331 = vpack.c.b16 %v1947, %v1935
        %v2332 = vpack.c.b16 %v1948, %v1936
        %v2333 = vpack.c.b16 %v1949, %v1937
        %2718 = vmatpush.bf16.msra.mxu0 %v2034
        %2719 = vmatpush.bf16.msra.mxu0 %v2022
        %2720 = vmatpush.bf16.msra.mxu0 %v2010
        %2721 = vmatpush.bf16.msra.mxu0 %v1998
        %2722 = vmatpush.bf16.msra.mxu0 %v1986
        %2723 = vmatpush.bf16.msra.mxu0 %v1974
        %2724 = vmatpush.bf16.msra.mxu0 %v1962
        %2725 = vmatpush.bf16.msra.mxu0 %v1950
        %2726 = vmatmul.bf16.gmra.mxu0 %v790
        %v2727 = vpop.f32.mrf.mxu0
        %v2728 = vadd.f32 0.0, %v2727
        %v2729 = vpop.f32.mrf.mxu0
        %2730 = vdwg.mxu0
        %2731 = vmatpush.bf16.msra.mxu0 %v2130
        %2732 = vmatpush.bf16.msra.mxu0 %v2118
        %2733 = vmatpush.bf16.msra.mxu0 %v2106
        %2734 = vmatpush.bf16.msra.mxu0 %v2094
        %2735 = vmatpush.bf16.msra.mxu0 %v2082
        %2736 = vmatpush.bf16.msra.mxu0 %v2070
        %2737 = vmatpush.bf16.msra.mxu0 %v2058
        %2738 = vmatpush.bf16.msra.mxu0 %v2046
        %2739 = vmatmul.bf16.gmra.mxu0 %v791
        %v2740 = vpop.f32.mrf.mxu0
        %v2741 = vadd.f32 %v2728, %v2740
        %v2742 = vpop.f32.mrf.mxu0
        %2743 = vdwg.mxu0
        %2744 = vmatpush.bf16.msra.mxu0 %v2226
        %2745 = vmatpush.bf16.msra.mxu0 %v2214
        %2746 = vmatpush.bf16.msra.mxu0 %v2202
        %2747 = vmatpush.bf16.msra.mxu0 %v2190
        %2748 = vmatpush.bf16.msra.mxu0 %v2178
        %2749 = vmatpush.bf16.msra.mxu0 %v2166
        %2750 = vmatpush.bf16.msra.mxu0 %v2154
        %2751 = vmatpush.bf16.msra.mxu0 %v2142
        %2752 = vmatmul.bf16.gmra.mxu0 %v792
        %v2753 = vpop.f32.mrf.mxu0
        %v2754 = vadd.f32 %v2741, %v2753
        %v2755 = vpop.f32.mrf.mxu0
        %2756 = vdwg.mxu0
        %2757 = vmatpush.bf16.msra.mxu0 %v2322
        %2758 = vmatpush.bf16.msra.mxu0 %v2310
        %2759 = vmatpush.bf16.msra.mxu0 %v2298
        %2760 = vmatpush.bf16.msra.mxu0 %v2286
        %2761 = vmatpush.bf16.msra.mxu0 %v2274
        %2762 = vmatpush.bf16.msra.mxu0 %v2262
        %2763 = vmatpush.bf16.msra.mxu0 %v2250
        %2764 = vmatpush.bf16.msra.mxu0 %v2238
        %2765 = vmatmul.bf16.gmra.mxu0 %v793
        %v2766 = vpop.f32.mrf.mxu0
        %v2767 = vadd.f32 %v2754, %v2766
        %v2768 = vpop.f32.mrf.mxu0
        %2769 = vdwg.mxu0
        %2770 = vmatpush.bf16.msra.mxu0 %v2035
        %2771 = vmatpush.bf16.msra.mxu0 %v2023
        %2772 = vmatpush.bf16.msra.mxu0 %v2011
        %2773 = vmatpush.bf16.msra.mxu0 %v1999
        %2774 = vmatpush.bf16.msra.mxu0 %v1987
        %2775 = vmatpush.bf16.msra.mxu0 %v1975
        %2776 = vmatpush.bf16.msra.mxu0 %v1963
        %2777 = vmatpush.bf16.msra.mxu0 %v1951
        %2778 = vmatmul.bf16.gmra.mxu0 %v790
        %v2779 = vpop.f32.mrf.mxu0
        %v2780 = vadd.f32 0.0, %v2779
        %v2781 = vpop.f32.mrf.mxu0
        %2782 = vdwg.mxu0
        %2783 = vmatpush.bf16.msra.mxu0 %v2131
        %2784 = vmatpush.bf16.msra.mxu0 %v2119
        %2785 = vmatpush.bf16.msra.mxu0 %v2107
        %2786 = vmatpush.bf16.msra.mxu0 %v2095
        %2787 = vmatpush.bf16.msra.mxu0 %v2083
        %2788 = vmatpush.bf16.msra.mxu0 %v2071
        %2789 = vmatpush.bf16.msra.mxu0 %v2059
        %2790 = vmatpush.bf16.msra.mxu0 %v2047
        %2791 = vmatmul.bf16.gmra.mxu0 %v791
        %v2792 = vpop.f32.mrf.mxu0
        %v2793 = vadd.f32 %v2780, %v2792
        %v2794 = vpop.f32.mrf.mxu0
        %2795 = vdwg.mxu0
        %2796 = vmatpush.bf16.msra.mxu0 %v2227
        %2797 = vmatpush.bf16.msra.mxu0 %v2215
        %2798 = vmatpush.bf16.msra.mxu0 %v2203
        %2799 = vmatpush.bf16.msra.mxu0 %v2191
        %2800 = vmatpush.bf16.msra.mxu0 %v2179
        %2801 = vmatpush.bf16.msra.mxu0 %v2167
        %2802 = vmatpush.bf16.msra.mxu0 %v2155
        %2803 = vmatpush.bf16.msra.mxu0 %v2143
        %2804 = vmatmul.bf16.gmra.mxu0 %v792
        %v2805 = vpop.f32.mrf.mxu0
        %v2806 = vadd.f32 %v2793, %v2805
        %v2807 = vpop.f32.mrf.mxu0
        %2808 = vdwg.mxu0
        %2809 = vmatpush.bf16.msra.mxu0 %v2323
        %2810 = vmatpush.bf16.msra.mxu0 %v2311
        %2811 = vmatpush.bf16.msra.mxu0 %v2299
        %2812 = vmatpush.bf16.msra.mxu0 %v2287
        %2813 = vmatpush.bf16.msra.mxu0 %v2275
        %2814 = vmatpush.bf16.msra.mxu0 %v2263
        %2815 = vmatpush.bf16.msra.mxu0 %v2251
        %2816 = vmatpush.bf16.msra.mxu0 %v2239
        %2817 = vmatmul.bf16.gmra.mxu0 %v793
        %v2818 = vpop.f32.mrf.mxu0
        %v2819 = vadd.f32 %v2806, %v2818
        %v2820 = vpop.f32.mrf.mxu0
        %2821 = vdwg.mxu0
        %2822 = vmatpush.bf16.msra.mxu0 %v2036
        %2823 = vmatpush.bf16.msra.mxu0 %v2024
        %2824 = vmatpush.bf16.msra.mxu0 %v2012
        %2825 = vmatpush.bf16.msra.mxu0 %v2000
        %2826 = vmatpush.bf16.msra.mxu0 %v1988
        %2827 = vmatpush.bf16.msra.mxu0 %v1976
        %2828 = vmatpush.bf16.msra.mxu0 %v1964
        %2829 = vmatpush.bf16.msra.mxu0 %v1952
        %2830 = vmatmul.bf16.gmra.mxu0 %v790
        %v2831 = vpop.f32.mrf.mxu0
        %v2832 = vadd.f32 0.0, %v2831
        %v2833 = vpop.f32.mrf.mxu0
        %2834 = vdwg.mxu0
        %2835 = vmatpush.bf16.msra.mxu0 %v2132
        %2836 = vmatpush.bf16.msra.mxu0 %v2120
        %2837 = vmatpush.bf16.msra.mxu0 %v2108
        %2838 = vmatpush.bf16.msra.mxu0 %v2096
        %2839 = vmatpush.bf16.msra.mxu0 %v2084
        %2840 = vmatpush.bf16.msra.mxu0 %v2072
        %2841 = vmatpush.bf16.msra.mxu0 %v2060
        %2842 = vmatpush.bf16.msra.mxu0 %v2048
        %2843 = vmatmul.bf16.gmra.mxu0 %v791
        %v2844 = vpop.f32.mrf.mxu0
        %v2845 = vadd.f32 %v2832, %v2844
        %v2846 = vpop.f32.mrf.mxu0
        %2847 = vdwg.mxu0
        %2848 = vmatpush.bf16.msra.mxu0 %v2228
        %2849 = vmatpush.bf16.msra.mxu0 %v2216
        %2850 = vmatpush.bf16.msra.mxu0 %v2204
        %2851 = vmatpush.bf16.msra.mxu0 %v2192
        %2852 = vmatpush.bf16.msra.mxu0 %v2180
        %2853 = vmatpush.bf16.msra.mxu0 %v2168
        %2854 = vmatpush.bf16.msra.mxu0 %v2156
        %2855 = vmatpush.bf16.msra.mxu0 %v2144
        %2856 = vmatmul.bf16.gmra.mxu0 %v792
        %v2857 = vpop.f32.mrf.mxu0
        %v2858 = vadd.f32 %v2845, %v2857
        %v2859 = vpop.f32.mrf.mxu0
        %2860 = vdwg.mxu0
        %2861 = vmatpush.bf16.msra.mxu0 %v2324
        %2862 = vmatpush.bf16.msra.mxu0 %v2312
        %2863 = vmatpush.bf16.msra.mxu0 %v2300
        %2864 = vmatpush.bf16.msra.mxu0 %v2288
        %2865 = vmatpush.bf16.msra.mxu0 %v2276
        %2866 = vmatpush.bf16.msra.mxu0 %v2264
        %2867 = vmatpush.bf16.msra.mxu0 %v2252
        %2868 = vmatpush.bf16.msra.mxu0 %v2240
        %2869 = vmatmul.bf16.gmra.mxu0 %v793
        %v2870 = vpop.f32.mrf.mxu0
        %v2871 = vadd.f32 %v2858, %v2870
        %v2872 = vpop.f32.mrf.mxu0
        %2873 = vdwg.mxu0
        %2874 = vmatpush.bf16.msra.mxu0 %v2037
        %2875 = vmatpush.bf16.msra.mxu0 %v2025
        %2876 = vmatpush.bf16.msra.mxu0 %v2013
        %2877 = vmatpush.bf16.msra.mxu0 %v2001
        %2878 = vmatpush.bf16.msra.mxu0 %v1989
        %2879 = vmatpush.bf16.msra.mxu0 %v1977
        %2880 = vmatpush.bf16.msra.mxu0 %v1965
        %2881 = vmatpush.bf16.msra.mxu0 %v1953
        %2882 = vmatmul.bf16.gmra.mxu0 %v790
        %v2883 = vpop.f32.mrf.mxu0
        %v2884 = vadd.f32 0.0, %v2883
        %v2885 = vpop.f32.mrf.mxu0
        %2886 = vdwg.mxu0
        %2887 = vmatpush.bf16.msra.mxu0 %v2133
        %2888 = vmatpush.bf16.msra.mxu0 %v2121
        %2889 = vmatpush.bf16.msra.mxu0 %v2109
        %2890 = vmatpush.bf16.msra.mxu0 %v2097
        %2891 = vmatpush.bf16.msra.mxu0 %v2085
        %2892 = vmatpush.bf16.msra.mxu0 %v2073
        %2893 = vmatpush.bf16.msra.mxu0 %v2061
        %2894 = vmatpush.bf16.msra.mxu0 %v2049
        %2895 = vmatmul.bf16.gmra.mxu0 %v791
        %v2896 = vpop.f32.mrf.mxu0
        %v2897 = vadd.f32 %v2884, %v2896
        %v2898 = vpop.f32.mrf.mxu0
        %2899 = vdwg.mxu0
        %2900 = vmatpush.bf16.msra.mxu0 %v2229
        %2901 = vmatpush.bf16.msra.mxu0 %v2217
        %2902 = vmatpush.bf16.msra.mxu0 %v2205
        %2903 = vmatpush.bf16.msra.mxu0 %v2193
        %2904 = vmatpush.bf16.msra.mxu0 %v2181
        %2905 = vmatpush.bf16.msra.mxu0 %v2169
        %2906 = vmatpush.bf16.msra.mxu0 %v2157
        %2907 = vmatpush.bf16.msra.mxu0 %v2145
        %2908 = vmatmul.bf16.gmra.mxu0 %v792
        %v2909 = vpop.f32.mrf.mxu0
        %v2910 = vadd.f32 %v2897, %v2909
        %v2911 = vpop.f32.mrf.mxu0
        %2912 = vdwg.mxu0
        %2913 = vmatpush.bf16.msra.mxu0 %v2325
        %2914 = vmatpush.bf16.msra.mxu0 %v2313
        %2915 = vmatpush.bf16.msra.mxu0 %v2301
        %2916 = vmatpush.bf16.msra.mxu0 %v2289
        %2917 = vmatpush.bf16.msra.mxu0 %v2277
        %2918 = vmatpush.bf16.msra.mxu0 %v2265
        %2919 = vmatpush.bf16.msra.mxu0 %v2253
        %2920 = vmatpush.bf16.msra.mxu0 %v2241
        %2921 = vmatmul.bf16.gmra.mxu0 %v793
        %v2922 = vpop.f32.mrf.mxu0
        %v2923 = vadd.f32 %v2910, %v2922
        %v2924 = vpop.f32.mrf.mxu0
        %2925 = vdwg.mxu0
        %2926 = vmatpush.bf16.msra.mxu0 %v2038
        %2927 = vmatpush.bf16.msra.mxu0 %v2026
        %2928 = vmatpush.bf16.msra.mxu0 %v2014
        %2929 = vmatpush.bf16.msra.mxu0 %v2002
        %2930 = vmatpush.bf16.msra.mxu0 %v1990
        %2931 = vmatpush.bf16.msra.mxu0 %v1978
        %2932 = vmatpush.bf16.msra.mxu0 %v1966
        %2933 = vmatpush.bf16.msra.mxu0 %v1954
        %2934 = vmatmul.bf16.gmra.mxu0 %v790
        %v2935 = vpop.f32.mrf.mxu0
        %v2936 = vadd.f32 0.0, %v2935
        %v2937 = vpop.f32.mrf.mxu0
        %2938 = vdwg.mxu0
        %2939 = vmatpush.bf16.msra.mxu0 %v2134
        %2940 = vmatpush.bf16.msra.mxu0 %v2122
        %2941 = vmatpush.bf16.msra.mxu0 %v2110
        %2942 = vmatpush.bf16.msra.mxu0 %v2098
        %2943 = vmatpush.bf16.msra.mxu0 %v2086
        %2944 = vmatpush.bf16.msra.mxu0 %v2074
        %2945 = vmatpush.bf16.msra.mxu0 %v2062
        %2946 = vmatpush.bf16.msra.mxu0 %v2050
        %2947 = vmatmul.bf16.gmra.mxu0 %v791
        %v2948 = vpop.f32.mrf.mxu0
        %v2949 = vadd.f32 %v2936, %v2948
        %v2950 = vpop.f32.mrf.mxu0
        %2951 = vdwg.mxu0
        %2952 = vmatpush.bf16.msra.mxu0 %v2230
        %2953 = vmatpush.bf16.msra.mxu0 %v2218
        %2954 = vmatpush.bf16.msra.mxu0 %v2206
        %2955 = vmatpush.bf16.msra.mxu0 %v2194
        %2956 = vmatpush.bf16.msra.mxu0 %v2182
        %2957 = vmatpush.bf16.msra.mxu0 %v2170
        %2958 = vmatpush.bf16.msra.mxu0 %v2158
        %2959 = vmatpush.bf16.msra.mxu0 %v2146
        %2960 = vmatmul.bf16.gmra.mxu0 %v792
        %v2961 = vpop.f32.mrf.mxu0
        %v2962 = vadd.f32 %v2949, %v2961
        %v2963 = vpop.f32.mrf.mxu0
        %2964 = vdwg.mxu0
        %2965 = vmatpush.bf16.msra.mxu0 %v2326
        %2966 = vmatpush.bf16.msra.mxu0 %v2314
        %2967 = vmatpush.bf16.msra.mxu0 %v2302
        %2968 = vmatpush.bf16.msra.mxu0 %v2290
        %2969 = vmatpush.bf16.msra.mxu0 %v2278
        %2970 = vmatpush.bf16.msra.mxu0 %v2266
        %2971 = vmatpush.bf16.msra.mxu0 %v2254
        %2972 = vmatpush.bf16.msra.mxu0 %v2242
        %2973 = vmatmul.bf16.gmra.mxu0 %v793
        %v2974 = vpop.f32.mrf.mxu0
        %v2975 = vadd.f32 %v2962, %v2974
        %v2976 = vpop.f32.mrf.mxu0
        %2977 = vdwg.mxu0
        %2978 = vmatpush.bf16.msra.mxu0 %v2039
        %2979 = vmatpush.bf16.msra.mxu0 %v2027
        %2980 = vmatpush.bf16.msra.mxu0 %v2015
        %2981 = vmatpush.bf16.msra.mxu0 %v2003
        %2982 = vmatpush.bf16.msra.mxu0 %v1991
        %2983 = vmatpush.bf16.msra.mxu0 %v1979
        %2984 = vmatpush.bf16.msra.mxu0 %v1967
        %2985 = vmatpush.bf16.msra.mxu0 %v1955
        %2986 = vmatmul.bf16.gmra.mxu0 %v790
        %v2987 = vpop.f32.mrf.mxu0
        %v2988 = vadd.f32 0.0, %v2987
        %v2989 = vpop.f32.mrf.mxu0
        %2990 = vdwg.mxu0
        %2991 = vmatpush.bf16.msra.mxu0 %v2135
        %2992 = vmatpush.bf16.msra.mxu0 %v2123
        %2993 = vmatpush.bf16.msra.mxu0 %v2111
        %2994 = vmatpush.bf16.msra.mxu0 %v2099
        %2995 = vmatpush.bf16.msra.mxu0 %v2087
        %2996 = vmatpush.bf16.msra.mxu0 %v2075
        %2997 = vmatpush.bf16.msra.mxu0 %v2063
        %2998 = vmatpush.bf16.msra.mxu0 %v2051
        %2999 = vmatmul.bf16.gmra.mxu0 %v791
        %v3000 = vpop.f32.mrf.mxu0
        %v3001 = vadd.f32 %v2988, %v3000
        %v3002 = vpop.f32.mrf.mxu0
        %3003 = vdwg.mxu0
        %3004 = vmatpush.bf16.msra.mxu0 %v2231
        %3005 = vmatpush.bf16.msra.mxu0 %v2219
        %3006 = vmatpush.bf16.msra.mxu0 %v2207
        %3007 = vmatpush.bf16.msra.mxu0 %v2195
        %3008 = vmatpush.bf16.msra.mxu0 %v2183
        %3009 = vmatpush.bf16.msra.mxu0 %v2171
        %3010 = vmatpush.bf16.msra.mxu0 %v2159
        %3011 = vmatpush.bf16.msra.mxu0 %v2147
        %3012 = vmatmul.bf16.gmra.mxu0 %v792
        %v3013 = vpop.f32.mrf.mxu0
        %v3014 = vadd.f32 %v3001, %v3013
        %v3015 = vpop.f32.mrf.mxu0
        %3016 = vdwg.mxu0
        %3017 = vmatpush.bf16.msra.mxu0 %v2327
        %3018 = vmatpush.bf16.msra.mxu0 %v2315
        %3019 = vmatpush.bf16.msra.mxu0 %v2303
        %3020 = vmatpush.bf16.msra.mxu0 %v2291
        %3021 = vmatpush.bf16.msra.mxu0 %v2279
        %3022 = vmatpush.bf16.msra.mxu0 %v2267
        %3023 = vmatpush.bf16.msra.mxu0 %v2255
        %3024 = vmatpush.bf16.msra.mxu0 %v2243
        %3025 = vmatmul.bf16.gmra.mxu0 %v793
        %v3026 = vpop.f32.mrf.mxu0
        %v3027 = vadd.f32 %v3014, %v3026
        %v3028 = vpop.f32.mrf.mxu0
        %3029 = vdwg.mxu0
        %3030 = vmatpush.bf16.msra.mxu0 %v2040
        %3031 = vmatpush.bf16.msra.mxu0 %v2028
        %3032 = vmatpush.bf16.msra.mxu0 %v2016
        %3033 = vmatpush.bf16.msra.mxu0 %v2004
        %3034 = vmatpush.bf16.msra.mxu0 %v1992
        %3035 = vmatpush.bf16.msra.mxu0 %v1980
        %3036 = vmatpush.bf16.msra.mxu0 %v1968
        %3037 = vmatpush.bf16.msra.mxu0 %v1956
        %3038 = vmatmul.bf16.gmra.mxu0 %v790
        %v3039 = vpop.f32.mrf.mxu0
        %v3040 = vadd.f32 0.0, %v3039
        %v3041 = vpop.f32.mrf.mxu0
        %3042 = vdwg.mxu0
        %3043 = vmatpush.bf16.msra.mxu0 %v2136
        %3044 = vmatpush.bf16.msra.mxu0 %v2124
        %3045 = vmatpush.bf16.msra.mxu0 %v2112
        %3046 = vmatpush.bf16.msra.mxu0 %v2100
        %3047 = vmatpush.bf16.msra.mxu0 %v2088
        %3048 = vmatpush.bf16.msra.mxu0 %v2076
        %3049 = vmatpush.bf16.msra.mxu0 %v2064
        %3050 = vmatpush.bf16.msra.mxu0 %v2052
        %3051 = vmatmul.bf16.gmra.mxu0 %v791
        %v3052 = vpop.f32.mrf.mxu0
        %v3053 = vadd.f32 %v3040, %v3052
        %v3054 = vpop.f32.mrf.mxu0
        %3055 = vdwg.mxu0
        %3056 = vmatpush.bf16.msra.mxu0 %v2232
        %3057 = vmatpush.bf16.msra.mxu0 %v2220
        %3058 = vmatpush.bf16.msra.mxu0 %v2208
        %3059 = vmatpush.bf16.msra.mxu0 %v2196
        %3060 = vmatpush.bf16.msra.mxu0 %v2184
        %3061 = vmatpush.bf16.msra.mxu0 %v2172
        %3062 = vmatpush.bf16.msra.mxu0 %v2160
        %3063 = vmatpush.bf16.msra.mxu0 %v2148
        %3064 = vmatmul.bf16.gmra.mxu0 %v792
        %v3065 = vpop.f32.mrf.mxu0
        %v3066 = vadd.f32 %v3053, %v3065
        %v3067 = vpop.f32.mrf.mxu0
        %3068 = vdwg.mxu0
        %3069 = vmatpush.bf16.msra.mxu0 %v2328
        %3070 = vmatpush.bf16.msra.mxu0 %v2316
        %3071 = vmatpush.bf16.msra.mxu0 %v2304
        %3072 = vmatpush.bf16.msra.mxu0 %v2292
        %3073 = vmatpush.bf16.msra.mxu0 %v2280
        %3074 = vmatpush.bf16.msra.mxu0 %v2268
        %3075 = vmatpush.bf16.msra.mxu0 %v2256
        %3076 = vmatpush.bf16.msra.mxu0 %v2244
        %3077 = vmatmul.bf16.gmra.mxu0 %v793
        %v3078 = vpop.f32.mrf.mxu0
        %v3079 = vadd.f32 %v3066, %v3078
        %v3080 = vpop.f32.mrf.mxu0
        %3081 = vdwg.mxu0
        %3082 = vmatpush.bf16.msra.mxu0 %v2041
        %3083 = vmatpush.bf16.msra.mxu0 %v2029
        %3084 = vmatpush.bf16.msra.mxu0 %v2017
        %3085 = vmatpush.bf16.msra.mxu0 %v2005
        %3086 = vmatpush.bf16.msra.mxu0 %v1993
        %3087 = vmatpush.bf16.msra.mxu0 %v1981
        %3088 = vmatpush.bf16.msra.mxu0 %v1969
        %3089 = vmatpush.bf16.msra.mxu0 %v1957
        %3090 = vmatmul.bf16.gmra.mxu0 %v790
        %v3091 = vpop.f32.mrf.mxu0
        %v3092 = vadd.f32 0.0, %v3091
        %v3093 = vpop.f32.mrf.mxu0
        %3094 = vdwg.mxu0
        %3095 = vmatpush.bf16.msra.mxu0 %v2137
        %3096 = vmatpush.bf16.msra.mxu0 %v2125
        %3097 = vmatpush.bf16.msra.mxu0 %v2113
        %3098 = vmatpush.bf16.msra.mxu0 %v2101
        %3099 = vmatpush.bf16.msra.mxu0 %v2089
        %3100 = vmatpush.bf16.msra.mxu0 %v2077
        %3101 = vmatpush.bf16.msra.mxu0 %v2065
        %3102 = vmatpush.bf16.msra.mxu0 %v2053
        %3103 = vmatmul.bf16.gmra.mxu0 %v791
        %v3104 = vpop.f32.mrf.mxu0
        %v3105 = vadd.f32 %v3092, %v3104
        %v3106 = vpop.f32.mrf.mxu0
        %3107 = vdwg.mxu0
        %3108 = vmatpush.bf16.msra.mxu0 %v2233
        %3109 = vmatpush.bf16.msra.mxu0 %v2221
        %3110 = vmatpush.bf16.msra.mxu0 %v2209
        %3111 = vmatpush.bf16.msra.mxu0 %v2197
        %3112 = vmatpush.bf16.msra.mxu0 %v2185
        %3113 = vmatpush.bf16.msra.mxu0 %v2173
        %3114 = vmatpush.bf16.msra.mxu0 %v2161
        %3115 = vmatpush.bf16.msra.mxu0 %v2149
        %3116 = vmatmul.bf16.gmra.mxu0 %v792
        %v3117 = vpop.f32.mrf.mxu0
        %v3118 = vadd.f32 %v3105, %v3117
        %v3119 = vpop.f32.mrf.mxu0
        %3120 = vdwg.mxu0
        %3121 = vmatpush.bf16.msra.mxu0 %v2329
        %3122 = vmatpush.bf16.msra.mxu0 %v2317
        %3123 = vmatpush.bf16.msra.mxu0 %v2305
        %3124 = vmatpush.bf16.msra.mxu0 %v2293
        %3125 = vmatpush.bf16.msra.mxu0 %v2281
        %3126 = vmatpush.bf16.msra.mxu0 %v2269
        %3127 = vmatpush.bf16.msra.mxu0 %v2257
        %3128 = vmatpush.bf16.msra.mxu0 %v2245
        %3129 = vmatmul.bf16.gmra.mxu0 %v793
        %v3130 = vpop.f32.mrf.mxu0
        %v3131 = vadd.f32 %v3118, %v3130
        %v3132 = vpop.f32.mrf.mxu0
        %3133 = vdwg.mxu0
        %3134 = vmatpush.bf16.msra.mxu0 %v2042
        %3135 = vmatpush.bf16.msra.mxu0 %v2030
        %3136 = vmatpush.bf16.msra.mxu0 %v2018
        %3137 = vmatpush.bf16.msra.mxu0 %v2006
        %3138 = vmatpush.bf16.msra.mxu0 %v1994
        %3139 = vmatpush.bf16.msra.mxu0 %v1982
        %3140 = vmatpush.bf16.msra.mxu0 %v1970
        %3141 = vmatpush.bf16.msra.mxu0 %v1958
        %3142 = vmatmul.bf16.gmra.mxu0 %v790
        %v3143 = vpop.f32.mrf.mxu0
        %v3144 = vadd.f32 0.0, %v3143
        %v3145 = vpop.f32.mrf.mxu0
        %3146 = vdwg.mxu0
        %3147 = vmatpush.bf16.msra.mxu0 %v2138
        %3148 = vmatpush.bf16.msra.mxu0 %v2126
        %3149 = vmatpush.bf16.msra.mxu0 %v2114
        %3150 = vmatpush.bf16.msra.mxu0 %v2102
        %3151 = vmatpush.bf16.msra.mxu0 %v2090
        %3152 = vmatpush.bf16.msra.mxu0 %v2078
        %3153 = vmatpush.bf16.msra.mxu0 %v2066
        %3154 = vmatpush.bf16.msra.mxu0 %v2054
        %3155 = vmatmul.bf16.gmra.mxu0 %v791
        %v3156 = vpop.f32.mrf.mxu0
        %v3157 = vadd.f32 %v3144, %v3156
        %v3158 = vpop.f32.mrf.mxu0
        %3159 = vdwg.mxu0
        %3160 = vmatpush.bf16.msra.mxu0 %v2234
        %3161 = vmatpush.bf16.msra.mxu0 %v2222
        %3162 = vmatpush.bf16.msra.mxu0 %v2210
        %3163 = vmatpush.bf16.msra.mxu0 %v2198
        %3164 = vmatpush.bf16.msra.mxu0 %v2186
        %3165 = vmatpush.bf16.msra.mxu0 %v2174
        %3166 = vmatpush.bf16.msra.mxu0 %v2162
        %3167 = vmatpush.bf16.msra.mxu0 %v2150
        %3168 = vmatmul.bf16.gmra.mxu0 %v792
        %v3169 = vpop.f32.mrf.mxu0
        %v3170 = vadd.f32 %v3157, %v3169
        %v3171 = vpop.f32.mrf.mxu0
        %3172 = vdwg.mxu0
        %3173 = vmatpush.bf16.msra.mxu0 %v2330
        %3174 = vmatpush.bf16.msra.mxu0 %v2318
        %3175 = vmatpush.bf16.msra.mxu0 %v2306
        %3176 = vmatpush.bf16.msra.mxu0 %v2294
        %3177 = vmatpush.bf16.msra.mxu0 %v2282
        %3178 = vmatpush.bf16.msra.mxu0 %v2270
        %3179 = vmatpush.bf16.msra.mxu0 %v2258
        %3180 = vmatpush.bf16.msra.mxu0 %v2246
        %3181 = vmatmul.bf16.gmra.mxu0 %v793
        %v3182 = vpop.f32.mrf.mxu0
        %v3183 = vadd.f32 %v3170, %v3182
        %v3184 = vpop.f32.mrf.mxu0
        %3185 = vdwg.mxu0
        %3186 = vmatpush.bf16.msra.mxu0 %v2043
        %3187 = vmatpush.bf16.msra.mxu0 %v2031
        %3188 = vmatpush.bf16.msra.mxu0 %v2019
        %3189 = vmatpush.bf16.msra.mxu0 %v2007
        %3190 = vmatpush.bf16.msra.mxu0 %v1995
        %3191 = vmatpush.bf16.msra.mxu0 %v1983
        %3192 = vmatpush.bf16.msra.mxu0 %v1971
        %3193 = vmatpush.bf16.msra.mxu0 %v1959
        %3194 = vmatmul.bf16.gmra.mxu0 %v790
        %v3195 = vpop.f32.mrf.mxu0
        %v3196 = vadd.f32 0.0, %v3195
        %v3197 = vpop.f32.mrf.mxu0
        %3198 = vdwg.mxu0
        %3199 = vmatpush.bf16.msra.mxu0 %v2139
        %3200 = vmatpush.bf16.msra.mxu0 %v2127
        %3201 = vmatpush.bf16.msra.mxu0 %v2115
        %3202 = vmatpush.bf16.msra.mxu0 %v2103
        %3203 = vmatpush.bf16.msra.mxu0 %v2091
        %3204 = vmatpush.bf16.msra.mxu0 %v2079
        %3205 = vmatpush.bf16.msra.mxu0 %v2067
        %3206 = vmatpush.bf16.msra.mxu0 %v2055
        %3207 = vmatmul.bf16.gmra.mxu0 %v791
        %v3208 = vpop.f32.mrf.mxu0
        %v3209 = vadd.f32 %v3196, %v3208
        %v3210 = vpop.f32.mrf.mxu0
        %3211 = vdwg.mxu0
        %3212 = vmatpush.bf16.msra.mxu0 %v2235
        %3213 = vmatpush.bf16.msra.mxu0 %v2223
        %3214 = vmatpush.bf16.msra.mxu0 %v2211
        %3215 = vmatpush.bf16.msra.mxu0 %v2199
        %3216 = vmatpush.bf16.msra.mxu0 %v2187
        %3217 = vmatpush.bf16.msra.mxu0 %v2175
        %3218 = vmatpush.bf16.msra.mxu0 %v2163
        %3219 = vmatpush.bf16.msra.mxu0 %v2151
        %3220 = vmatmul.bf16.gmra.mxu0 %v792
        %v3221 = vpop.f32.mrf.mxu0
        %v3222 = vadd.f32 %v3209, %v3221
        %v3223 = vpop.f32.mrf.mxu0
        %3224 = vdwg.mxu0
        %3225 = vmatpush.bf16.msra.mxu0 %v2331
        %3226 = vmatpush.bf16.msra.mxu0 %v2319
        %3227 = vmatpush.bf16.msra.mxu0 %v2307
        %3228 = vmatpush.bf16.msra.mxu0 %v2295
        %3229 = vmatpush.bf16.msra.mxu0 %v2283
        %3230 = vmatpush.bf16.msra.mxu0 %v2271
        %3231 = vmatpush.bf16.msra.mxu0 %v2259
        %3232 = vmatpush.bf16.msra.mxu0 %v2247
        %3233 = vmatmul.bf16.gmra.mxu0 %v793
        %v3234 = vpop.f32.mrf.mxu0
        %v3235 = vadd.f32 %v3222, %v3234
        %v3236 = vpop.f32.mrf.mxu0
        %3237 = vdwg.mxu0
        %3238 = vmatpush.bf16.msra.mxu0 %v2044
        %3239 = vmatpush.bf16.msra.mxu0 %v2032
        %3240 = vmatpush.bf16.msra.mxu0 %v2020
        %3241 = vmatpush.bf16.msra.mxu0 %v2008
        %3242 = vmatpush.bf16.msra.mxu0 %v1996
        %3243 = vmatpush.bf16.msra.mxu0 %v1984
        %3244 = vmatpush.bf16.msra.mxu0 %v1972
        %3245 = vmatpush.bf16.msra.mxu0 %v1960
        %3246 = vmatmul.bf16.gmra.mxu0 %v790
        %v3247 = vpop.f32.mrf.mxu0
        %v3248 = vadd.f32 0.0, %v3247
        %v3249 = vpop.f32.mrf.mxu0
        %3250 = vdwg.mxu0
        %3251 = vmatpush.bf16.msra.mxu0 %v2140
        %3252 = vmatpush.bf16.msra.mxu0 %v2128
        %3253 = vmatpush.bf16.msra.mxu0 %v2116
        %3254 = vmatpush.bf16.msra.mxu0 %v2104
        %3255 = vmatpush.bf16.msra.mxu0 %v2092
        %3256 = vmatpush.bf16.msra.mxu0 %v2080
        %3257 = vmatpush.bf16.msra.mxu0 %v2068
        %3258 = vmatpush.bf16.msra.mxu0 %v2056
        %3259 = vmatmul.bf16.gmra.mxu0 %v791
        %v3260 = vpop.f32.mrf.mxu0
        %v3261 = vadd.f32 %v3248, %v3260
        %v3262 = vpop.f32.mrf.mxu0
        %3263 = vdwg.mxu0
        %3264 = vmatpush.bf16.msra.mxu0 %v2236
        %3265 = vmatpush.bf16.msra.mxu0 %v2224
        %3266 = vmatpush.bf16.msra.mxu0 %v2212
        %3267 = vmatpush.bf16.msra.mxu0 %v2200
        %3268 = vmatpush.bf16.msra.mxu0 %v2188
        %3269 = vmatpush.bf16.msra.mxu0 %v2176
        %3270 = vmatpush.bf16.msra.mxu0 %v2164
        %3271 = vmatpush.bf16.msra.mxu0 %v2152
        %3272 = vmatmul.bf16.gmra.mxu0 %v792
        %v3273 = vpop.f32.mrf.mxu0
        %v3274 = vadd.f32 %v3261, %v3273
        %v3275 = vpop.f32.mrf.mxu0
        %3276 = vdwg.mxu0
        %3277 = vmatpush.bf16.msra.mxu0 %v2332
        %3278 = vmatpush.bf16.msra.mxu0 %v2320
        %3279 = vmatpush.bf16.msra.mxu0 %v2308
        %3280 = vmatpush.bf16.msra.mxu0 %v2296
        %3281 = vmatpush.bf16.msra.mxu0 %v2284
        %3282 = vmatpush.bf16.msra.mxu0 %v2272
        %3283 = vmatpush.bf16.msra.mxu0 %v2260
        %3284 = vmatpush.bf16.msra.mxu0 %v2248
        %3285 = vmatmul.bf16.gmra.mxu0 %v793
        %v3286 = vpop.f32.mrf.mxu0
        %v3287 = vadd.f32 %v3274, %v3286
        %v3288 = vpop.f32.mrf.mxu0
        %3289 = vdwg.mxu0
        %3290 = vmatpush.bf16.msra.mxu0 %v2045
        %3291 = vmatpush.bf16.msra.mxu0 %v2033
        %3292 = vmatpush.bf16.msra.mxu0 %v2021
        %3293 = vmatpush.bf16.msra.mxu0 %v2009
        %3294 = vmatpush.bf16.msra.mxu0 %v1997
        %3295 = vmatpush.bf16.msra.mxu0 %v1985
        %3296 = vmatpush.bf16.msra.mxu0 %v1973
        %3297 = vmatpush.bf16.msra.mxu0 %v1961
        %3298 = vmatmul.bf16.gmra.mxu0 %v790
        %v3299 = vpop.f32.mrf.mxu0
        %v3300 = vadd.f32 0.0, %v3299
        %v3301 = vpop.f32.mrf.mxu0
        %3302 = vdwg.mxu0
        %3303 = vmatpush.bf16.msra.mxu0 %v2141
        %3304 = vmatpush.bf16.msra.mxu0 %v2129
        %3305 = vmatpush.bf16.msra.mxu0 %v2117
        %3306 = vmatpush.bf16.msra.mxu0 %v2105
        %3307 = vmatpush.bf16.msra.mxu0 %v2093
        %3308 = vmatpush.bf16.msra.mxu0 %v2081
        %3309 = vmatpush.bf16.msra.mxu0 %v2069
        %3310 = vmatpush.bf16.msra.mxu0 %v2057
        %3311 = vmatmul.bf16.gmra.mxu0 %v791
        %v3312 = vpop.f32.mrf.mxu0
        %v3313 = vadd.f32 %v3300, %v3312
        %v3314 = vpop.f32.mrf.mxu0
        %3315 = vdwg.mxu0
        %3316 = vmatpush.bf16.msra.mxu0 %v2237
        %3317 = vmatpush.bf16.msra.mxu0 %v2225
        %3318 = vmatpush.bf16.msra.mxu0 %v2213
        %3319 = vmatpush.bf16.msra.mxu0 %v2201
        %3320 = vmatpush.bf16.msra.mxu0 %v2189
        %3321 = vmatpush.bf16.msra.mxu0 %v2177
        %3322 = vmatpush.bf16.msra.mxu0 %v2165
        %3323 = vmatpush.bf16.msra.mxu0 %v2153
        %3324 = vmatmul.bf16.gmra.mxu0 %v792
        %v3325 = vpop.f32.mrf.mxu0
        %v3326 = vadd.f32 %v3313, %v3325
        %v3327 = vpop.f32.mrf.mxu0
        %3328 = vdwg.mxu0
        %3329 = vmatpush.bf16.msra.mxu0 %v2333
        %3330 = vmatpush.bf16.msra.mxu0 %v2321
        %3331 = vmatpush.bf16.msra.mxu0 %v2309
        %3332 = vmatpush.bf16.msra.mxu0 %v2297
        %3333 = vmatpush.bf16.msra.mxu0 %v2285
        %3334 = vmatpush.bf16.msra.mxu0 %v2273
        %3335 = vmatpush.bf16.msra.mxu0 %v2261
        %3336 = vmatpush.bf16.msra.mxu0 %v2249
        %3337 = vmatmul.bf16.gmra.mxu0 %v793
        %v3338 = vpop.f32.mrf.mxu0
        %v3339 = vadd.f32 %v3326, %v3338
        %v3340 = vpop.f32.mrf.mxu0
        %3341 = vdwg.mxu0
        %v3342 = vadd.f32 %v386, %v2767
        %v3343 = vadd.f32 %v387, %v2819
        %v3344 = vadd.f32 %v388, %v2871
        %v3345 = vadd.f32 %v389, %v2923
        %v3346 = vadd.f32 %v390, %v2975
        %v3347 = vadd.f32 %v391, %v3027
        %v3348 = vadd.f32 %v392, %v3079
        %v3349 = vadd.f32 %v393, %v3131
        %v3350 = vadd.f32 %v394, %v3183
        %v3351 = vadd.f32 %v395, %v3235
        %v3352 = vadd.f32 %v396, %v3287
        %v3353 = vadd.f32 %v397, %v3339
        %3354 = vst [vmem:[#allocation2] sm:$0xff] %v3342
        %3355 = vst [vmem:[#allocation2 + $0x8] sm:$0xff] %v3343
        %3356 = vst [vmem:[#allocation2 + $0x10] sm:$0xff] %v3344
        %3357 = vst [vmem:[#allocation2 + $0x18] sm:$0xff] %v3345
        %3358 = vst [vmem:[#allocation2 + $0x20] sm:$0xff] %v3346
        %3359 = vst [vmem:[#allocation2 + $0x28] sm:$0xff] %v3347
        %3360 = vst [vmem:[#allocation2 + $0x30] sm:$0xff] %v3348
        %3361 = vst [vmem:[#allocation2 + $0x38] sm:$0xff] %v3349
        %3362 = vst [vmem:[#allocation2 + $0x40] sm:$0xff] %v3350
        %3363 = vst [vmem:[#allocation2 + $0x48] sm:$0xff] %v3351
        %3364 = vst [vmem:[#allocation2 + $0x50] sm:$0xff] %v3352
        %3365 = vst [vmem:[#allocation2 + $0x58] sm:$0xff] %v3353
        %p3366 = scmp.eq.s32.totalorder %s29, 5
        // Predicated region
        $region65: #{tpu_custom_call.1} parent=39 // pred_check
          %p3367 = pneg %p3366
        $region66: #{tpu_custom_call.1} parent=39 // pred_check_branch
          %3369 = sbr.rel (%p3367) target = $region68
        $region67: #{tpu_custom_call.1} parent=39 // pred_region
          %v3370 = vld [vmem:[#allocation2] sm:$0xff]
          %v3371 = vld [vmem:[#allocation2 + $0x8] sm:$0xff]
          %v3372 = vld [vmem:[#allocation2 + $0x10] sm:$0xff]
          %v3373 = vld [vmem:[#allocation2 + $0x18] sm:$0xff]
          %v3374 = vld [vmem:[#allocation2 + $0x20] sm:$0xff]
          %v3375 = vld [vmem:[#allocation2 + $0x28] sm:$0xff]
          %v3376 = vld [vmem:[#allocation2 + $0x30] sm:$0xff]
          %v3377 = vld [vmem:[#allocation2 + $0x38] sm:$0xff]
          %v3378 = vld [vmem:[#allocation2 + $0x40] sm:$0xff]
          %v3379 = vld [vmem:[#allocation2 + $0x48] sm:$0xff]
          %v3380 = vld [vmem:[#allocation2 + $0x50] sm:$0xff]
          %v3381 = vld [vmem:[#allocation2 + $0x58] sm:$0xff]
          %v3382 = vxor.u32 %v3370, 2147483648
          %v3383 = vxor.u32 %v3371, 2147483648
          %v3384 = vxor.u32 %v3372, 2147483648
          %v3385 = vxor.u32 %v3373, 2147483648
          %v3386 = vxor.u32 %v3374, 2147483648
          %v3387 = vxor.u32 %v3375, 2147483648
          %v3388 = vxor.u32 %v3376, 2147483648
          %v3389 = vxor.u32 %v3377, 2147483648
          %v3390 = vxor.u32 %v3378, 2147483648
          %v3391 = vxor.u32 %v3379, 2147483648
          %v3392 = vxor.u32 %v3380, 2147483648
          %v3393 = vxor.u32 %v3381, 2147483648
          %v3394 = vmul.f32 %v3382, 1.442695
          %v3395 = vpow.pop %v3394
          %v3396 = vmul.f32 %v3383, 1.442695
          %v3397 = vpow.pop %v3396
          %v3398 = vmul.f32 %v3384, 1.442695
          %v3399 = vpow.pop %v3398
          %v3400 = vmul.f32 %v3385, 1.442695
          %v3401 = vpow.pop %v3400
          %v3402 = vmul.f32 %v3386, 1.442695
          %v3403 = vpow.pop %v3402
          %v3404 = vmul.f32 %v3387, 1.442695
          %v3405 = vpow.pop %v3404
          %v3406 = vmul.f32 %v3388, 1.442695
          %v3407 = vpow.pop %v3406
          %v3408 = vmul.f32 %v3389, 1.442695
          %v3409 = vpow.pop %v3408
          %v3410 = vmul.f32 %v3390, 1.442695
          %v3411 = vpow.pop %v3410
          %v3412 = vmul.f32 %v3391, 1.442695
          %v3413 = vpow.pop %v3412
          %v3414 = vmul.f32 %v3392, 1.442695
          %v3415 = vpow.pop %v3414
          %v3416 = vmul.f32 %v3393, 1.442695
          %v3417 = vpow.pop %v3416
          %v3418 = vadd.f32 %v3395, 1.0
          %v3419 = vadd.f32 %v3397, 1.0
          %v3420 = vadd.f32 %v3399, 1.0
          %v3421 = vadd.f32 %v3401, 1.0
          %v3422 = vadd.f32 %v3403, 1.0
          %v3423 = vadd.f32 %v3405, 1.0
          %v3424 = vadd.f32 %v3407, 1.0
          %v3425 = vadd.f32 %v3409, 1.0
          %v3426 = vadd.f32 %v3411, 1.0
          %v3427 = vadd.f32 %v3413, 1.0
          %v3428 = vadd.f32 %v3415, 1.0
          %v3429 = vadd.f32 %v3417, 1.0
          %v3430 = vrcp.pop %v3418
          %v3431 = vmul.f32 %v3418, %v3430
          %v3432 = vsub.f32 1.0, %v3431
          %v3433 = vmul.f32 %v3430, %v3432
          %v3434 = vadd.f32 %v3430, %v3433
          %vm3435 = vweird.f32 %v3418
          %vm3436 = vweird.f32 %v3430
          %vm3437 = vmor %vm3435, %vm3436
          %v3438 = vsel %vm3437, %v3430, %v3434
          %v3439 = vand.u32 2147483647, %v3418
          %vm3440 = vcmp.eq.f32.partialorder %v3439, 8.507059e+37
          %v3441 = vand.u32 %v3418, 2147483648
          %v3442 = vor.u32 1.1754944e-38, %v3441
          %v3443 = vsel %vm3440, %v3442, %v3438
          %v3444 = vmul.f32 1.0, %v3443
          %v3445 = vrcp.pop %v3419
          %v3446 = vmul.f32 %v3419, %v3445
          %v3447 = vsub.f32 1.0, %v3446
          %v3448 = vmul.f32 %v3445, %v3447
          %v3449 = vadd.f32 %v3445, %v3448
          %vm3450 = vweird.f32 %v3419
          %vm3451 = vweird.f32 %v3445
          %vm3452 = vmor %vm3450, %vm3451
          %v3453 = vsel %vm3452, %v3445, %v3449
          %v3454 = vand.u32 2147483647, %v3419
          %vm3455 = vcmp.eq.f32.partialorder %v3454, 8.507059e+37
          %v3456 = vand.u32 %v3419, 2147483648
          %v3457 = vor.u32 1.1754944e-38, %v3456
          %v3458 = vsel %vm3455, %v3457, %v3453
          %v3459 = vmul.f32 1.0, %v3458
          %v3460 = vrcp.pop %v3420
          %v3461 = vmul.f32 %v3420, %v3460
          %v3462 = vsub.f32 1.0, %v3461
          %v3463 = vmul.f32 %v3460, %v3462
          %v3464 = vadd.f32 %v3460, %v3463
          %vm3465 = vweird.f32 %v3420
          %vm3466 = vweird.f32 %v3460
          %vm3467 = vmor %vm3465, %vm3466
          %v3468 = vsel %vm3467, %v3460, %v3464
          %v3469 = vand.u32 2147483647, %v3420
          %vm3470 = vcmp.eq.f32.partialorder %v3469, 8.507059e+37
          %v3471 = vand.u32 %v3420, 2147483648
          %v3472 = vor.u32 1.1754944e-38, %v3471
          %v3473 = vsel %vm3470, %v3472, %v3468
          %v3474 = vmul.f32 1.0, %v3473
          %v3475 = vrcp.pop %v3421
          %v3476 = vmul.f32 %v3421, %v3475
          %v3477 = vsub.f32 1.0, %v3476
          %v3478 = vmul.f32 %v3475, %v3477
          %v3479 = vadd.f32 %v3475, %v3478
          %vm3480 = vweird.f32 %v3421
          %vm3481 = vweird.f32 %v3475
          %vm3482 = vmor %vm3480, %vm3481
          %v3483 = vsel %vm3482, %v3475, %v3479
          %v3484 = vand.u32 2147483647, %v3421
          %vm3485 = vcmp.eq.f32.partialorder %v3484, 8.507059e+37
          %v3486 = vand.u32 %v3421, 2147483648
          %v3487 = vor.u32 1.1754944e-38, %v3486
          %v3488 = vsel %vm3485, %v3487, %v3483
          %v3489 = vmul.f32 1.0, %v3488
          %v3490 = vrcp.pop %v3422
          %v3491 = vmul.f32 %v3422, %v3490
          %v3492 = vsub.f32 1.0, %v3491
          %v3493 = vmul.f32 %v3490, %v3492
          %v3494 = vadd.f32 %v3490, %v3493
          %vm3495 = vweird.f32 %v3422
          %vm3496 = vweird.f32 %v3490
          %vm3497 = vmor %vm3495, %vm3496
          %v3498 = vsel %vm3497, %v3490, %v3494
          %v3499 = vand.u32 2147483647, %v3422
          %vm3500 = vcmp.eq.f32.partialorder %v3499, 8.507059e+37
          %v3501 = vand.u32 %v3422, 2147483648
          %v3502 = vor.u32 1.1754944e-38, %v3501
          %v3503 = vsel %vm3500, %v3502, %v3498
          %v3504 = vmul.f32 1.0, %v3503
          %v3505 = vrcp.pop %v3423
          %v3506 = vmul.f32 %v3423, %v3505
          %v3507 = vsub.f32 1.0, %v3506
          %v3508 = vmul.f32 %v3505, %v3507
          %v3509 = vadd.f32 %v3505, %v3508
          %vm3510 = vweird.f32 %v3423
          %vm3511 = vweird.f32 %v3505
          %vm3512 = vmor %vm3510, %vm3511
          %v3513 = vsel %vm3512, %v3505, %v3509
          %v3514 = vand.u32 2147483647, %v3423
          %vm3515 = vcmp.eq.f32.partialorder %v3514, 8.507059e+37
          %v3516 = vand.u32 %v3423, 2147483648
          %v3517 = vor.u32 1.1754944e-38, %v3516
          %v3518 = vsel %vm3515, %v3517, %v3513
          %v3519 = vmul.f32 1.0, %v3518
          %v3520 = vrcp.pop %v3424
          %v3521 = vmul.f32 %v3424, %v3520
          %v3522 = vsub.f32 1.0, %v3521
          %v3523 = vmul.f32 %v3520, %v3522
          %v3524 = vadd.f32 %v3520, %v3523
          %vm3525 = vweird.f32 %v3424
          %vm3526 = vweird.f32 %v3520
          %vm3527 = vmor %vm3525, %vm3526
          %v3528 = vsel %vm3527, %v3520, %v3524
          %v3529 = vand.u32 2147483647, %v3424
          %vm3530 = vcmp.eq.f32.partialorder %v3529, 8.507059e+37
          %v3531 = vand.u32 %v3424, 2147483648
          %v3532 = vor.u32 1.1754944e-38, %v3531
          %v3533 = vsel %vm3530, %v3532, %v3528
          %v3534 = vmul.f32 1.0, %v3533
          %v3535 = vrcp.pop %v3425
          %v3536 = vmul.f32 %v3425, %v3535
          %v3537 = vsub.f32 1.0, %v3536
          %v3538 = vmul.f32 %v3535, %v3537
          %v3539 = vadd.f32 %v3535, %v3538
          %vm3540 = vweird.f32 %v3425
          %vm3541 = vweird.f32 %v3535
          %vm3542 = vmor %vm3540, %vm3541
          %v3543 = vsel %vm3542, %v3535, %v3539
          %v3544 = vand.u32 2147483647, %v3425
          %vm3545 = vcmp.eq.f32.partialorder %v3544, 8.507059e+37
          %v3546 = vand.u32 %v3425, 2147483648
          %v3547 = vor.u32 1.1754944e-38, %v3546
          %v3548 = vsel %vm3545, %v3547, %v3543
          %v3549 = vmul.f32 1.0, %v3548
          %v3550 = vrcp.pop %v3426
          %v3551 = vmul.f32 %v3426, %v3550
          %v3552 = vsub.f32 1.0, %v3551
          %v3553 = vmul.f32 %v3550, %v3552
          %v3554 = vadd.f32 %v3550, %v3553
          %vm3555 = vweird.f32 %v3426
          %vm3556 = vweird.f32 %v3550
          %vm3557 = vmor %vm3555, %vm3556
          %v3558 = vsel %vm3557, %v3550, %v3554
          %v3559 = vand.u32 2147483647, %v3426
          %vm3560 = vcmp.eq.f32.partialorder %v3559, 8.507059e+37
          %v3561 = vand.u32 %v3426, 2147483648
          %v3562 = vor.u32 1.1754944e-38, %v3561
          %v3563 = vsel %vm3560, %v3562, %v3558
          %v3564 = vmul.f32 1.0, %v3563
          %v3565 = vrcp.pop %v3427
          %v3566 = vmul.f32 %v3427, %v3565
          %v3567 = vsub.f32 1.0, %v3566
          %v3568 = vmul.f32 %v3565, %v3567
          %v3569 = vadd.f32 %v3565, %v3568
          %vm3570 = vweird.f32 %v3427
          %vm3571 = vweird.f32 %v3565
          %vm3572 = vmor %vm3570, %vm3571
          %v3573 = vsel %vm3572, %v3565, %v3569
          %v3574 = vand.u32 2147483647, %v3427
          %vm3575 = vcmp.eq.f32.partialorder %v3574, 8.507059e+37
          %v3576 = vand.u32 %v3427, 2147483648
          %v3577 = vor.u32 1.1754944e-38, %v3576
          %v3578 = vsel %vm3575, %v3577, %v3573
          %v3579 = vmul.f32 1.0, %v3578
          %v3580 = vrcp.pop %v3428
          %v3581 = vmul.f32 %v3428, %v3580
          %v3582 = vsub.f32 1.0, %v3581
          %v3583 = vmul.f32 %v3580, %v3582
          %v3584 = vadd.f32 %v3580, %v3583
          %vm3585 = vweird.f32 %v3428
          %vm3586 = vweird.f32 %v3580
          %vm3587 = vmor %vm3585, %vm3586
          %v3588 = vsel %vm3587, %v3580, %v3584
          %v3589 = vand.u32 2147483647, %v3428
          %vm3590 = vcmp.eq.f32.partialorder %v3589, 8.507059e+37
          %v3591 = vand.u32 %v3428, 2147483648
          %v3592 = vor.u32 1.1754944e-38, %v3591
          %v3593 = vsel %vm3590, %v3592, %v3588
          %v3594 = vmul.f32 1.0, %v3593
          %v3595 = vrcp.pop %v3429
          %v3596 = vmul.f32 %v3429, %v3595
          %v3597 = vsub.f32 1.0, %v3596
          %v3598 = vmul.f32 %v3595, %v3597
          %v3599 = vadd.f32 %v3595, %v3598
          %vm3600 = vweird.f32 %v3429
          %vm3601 = vweird.f32 %v3595
          %vm3602 = vmor %vm3600, %vm3601
          %v3603 = vsel %vm3602, %v3595, %v3599
          %v3604 = vand.u32 2147483647, %v3429
          %vm3605 = vcmp.eq.f32.partialorder %v3604, 8.507059e+37
          %v3606 = vand.u32 %v3429, 2147483648
          %v3607 = vor.u32 1.1754944e-38, %v3606
          %v3608 = vsel %vm3605, %v3607, %v3603
          %v3609 = vmul.f32 1.0, %v3608
          %v3610 = vpack.c.bf16 %v3444, %v3444
          %v3611 = vpack.c.bf16 %v3459, %v3459
          %v3612 = vpack.c.bf16 %v3474, %v3474
          %v3613 = vpack.c.bf16 %v3489, %v3489
          %v3614 = vpack.c.bf16 %v3504, %v3504
          %v3615 = vpack.c.bf16 %v3519, %v3519
          %v3616 = vpack.c.bf16 %v3534, %v3534
          %v3617 = vpack.c.bf16 %v3549, %v3549
          %v3618 = vpack.c.bf16 %v3564, %v3564
          %v3619 = vpack.c.bf16 %v3579, %v3579
          %v3620 = vpack.c.bf16 %v3594, %v3594
          %v3621 = vpack.c.bf16 %v3609, %v3609
          %v3622 = vld [vmem:[#allocation9] sm:$0xf]
          %v3623 = vld [vmem:[#allocation9 + $0x4] sm:$0xf]
          %v3624 = vld [vmem:[#allocation9 + $0x8] sm:$0xf]
          %v3625 = vld [vmem:[#allocation9 + $0xc] sm:$0xf]
          %v3626 = vld [vmem:[#allocation9 + $0x10] sm:$0xf]
          %v3627 = vld [vmem:[#allocation9 + $0x14] sm:$0xf]
          %v3628 = vld [vmem:[#allocation9 + $0x18] sm:$0xf]
          %v3629 = vld [vmem:[#allocation9 + $0x1c] sm:$0xf]
          %v3630 = vld [vmem:[#allocation9 + $0x20] sm:$0xf]
          %v3631 = vld [vmem:[#allocation9 + $0x24] sm:$0xf]
          %v3632 = vld [vmem:[#allocation9 + $0x28] sm:$0xf]
          %v3633 = vld [vmem:[#allocation9 + $0x2c] sm:$0xf]
          %v3634 = vld [vmem:[#allocation9 + $0x30] sm:$0xf]
          %v3635 = vld [vmem:[#allocation9 + $0x34] sm:$0xf]
          %v3636 = vld [vmem:[#allocation9 + $0x38] sm:$0xf]
          %v3637 = vld [vmem:[#allocation9 + $0x3c] sm:$0xf]
          %v3638 = vld [vmem:[#allocation9 + $0x40] sm:$0xf]
          %v3639 = vld [vmem:[#allocation9 + $0x44] sm:$0xf]
          %v3640 = vld [vmem:[#allocation9 + $0x48] sm:$0xf]
          %v3641 = vld [vmem:[#allocation9 + $0x4c] sm:$0xf]
          %v3642 = vld [vmem:[#allocation9 + $0x50] sm:$0xf]
          %v3643 = vld [vmem:[#allocation9 + $0x54] sm:$0xf]
          %v3644 = vld [vmem:[#allocation9 + $0x58] sm:$0xf]
          %v3645 = vld [vmem:[#allocation9 + $0x5c] sm:$0xf]
          %v3646 = vld [vmem:[#allocation9 + $0x60] sm:$0xf]
          %v3647 = vld [vmem:[#allocation9 + $0x64] sm:$0xf]
          %v3648 = vld [vmem:[#allocation9 + $0x68] sm:$0xf]
          %v3649 = vld [vmem:[#allocation9 + $0x6c] sm:$0xf]
          %v3650 = vld [vmem:[#allocation9 + $0x70] sm:$0xf]
          %v3651 = vld [vmem:[#allocation9 + $0x74] sm:$0xf]
          %v3652 = vld [vmem:[#allocation9 + $0x78] sm:$0xf]
          %v3653 = vld [vmem:[#allocation9 + $0x7c] sm:$0xf]
          %v3654 = vld [vmem:[#allocation9 + $0x80] sm:$0xf]
          %v3655 = vld [vmem:[#allocation9 + $0x84] sm:$0xf]
          %v3656 = vld [vmem:[#allocation9 + $0x88] sm:$0xf]
          %v3657 = vld [vmem:[#allocation9 + $0x8c] sm:$0xf]
          %v3658 = vld [vmem:[#allocation9 + $0x90] sm:$0xf]
          %v3659 = vld [vmem:[#allocation9 + $0x94] sm:$0xf]
          %v3660 = vld [vmem:[#allocation9 + $0x98] sm:$0xf]
          %v3661 = vld [vmem:[#allocation9 + $0x9c] sm:$0xf]
          %v3662 = vld [vmem:[#allocation9 + $0xa0] sm:$0xf]
          %v3663 = vld [vmem:[#allocation9 + $0xa4] sm:$0xf]
          %v3664 = vld [vmem:[#allocation9 + $0xa8] sm:$0xf]
          %v3665 = vld [vmem:[#allocation9 + $0xac] sm:$0xf]
          %v3666 = vld [vmem:[#allocation9 + $0xb0] sm:$0xf]
          %v3667 = vld [vmem:[#allocation9 + $0xb4] sm:$0xf]
          %v3668 = vld [vmem:[#allocation9 + $0xb8] sm:$0xf]
          %v3669 = vld [vmem:[#allocation9 + $0xbc] sm:$0xf]
          %v3670 = vld [vmem:[#allocation9 + $0xc0] sm:$0xf]
          %v3671 = vld [vmem:[#allocation9 + $0xc4] sm:$0xf]
          %v3672 = vld [vmem:[#allocation9 + $0xc8] sm:$0xf]
          %v3673 = vld [vmem:[#allocation9 + $0xcc] sm:$0xf]
          %v3674 = vld [vmem:[#allocation9 + $0xd0] sm:$0xf]
          %v3675 = vld [vmem:[#allocation9 + $0xd4] sm:$0xf]
          %v3676 = vld [vmem:[#allocation9 + $0xd8] sm:$0xf]
          %v3677 = vld [vmem:[#allocation9 + $0xdc] sm:$0xf]
          %v3678 = vld [vmem:[#allocation9 + $0xe0] sm:$0xf]
          %v3679 = vld [vmem:[#allocation9 + $0xe4] sm:$0xf]
          %v3680 = vld [vmem:[#allocation9 + $0xe8] sm:$0xf]
          %v3681 = vld [vmem:[#allocation9 + $0xec] sm:$0xf]
          %v3682 = vld [vmem:[#allocation9 + $0xf0] sm:$0xf]
          %v3683 = vld [vmem:[#allocation9 + $0xf4] sm:$0xf]
          %v3684 = vld [vmem:[#allocation9 + $0xf8] sm:$0xf]
          %v3685 = vld [vmem:[#allocation9 + $0xfc] sm:$0xf]
          %v3686 = vld [vmem:[#allocation9 + $0x100] sm:$0xf]
          %v3687 = vld [vmem:[#allocation9 + $0x104] sm:$0xf]
          %v3688 = vld [vmem:[#allocation9 + $0x108] sm:$0xf]
          %v3689 = vld [vmem:[#allocation9 + $0x10c] sm:$0xf]
          %v3690 = vld [vmem:[#allocation9 + $0x110] sm:$0xf]
          %v3691 = vld [vmem:[#allocation9 + $0x114] sm:$0xf]
          %v3692 = vld [vmem:[#allocation9 + $0x118] sm:$0xf]
          %v3693 = vld [vmem:[#allocation9 + $0x11c] sm:$0xf]
          %v3694 = vld [vmem:[#allocation9 + $0x120] sm:$0xf]
          %v3695 = vld [vmem:[#allocation9 + $0x124] sm:$0xf]
          %v3696 = vld [vmem:[#allocation9 + $0x128] sm:$0xf]
          %v3697 = vld [vmem:[#allocation9 + $0x12c] sm:$0xf]
          %v3698 = vld [vmem:[#allocation9 + $0x130] sm:$0xf]
          %v3699 = vld [vmem:[#allocation9 + $0x134] sm:$0xf]
          %v3700 = vld [vmem:[#allocation9 + $0x138] sm:$0xf]
          %v3701 = vld [vmem:[#allocation9 + $0x13c] sm:$0xf]
          %v3702 = vld [vmem:[#allocation9 + $0x140] sm:$0xf]
          %v3703 = vld [vmem:[#allocation9 + $0x144] sm:$0xf]
          %v3704 = vld [vmem:[#allocation9 + $0x148] sm:$0xf]
          %v3705 = vld [vmem:[#allocation9 + $0x14c] sm:$0xf]
          %v3706 = vld [vmem:[#allocation9 + $0x150] sm:$0xf]
          %v3707 = vld [vmem:[#allocation9 + $0x154] sm:$0xf]
          %v3708 = vld [vmem:[#allocation9 + $0x158] sm:$0xf]
          %v3709 = vld [vmem:[#allocation9 + $0x15c] sm:$0xf]
          %v3710 = vld [vmem:[#allocation9 + $0x160] sm:$0xf]
          %v3711 = vld [vmem:[#allocation9 + $0x164] sm:$0xf]
          %v3712 = vld [vmem:[#allocation9 + $0x168] sm:$0xf]
          %v3713 = vld [vmem:[#allocation9 + $0x16c] sm:$0xf]
          %v3714 = vld [vmem:[#allocation9 + $0x170] sm:$0xf]
          %v3715 = vld [vmem:[#allocation9 + $0x174] sm:$0xf]
          %v3716 = vld [vmem:[#allocation9 + $0x178] sm:$0xf]
          %v3717 = vld [vmem:[#allocation9 + $0x17c] sm:$0xf]
          %v3718 = vld [vmem:[#allocation9 + $0x180] sm:$0xf]
          %v3719 = vld [vmem:[#allocation9 + $0x184] sm:$0xf]
          %v3720 = vld [vmem:[#allocation9 + $0x188] sm:$0xf]
          %v3721 = vld [vmem:[#allocation9 + $0x18c] sm:$0xf]
          %v3722 = vld [vmem:[#allocation9 + $0x190] sm:$0xf]
          %v3723 = vld [vmem:[#allocation9 + $0x194] sm:$0xf]
          %v3724 = vld [vmem:[#allocation9 + $0x198] sm:$0xf]
          %v3725 = vld [vmem:[#allocation9 + $0x19c] sm:$0xf]
          %v3726 = vld [vmem:[#allocation9 + $0x1a0] sm:$0xf]
          %v3727 = vld [vmem:[#allocation9 + $0x1a4] sm:$0xf]
          %v3728 = vld [vmem:[#allocation9 + $0x1a8] sm:$0xf]
          %v3729 = vld [vmem:[#allocation9 + $0x1ac] sm:$0xf]
          %v3730 = vld [vmem:[#allocation9 + $0x1b0] sm:$0xf]
          %v3731 = vld [vmem:[#allocation9 + $0x1b4] sm:$0xf]
          %v3732 = vld [vmem:[#allocation9 + $0x1b8] sm:$0xf]
          %v3733 = vld [vmem:[#allocation9 + $0x1bc] sm:$0xf]
          %v3734 = vld [vmem:[#allocation9 + $0x1c0] sm:$0xf]
          %v3735 = vld [vmem:[#allocation9 + $0x1c4] sm:$0xf]
          %v3736 = vld [vmem:[#allocation9 + $0x1c8] sm:$0xf]
          %v3737 = vld [vmem:[#allocation9 + $0x1cc] sm:$0xf]
          %v3738 = vld [vmem:[#allocation9 + $0x1d0] sm:$0xf]
          %v3739 = vld [vmem:[#allocation9 + $0x1d4] sm:$0xf]
          %v3740 = vld [vmem:[#allocation9 + $0x1d8] sm:$0xf]
          %v3741 = vld [vmem:[#allocation9 + $0x1dc] sm:$0xf]
          %v3742 = vld [vmem:[#allocation9 + $0x1e0] sm:$0xf]
          %v3743 = vld [vmem:[#allocation9 + $0x1e4] sm:$0xf]
          %v3744 = vld [vmem:[#allocation9 + $0x1e8] sm:$0xf]
          %v3745 = vld [vmem:[#allocation9 + $0x1ec] sm:$0xf]
          %v3746 = vld [vmem:[#allocation9 + $0x1f0] sm:$0xf]
          %v3747 = vld [vmem:[#allocation9 + $0x1f4] sm:$0xf]
          %v3748 = vld [vmem:[#allocation9 + $0x1f8] sm:$0xf]
          %v3749 = vld [vmem:[#allocation9 + $0x1fc] sm:$0xf]
          %v3750 = vld [vmem:[#allocation9 + $0x200] sm:$0xf]
          %v3751 = vld [vmem:[#allocation9 + $0x204] sm:$0xf]
          %v3752 = vld [vmem:[#allocation9 + $0x208] sm:$0xf]
          %v3753 = vld [vmem:[#allocation9 + $0x20c] sm:$0xf]
          %v3754 = vld [vmem:[#allocation9 + $0x210] sm:$0xf]
          %v3755 = vld [vmem:[#allocation9 + $0x214] sm:$0xf]
          %v3756 = vld [vmem:[#allocation9 + $0x218] sm:$0xf]
          %v3757 = vld [vmem:[#allocation9 + $0x21c] sm:$0xf]
          %v3758 = vld [vmem:[#allocation9 + $0x220] sm:$0xf]
          %v3759 = vld [vmem:[#allocation9 + $0x224] sm:$0xf]
          %v3760 = vld [vmem:[#allocation9 + $0x228] sm:$0xf]
          %v3761 = vld [vmem:[#allocation9 + $0x22c] sm:$0xf]
          %v3762 = vld [vmem:[#allocation9 + $0x230] sm:$0xf]
          %v3763 = vld [vmem:[#allocation9 + $0x234] sm:$0xf]
          %v3764 = vld [vmem:[#allocation9 + $0x238] sm:$0xf]
          %v3765 = vld [vmem:[#allocation9 + $0x23c] sm:$0xf]
          %v3766 = vld [vmem:[#allocation9 + $0x240] sm:$0xf]
          %v3767 = vld [vmem:[#allocation9 + $0x244] sm:$0xf]
          %v3768 = vld [vmem:[#allocation9 + $0x248] sm:$0xf]
          %v3769 = vld [vmem:[#allocation9 + $0x24c] sm:$0xf]
          %v3770 = vld [vmem:[#allocation9 + $0x250] sm:$0xf]
          %v3771 = vld [vmem:[#allocation9 + $0x254] sm:$0xf]
          %v3772 = vld [vmem:[#allocation9 + $0x258] sm:$0xf]
          %v3773 = vld [vmem:[#allocation9 + $0x25c] sm:$0xf]
          %v3774 = vld [vmem:[#allocation9 + $0x260] sm:$0xf]
          %v3775 = vld [vmem:[#allocation9 + $0x264] sm:$0xf]
          %v3776 = vld [vmem:[#allocation9 + $0x268] sm:$0xf]
          %v3777 = vld [vmem:[#allocation9 + $0x26c] sm:$0xf]
          %v3778 = vld [vmem:[#allocation9 + $0x270] sm:$0xf]
          %v3779 = vld [vmem:[#allocation9 + $0x274] sm:$0xf]
          %v3780 = vld [vmem:[#allocation9 + $0x278] sm:$0xf]
          %v3781 = vld [vmem:[#allocation9 + $0x27c] sm:$0xf]
          %v3782 = vld [vmem:[#allocation9 + $0x280] sm:$0xf]
          %v3783 = vld [vmem:[#allocation9 + $0x284] sm:$0xf]
          %v3784 = vld [vmem:[#allocation9 + $0x288] sm:$0xf]
          %v3785 = vld [vmem:[#allocation9 + $0x28c] sm:$0xf]
          %v3786 = vld [vmem:[#allocation9 + $0x290] sm:$0xf]
          %v3787 = vld [vmem:[#allocation9 + $0x294] sm:$0xf]
          %v3788 = vld [vmem:[#allocation9 + $0x298] sm:$0xf]
          %v3789 = vld [vmem:[#allocation9 + $0x29c] sm:$0xf]
          %v3790 = vld [vmem:[#allocation9 + $0x2a0] sm:$0xf]
          %v3791 = vld [vmem:[#allocation9 + $0x2a4] sm:$0xf]
          %v3792 = vld [vmem:[#allocation9 + $0x2a8] sm:$0xf]
          %v3793 = vld [vmem:[#allocation9 + $0x2ac] sm:$0xf]
          %v3794 = vld [vmem:[#allocation9 + $0x2b0] sm:$0xf]
          %v3795 = vld [vmem:[#allocation9 + $0x2b4] sm:$0xf]
          %v3796 = vld [vmem:[#allocation9 + $0x2b8] sm:$0xf]
          %v3797 = vld [vmem:[#allocation9 + $0x2bc] sm:$0xf]
          %v3798 = vld [vmem:[#allocation9 + $0x2c0] sm:$0xf]
          %v3799 = vld [vmem:[#allocation9 + $0x2c4] sm:$0xf]
          %v3800 = vld [vmem:[#allocation9 + $0x2c8] sm:$0xf]
          %v3801 = vld [vmem:[#allocation9 + $0x2cc] sm:$0xf]
          %v3802 = vld [vmem:[#allocation9 + $0x2d0] sm:$0xf]
          %v3803 = vld [vmem:[#allocation9 + $0x2d4] sm:$0xf]
          %v3804 = vld [vmem:[#allocation9 + $0x2d8] sm:$0xf]
          %v3805 = vld [vmem:[#allocation9 + $0x2dc] sm:$0xf]
          %v3806 = vld [vmem:[#allocation9 + $0x2e0] sm:$0xf]
          %v3807 = vld [vmem:[#allocation9 + $0x2e4] sm:$0xf]
          %v3808 = vld [vmem:[#allocation9 + $0x2e8] sm:$0xf]
          %v3809 = vld [vmem:[#allocation9 + $0x2ec] sm:$0xf]
          %v3810 = vld [vmem:[#allocation9 + $0x2f0] sm:$0xf]
          %v3811 = vld [vmem:[#allocation9 + $0x2f4] sm:$0xf]
          %v3812 = vld [vmem:[#allocation9 + $0x2f8] sm:$0xf]
          %v3813 = vld [vmem:[#allocation9 + $0x2fc] sm:$0xf]
          %v3814 = vld [vmem:[#allocation11] sm:$0x1]
          %v3816 = vperm.slane %v3814, 0
          %v4010 = vunpack.c.l.b16 %v3622
          %v4011 = vunpack.c.l.b16 %v3623
          %v4012 = vunpack.c.l.b16 %v3624
          %v4013 = vunpack.c.l.b16 %v3625
          %v4014 = vunpack.c.l.b16 %v3626
          %v4015 = vunpack.c.l.b16 %v3627
          %v4016 = vunpack.c.l.b16 %v3628
          %v4017 = vunpack.c.l.b16 %v3629
          %v4018 = vunpack.c.l.b16 %v3630
          %v4019 = vunpack.c.l.b16 %v3631
          %v4020 = vunpack.c.l.b16 %v3632
          %v4021 = vunpack.c.l.b16 %v3633
          %v4022 = vunpack.c.l.b16 %v3634
          %v4023 = vunpack.c.l.b16 %v3635
          %v4024 = vunpack.c.l.b16 %v3636
          %v4025 = vunpack.c.l.b16 %v3637
          %v4026 = vunpack.c.l.b16 %v3638
          %v4027 = vunpack.c.l.b16 %v3639
          %v4028 = vunpack.c.l.b16 %v3640
          %v4029 = vunpack.c.l.b16 %v3641
          %v4030 = vunpack.c.l.b16 %v3642
          %v4031 = vunpack.c.l.b16 %v3643
          %v4032 = vunpack.c.l.b16 %v3644
          %v4033 = vunpack.c.l.b16 %v3645
          %v4034 = vunpack.c.l.b16 %v3646
          %v4035 = vunpack.c.l.b16 %v3647
          %v4036 = vunpack.c.l.b16 %v3648
          %v4037 = vunpack.c.l.b16 %v3649
          %v4038 = vunpack.c.l.b16 %v3650
          %v4039 = vunpack.c.l.b16 %v3651
          %v4040 = vunpack.c.l.b16 %v3652
          %v4041 = vunpack.c.l.b16 %v3653
          %v4042 = vunpack.c.l.b16 %v3654
          %v4043 = vunpack.c.l.b16 %v3655
          %v4044 = vunpack.c.l.b16 %v3656
          %v4045 = vunpack.c.l.b16 %v3657
          %v4046 = vunpack.c.l.b16 %v3658
          %v4047 = vunpack.c.l.b16 %v3659
          %v4048 = vunpack.c.l.b16 %v3660
          %v4049 = vunpack.c.l.b16 %v3661
          %v4050 = vunpack.c.l.b16 %v3662
          %v4051 = vunpack.c.l.b16 %v3663
          %v4052 = vunpack.c.l.b16 %v3664
          %v4053 = vunpack.c.l.b16 %v3665
          %v4054 = vunpack.c.l.b16 %v3666
          %v4055 = vunpack.c.l.b16 %v3667
          %v4056 = vunpack.c.l.b16 %v3668
          %v4057 = vunpack.c.l.b16 %v3669
          %v4058 = vunpack.c.l.b16 %v3670
          %v4059 = vunpack.c.l.b16 %v3671
          %v4060 = vunpack.c.l.b16 %v3672
          %v4061 = vunpack.c.l.b16 %v3673
          %v4062 = vunpack.c.l.b16 %v3674
          %v4063 = vunpack.c.l.b16 %v3675
          %v4064 = vunpack.c.l.b16 %v3676
          %v4065 = vunpack.c.l.b16 %v3677
          %v4066 = vunpack.c.l.b16 %v3678
          %v4067 = vunpack.c.l.b16 %v3679
          %v4068 = vunpack.c.l.b16 %v3680
          %v4069 = vunpack.c.l.b16 %v3681
          %v4070 = vunpack.c.l.b16 %v3682
          %v4071 = vunpack.c.l.b16 %v3683
          %v4072 = vunpack.c.l.b16 %v3684
          %v4073 = vunpack.c.l.b16 %v3685
          %v4074 = vunpack.c.l.b16 %v3686
          %v4075 = vunpack.c.l.b16 %v3687
          %v4076 = vunpack.c.l.b16 %v3688
          %v4077 = vunpack.c.l.b16 %v3689
          %v4078 = vunpack.c.l.b16 %v3690
          %v4079 = vunpack.c.l.b16 %v3691
          %v4080 = vunpack.c.l.b16 %v3692
          %v4081 = vunpack.c.l.b16 %v3693
          %v4082 = vunpack.c.l.b16 %v3694
          %v4083 = vunpack.c.l.b16 %v3695
          %v4084 = vunpack.c.l.b16 %v3696
          %v4085 = vunpack.c.l.b16 %v3697
          %v4086 = vunpack.c.l.b16 %v3698
          %v4087 = vunpack.c.l.b16 %v3699
          %v4088 = vunpack.c.l.b16 %v3700
          %v4089 = vunpack.c.l.b16 %v3701
          %v4090 = vunpack.c.l.b16 %v3702
          %v4091 = vunpack.c.l.b16 %v3703
          %v4092 = vunpack.c.l.b16 %v3704
          %v4093 = vunpack.c.l.b16 %v3705
          %v4094 = vunpack.c.l.b16 %v3706
          %v4095 = vunpack.c.l.b16 %v3707
          %v4096 = vunpack.c.l.b16 %v3708
          %v4097 = vunpack.c.l.b16 %v3709
          %v4098 = vunpack.c.l.b16 %v3710
          %v4099 = vunpack.c.l.b16 %v3711
          %v4100 = vunpack.c.l.b16 %v3712
          %v4101 = vunpack.c.l.b16 %v3713
          %v4102 = vunpack.c.l.b16 %v3714
          %v4103 = vunpack.c.l.b16 %v3715
          %v4104 = vunpack.c.l.b16 %v3716
          %v4105 = vunpack.c.l.b16 %v3717
          %v4106 = vunpack.c.l.b16 %v3718
          %v4107 = vunpack.c.l.b16 %v3719
          %v4108 = vunpack.c.l.b16 %v3720
          %v4109 = vunpack.c.l.b16 %v3721
          %v4110 = vunpack.c.l.b16 %v3722
          %v4111 = vunpack.c.l.b16 %v3723
          %v4112 = vunpack.c.l.b16 %v3724
          %v4113 = vunpack.c.l.b16 %v3725
          %v4114 = vunpack.c.l.b16 %v3726
          %v4115 = vunpack.c.l.b16 %v3727
          %v4116 = vunpack.c.l.b16 %v3728
          %v4117 = vunpack.c.l.b16 %v3729
          %v4118 = vunpack.c.l.b16 %v3730
          %v4119 = vunpack.c.l.b16 %v3731
          %v4120 = vunpack.c.l.b16 %v3732
          %v4121 = vunpack.c.l.b16 %v3733
          %v4122 = vunpack.c.l.b16 %v3734
          %v4123 = vunpack.c.l.b16 %v3735
          %v4124 = vunpack.c.l.b16 %v3736
          %v4125 = vunpack.c.l.b16 %v3737
          %v4126 = vunpack.c.l.b16 %v3738
          %v4127 = vunpack.c.l.b16 %v3739
          %v4128 = vunpack.c.l.b16 %v3740
          %v4129 = vunpack.c.l.b16 %v3741
          %v4130 = vunpack.c.l.b16 %v3742
          %v4131 = vunpack.c.l.b16 %v3743
          %v4132 = vunpack.c.l.b16 %v3744
          %v4133 = vunpack.c.l.b16 %v3745
          %v4134 = vunpack.c.l.b16 %v3746
          %v4135 = vunpack.c.l.b16 %v3747
          %v4136 = vunpack.c.l.b16 %v3748
          %v4137 = vunpack.c.l.b16 %v3749
          %v4138 = vunpack.c.l.b16 %v3750
          %v4139 = vunpack.c.l.b16 %v3751
          %v4140 = vunpack.c.l.b16 %v3752
          %v4141 = vunpack.c.l.b16 %v3753
          %v4142 = vunpack.c.l.b16 %v3754
          %v4143 = vunpack.c.l.b16 %v3755
          %v4144 = vunpack.c.l.b16 %v3756
          %v4145 = vunpack.c.l.b16 %v3757
          %v4146 = vunpack.c.l.b16 %v3758
          %v4147 = vunpack.c.l.b16 %v3759
          %v4148 = vunpack.c.l.b16 %v3760
          %v4149 = vunpack.c.l.b16 %v3761
          %v4150 = vunpack.c.l.b16 %v3762
          %v4151 = vunpack.c.l.b16 %v3763
          %v4152 = vunpack.c.l.b16 %v3764
          %v4153 = vunpack.c.l.b16 %v3765
          %v4154 = vunpack.c.l.b16 %v3766
          %v4155 = vunpack.c.l.b16 %v3767
          %v4156 = vunpack.c.l.b16 %v3768
          %v4157 = vunpack.c.l.b16 %v3769
          %v4158 = vunpack.c.l.b16 %v3770
          %v4159 = vunpack.c.l.b16 %v3771
          %v4160 = vunpack.c.l.b16 %v3772
          %v4161 = vunpack.c.l.b16 %v3773
          %v4162 = vunpack.c.l.b16 %v3774
          %v4163 = vunpack.c.l.b16 %v3775
          %v4164 = vunpack.c.l.b16 %v3776
          %v4165 = vunpack.c.l.b16 %v3777
          %v4166 = vunpack.c.l.b16 %v3778
          %v4167 = vunpack.c.l.b16 %v3779
          %v4168 = vunpack.c.l.b16 %v3780
          %v4169 = vunpack.c.l.b16 %v3781
          %v4170 = vunpack.c.l.b16 %v3782
          %v4171 = vunpack.c.l.b16 %v3783
          %v4172 = vunpack.c.l.b16 %v3784
          %v4173 = vunpack.c.l.b16 %v3785
          %v4174 = vunpack.c.l.b16 %v3786
          %v4175 = vunpack.c.l.b16 %v3787
          %v4176 = vunpack.c.l.b16 %v3788
          %v4177 = vunpack.c.l.b16 %v3789
          %v4178 = vunpack.c.l.b16 %v3790
          %v4179 = vunpack.c.l.b16 %v3791
          %v4180 = vunpack.c.l.b16 %v3792
          %v4181 = vunpack.c.l.b16 %v3793
          %v4182 = vunpack.c.l.b16 %v3794
          %v4183 = vunpack.c.l.b16 %v3795
          %v4184 = vunpack.c.l.b16 %v3796
          %v4185 = vunpack.c.l.b16 %v3797
          %v4186 = vunpack.c.l.b16 %v3798
          %v4187 = vunpack.c.l.b16 %v3799
          %v4188 = vunpack.c.l.b16 %v3800
          %v4189 = vunpack.c.l.b16 %v3801
          %v4190 = vunpack.c.l.b16 %v3802
          %v4191 = vunpack.c.l.b16 %v3803
          %v4192 = vunpack.c.l.b16 %v3804
          %v4193 = vunpack.c.l.b16 %v3805
          %v4194 = vunpack.c.l.b16 %v3806
          %v4195 = vunpack.c.l.b16 %v3807
          %v4196 = vunpack.c.l.b16 %v3808
          %v4197 = vunpack.c.l.b16 %v3809
          %v4198 = vunpack.c.l.b16 %v3810
          %v4199 = vunpack.c.l.b16 %v3811
          %v4200 = vunpack.c.l.b16 %v3812
          %v4201 = vunpack.c.l.b16 %v3813
          %v4202 = vpack.c.b16 %v4011, %v4010
          %v4203 = vpack.c.b16 %v4013, %v4012
          %v4204 = vpack.c.b16 %v4015, %v4014
          %v4205 = vpack.c.b16 %v4017, %v4016
          %v4206 = vpack.c.b16 %v4019, %v4018
          %v4207 = vpack.c.b16 %v4021, %v4020
          %v4208 = vpack.c.b16 %v4023, %v4022
          %v4209 = vpack.c.b16 %v4025, %v4024
          %v4210 = vpack.c.b16 %v4027, %v4026
          %v4211 = vpack.c.b16 %v4029, %v4028
          %v4212 = vpack.c.b16 %v4031, %v4030
          %v4213 = vpack.c.b16 %v4033, %v4032
          %v4214 = vpack.c.b16 %v4035, %v4034
          %v4215 = vpack.c.b16 %v4037, %v4036
          %v4216 = vpack.c.b16 %v4039, %v4038
          %v4217 = vpack.c.b16 %v4041, %v4040
          %v4218 = vpack.c.b16 %v4043, %v4042
          %v4219 = vpack.c.b16 %v4045, %v4044
          %v4220 = vpack.c.b16 %v4047, %v4046
          %v4221 = vpack.c.b16 %v4049, %v4048
          %v4222 = vpack.c.b16 %v4051, %v4050
          %v4223 = vpack.c.b16 %v4053, %v4052
          %v4224 = vpack.c.b16 %v4055, %v4054
          %v4225 = vpack.c.b16 %v4057, %v4056
          %v4226 = vpack.c.b16 %v4059, %v4058
          %v4227 = vpack.c.b16 %v4061, %v4060
          %v4228 = vpack.c.b16 %v4063, %v4062
          %v4229 = vpack.c.b16 %v4065, %v4064
          %v4230 = vpack.c.b16 %v4067, %v4066
          %v4231 = vpack.c.b16 %v4069, %v4068
          %v4232 = vpack.c.b16 %v4071, %v4070
          %v4233 = vpack.c.b16 %v4073, %v4072
          %v4234 = vpack.c.b16 %v4075, %v4074
          %v4235 = vpack.c.b16 %v4077, %v4076
          %v4236 = vpack.c.b16 %v4079, %v4078
          %v4237 = vpack.c.b16 %v4081, %v4080
          %v4238 = vpack.c.b16 %v4083, %v4082
          %v4239 = vpack.c.b16 %v4085, %v4084
          %v4240 = vpack.c.b16 %v4087, %v4086
          %v4241 = vpack.c.b16 %v4089, %v4088
          %v4242 = vpack.c.b16 %v4091, %v4090
          %v4243 = vpack.c.b16 %v4093, %v4092
          %v4244 = vpack.c.b16 %v4095, %v4094
          %v4245 = vpack.c.b16 %v4097, %v4096
          %v4246 = vpack.c.b16 %v4099, %v4098
          %v4247 = vpack.c.b16 %v4101, %v4100
          %v4248 = vpack.c.b16 %v4103, %v4102
          %v4249 = vpack.c.b16 %v4105, %v4104
          %v4250 = vpack.c.b16 %v4107, %v4106
          %v4251 = vpack.c.b16 %v4109, %v4108
          %v4252 = vpack.c.b16 %v4111, %v4110
          %v4253 = vpack.c.b16 %v4113, %v4112
          %v4254 = vpack.c.b16 %v4115, %v4114
          %v4255 = vpack.c.b16 %v4117, %v4116
          %v4256 = vpack.c.b16 %v4119, %v4118
          %v4257 = vpack.c.b16 %v4121, %v4120
          %v4258 = vpack.c.b16 %v4123, %v4122
          %v4259 = vpack.c.b16 %v4125, %v4124
          %v4260 = vpack.c.b16 %v4127, %v4126
          %v4261 = vpack.c.b16 %v4129, %v4128
          %v4262 = vpack.c.b16 %v4131, %v4130
          %v4263 = vpack.c.b16 %v4133, %v4132
          %v4264 = vpack.c.b16 %v4135, %v4134
          %v4265 = vpack.c.b16 %v4137, %v4136
          %v4266 = vpack.c.b16 %v4139, %v4138
          %v4267 = vpack.c.b16 %v4141, %v4140
          %v4268 = vpack.c.b16 %v4143, %v4142
          %v4269 = vpack.c.b16 %v4145, %v4144
          %v4270 = vpack.c.b16 %v4147, %v4146
          %v4271 = vpack.c.b16 %v4149, %v4148
          %v4272 = vpack.c.b16 %v4151, %v4150
          %v4273 = vpack.c.b16 %v4153, %v4152
          %v4274 = vpack.c.b16 %v4155, %v4154
          %v4275 = vpack.c.b16 %v4157, %v4156
          %v4276 = vpack.c.b16 %v4159, %v4158
          %v4277 = vpack.c.b16 %v4161, %v4160
          %v4278 = vpack.c.b16 %v4163, %v4162
          %v4279 = vpack.c.b16 %v4165, %v4164
          %v4280 = vpack.c.b16 %v4167, %v4166
          %v4281 = vpack.c.b16 %v4169, %v4168
          %v4282 = vpack.c.b16 %v4171, %v4170
          %v4283 = vpack.c.b16 %v4173, %v4172
          %v4284 = vpack.c.b16 %v4175, %v4174
          %v4285 = vpack.c.b16 %v4177, %v4176
          %v4286 = vpack.c.b16 %v4179, %v4178
          %v4287 = vpack.c.b16 %v4181, %v4180
          %v4288 = vpack.c.b16 %v4183, %v4182
          %v4289 = vpack.c.b16 %v4185, %v4184
          %v4290 = vpack.c.b16 %v4187, %v4186
          %v4291 = vpack.c.b16 %v4189, %v4188
          %v4292 = vpack.c.b16 %v4191, %v4190
          %v4293 = vpack.c.b16 %v4193, %v4192
          %v4294 = vpack.c.b16 %v4195, %v4194
          %v4295 = vpack.c.b16 %v4197, %v4196
          %v4296 = vpack.c.b16 %v4199, %v4198
          %v4297 = vpack.c.b16 %v4201, %v4200
          %4394 = vmatpush.bf16.msra.mxu0 %v4209
          %4395 = vmatpush.bf16.msra.mxu0 %v4208
          %4396 = vmatpush.bf16.msra.mxu0 %v4207
          %4397 = vmatpush.bf16.msra.mxu0 %v4206
          %4398 = vmatpush.bf16.msra.mxu0 %v4205
          %4399 = vmatpush.bf16.msra.mxu0 %v4204
          %4400 = vmatpush.bf16.msra.mxu0 %v4203
          %4401 = vmatpush.bf16.msra.mxu0 %v4202
          %4402 = vmatmul.bf16.gmra.mxu0 %v3610
          %v4403 = vpop.f32.mrf.mxu0
          %v4404 = vadd.f32 %v3816, %v4403
          %v4405 = vpop.f32.mrf.mxu0
          %4406 = vdwg.mxu0
          %4407 = vmatpush.bf16.msra.mxu0 %v4217
          %4408 = vmatpush.bf16.msra.mxu0 %v4216
          %4409 = vmatpush.bf16.msra.mxu0 %v4215
          %4410 = vmatpush.bf16.msra.mxu0 %v4214
          %4411 = vmatpush.bf16.msra.mxu0 %v4213
          %4412 = vmatpush.bf16.msra.mxu0 %v4212
          %4413 = vmatpush.bf16.msra.mxu0 %v4211
          %4414 = vmatpush.bf16.msra.mxu0 %v4210
          %4415 = vmatmul.bf16.gmra.mxu0 %v3611
          %v4416 = vpop.f32.mrf.mxu0
          %v4417 = vadd.f32 %v4404, %v4416
          %v4418 = vpop.f32.mrf.mxu0
          %4419 = vdwg.mxu0
          %4420 = vmatpush.bf16.msra.mxu0 %v4225
          %4421 = vmatpush.bf16.msra.mxu0 %v4224
          %4422 = vmatpush.bf16.msra.mxu0 %v4223
          %4423 = vmatpush.bf16.msra.mxu0 %v4222
          %4424 = vmatpush.bf16.msra.mxu0 %v4221
          %4425 = vmatpush.bf16.msra.mxu0 %v4220
          %4426 = vmatpush.bf16.msra.mxu0 %v4219
          %4427 = vmatpush.bf16.msra.mxu0 %v4218
          %4428 = vmatmul.bf16.gmra.mxu0 %v3612
          %v4429 = vpop.f32.mrf.mxu0
          %v4430 = vadd.f32 %v4417, %v4429
          %v4431 = vpop.f32.mrf.mxu0
          %4432 = vdwg.mxu0
          %4433 = vmatpush.bf16.msra.mxu0 %v4233
          %4434 = vmatpush.bf16.msra.mxu0 %v4232
          %4435 = vmatpush.bf16.msra.mxu0 %v4231
          %4436 = vmatpush.bf16.msra.mxu0 %v4230
          %4437 = vmatpush.bf16.msra.mxu0 %v4229
          %4438 = vmatpush.bf16.msra.mxu0 %v4228
          %4439 = vmatpush.bf16.msra.mxu0 %v4227
          %4440 = vmatpush.bf16.msra.mxu0 %v4226
          %4441 = vmatmul.bf16.gmra.mxu0 %v3613
          %v4442 = vpop.f32.mrf.mxu0
          %v4443 = vadd.f32 %v4430, %v4442
          %v4444 = vpop.f32.mrf.mxu0
          %4445 = vdwg.mxu0
          %4446 = vmatpush.bf16.msra.mxu0 %v4241
          %4447 = vmatpush.bf16.msra.mxu0 %v4240
          %4448 = vmatpush.bf16.msra.mxu0 %v4239
          %4449 = vmatpush.bf16.msra.mxu0 %v4238
          %4450 = vmatpush.bf16.msra.mxu0 %v4237
          %4451 = vmatpush.bf16.msra.mxu0 %v4236
          %4452 = vmatpush.bf16.msra.mxu0 %v4235
          %4453 = vmatpush.bf16.msra.mxu0 %v4234
          %4454 = vmatmul.bf16.gmra.mxu0 %v3614
          %v4455 = vpop.f32.mrf.mxu0
          %v4456 = vadd.f32 %v4443, %v4455
          %v4457 = vpop.f32.mrf.mxu0
          %4458 = vdwg.mxu0
          %4459 = vmatpush.bf16.msra.mxu0 %v4249
          %4460 = vmatpush.bf16.msra.mxu0 %v4248
          %4461 = vmatpush.bf16.msra.mxu0 %v4247
          %4462 = vmatpush.bf16.msra.mxu0 %v4246
          %4463 = vmatpush.bf16.msra.mxu0 %v4245
          %4464 = vmatpush.bf16.msra.mxu0 %v4244
          %4465 = vmatpush.bf16.msra.mxu0 %v4243
          %4466 = vmatpush.bf16.msra.mxu0 %v4242
          %4467 = vmatmul.bf16.gmra.mxu0 %v3615
          %v4468 = vpop.f32.mrf.mxu0
          %v4469 = vadd.f32 %v4456, %v4468
          %v4470 = vpop.f32.mrf.mxu0
          %4471 = vdwg.mxu0
          %4472 = vmatpush.bf16.msra.mxu0 %v4257
          %4473 = vmatpush.bf16.msra.mxu0 %v4256
          %4474 = vmatpush.bf16.msra.mxu0 %v4255
          %4475 = vmatpush.bf16.msra.mxu0 %v4254
          %4476 = vmatpush.bf16.msra.mxu0 %v4253
          %4477 = vmatpush.bf16.msra.mxu0 %v4252
          %4478 = vmatpush.bf16.msra.mxu0 %v4251
          %4479 = vmatpush.bf16.msra.mxu0 %v4250
          %4480 = vmatmul.bf16.gmra.mxu0 %v3616
          %v4481 = vpop.f32.mrf.mxu0
          %v4482 = vadd.f32 %v4469, %v4481
          %v4483 = vpop.f32.mrf.mxu0
          %4484 = vdwg.mxu0
          %4485 = vmatpush.bf16.msra.mxu0 %v4265
          %4486 = vmatpush.bf16.msra.mxu0 %v4264
          %4487 = vmatpush.bf16.msra.mxu0 %v4263
          %4488 = vmatpush.bf16.msra.mxu0 %v4262
          %4489 = vmatpush.bf16.msra.mxu0 %v4261
          %4490 = vmatpush.bf16.msra.mxu0 %v4260
          %4491 = vmatpush.bf16.msra.mxu0 %v4259
          %4492 = vmatpush.bf16.msra.mxu0 %v4258
          %4493 = vmatmul.bf16.gmra.mxu0 %v3617
          %v4494 = vpop.f32.mrf.mxu0
          %v4495 = vadd.f32 %v4482, %v4494
          %v4496 = vpop.f32.mrf.mxu0
          %4497 = vdwg.mxu0
          %4498 = vmatpush.bf16.msra.mxu0 %v4273
          %4499 = vmatpush.bf16.msra.mxu0 %v4272
          %4500 = vmatpush.bf16.msra.mxu0 %v4271
          %4501 = vmatpush.bf16.msra.mxu0 %v4270
          %4502 = vmatpush.bf16.msra.mxu0 %v4269
          %4503 = vmatpush.bf16.msra.mxu0 %v4268
          %4504 = vmatpush.bf16.msra.mxu0 %v4267
          %4505 = vmatpush.bf16.msra.mxu0 %v4266
          %4506 = vmatmul.bf16.gmra.mxu0 %v3618
          %v4507 = vpop.f32.mrf.mxu0
          %v4508 = vadd.f32 %v4495, %v4507
          %v4509 = vpop.f32.mrf.mxu0
          %4510 = vdwg.mxu0
          %4511 = vmatpush.bf16.msra.mxu0 %v4281
          %4512 = vmatpush.bf16.msra.mxu0 %v4280
          %4513 = vmatpush.bf16.msra.mxu0 %v4279
          %4514 = vmatpush.bf16.msra.mxu0 %v4278
          %4515 = vmatpush.bf16.msra.mxu0 %v4277
          %4516 = vmatpush.bf16.msra.mxu0 %v4276
          %4517 = vmatpush.bf16.msra.mxu0 %v4275
          %4518 = vmatpush.bf16.msra.mxu0 %v4274
          %4519 = vmatmul.bf16.gmra.mxu0 %v3619
          %v4520 = vpop.f32.mrf.mxu0
          %v4521 = vadd.f32 %v4508, %v4520
          %v4522 = vpop.f32.mrf.mxu0
          %4523 = vdwg.mxu0
          %4524 = vmatpush.bf16.msra.mxu0 %v4289
          %4525 = vmatpush.bf16.msra.mxu0 %v4288
          %4526 = vmatpush.bf16.msra.mxu0 %v4287
          %4527 = vmatpush.bf16.msra.mxu0 %v4286
          %4528 = vmatpush.bf16.msra.mxu0 %v4285
          %4529 = vmatpush.bf16.msra.mxu0 %v4284
          %4530 = vmatpush.bf16.msra.mxu0 %v4283
          %4531 = vmatpush.bf16.msra.mxu0 %v4282
          %4532 = vmatmul.bf16.gmra.mxu0 %v3620
          %v4533 = vpop.f32.mrf.mxu0
          %v4534 = vadd.f32 %v4521, %v4533
          %v4535 = vpop.f32.mrf.mxu0
          %4536 = vdwg.mxu0
          %4537 = vmatpush.bf16.msra.mxu0 %v4297
          %4538 = vmatpush.bf16.msra.mxu0 %v4296
          %4539 = vmatpush.bf16.msra.mxu0 %v4295
          %4540 = vmatpush.bf16.msra.mxu0 %v4294
          %4541 = vmatpush.bf16.msra.mxu0 %v4293
          %4542 = vmatpush.bf16.msra.mxu0 %v4292
          %4543 = vmatpush.bf16.msra.mxu0 %v4291
          %4544 = vmatpush.bf16.msra.mxu0 %v4290
          %4545 = vmatmul.bf16.gmra.mxu0 %v3621
          %v4546 = vpop.f32.mrf.mxu0
          %v4547 = vadd.f32 %v4534, %v4546
          %v4548 = vpop.f32.mrf.mxu0
          %4549 = vdwg.mxu0
          %v4550 = vxor.u32 %v4547, 2147483648
          %v4551 = vmul.f32 %v4550, 1.442695
          %v4552 = vpow.pop %v4551
          %v4553 = vadd.f32 %v4552, 1.0
          %v4554 = vrcp.pop %v4553
          %v4555 = vmul.f32 %v4553, %v4554
          %v4556 = vsub.f32 1.0, %v4555
          %v4557 = vmul.f32 %v4554, %v4556
          %v4558 = vadd.f32 %v4554, %v4557
          %vm4559 = vweird.f32 %v4553
          %vm4560 = vweird.f32 %v4554
          %vm4561 = vmor %vm4559, %vm4560
          %v4562 = vsel %vm4561, %v4554, %v4558
          %v4563 = vand.u32 2147483647, %v4553
          %vm4564 = vcmp.eq.f32.partialorder %v4563, 8.507059e+37
          %v4565 = vand.u32 %v4553, 2147483648
          %v4566 = vor.u32 1.1754944e-38, %v4565
          %v4567 = vsel %vm4564, %v4566, %v4562
          %v4568 = vmul.f32 1.0, %v4567
          %4569 = vst [vmem:[#allocation12] sm:$0xff] %v4568
        $region68: #{tpu_custom_call.1} parent=39 // pred_fallthru
          _
        // Predicated region
        $region69: #{tpu_custom_call.1} parent=39 // pred_check
          %p4570 = pneg %p171
        $region70: #{tpu_custom_call.1} parent=39 // pred_check_branch
          %4572 = sbr.rel (%p4570) target = $region72
        $region71: #{tpu_custom_call.1} parent=39 // pred_region
          %4574 = vsyncadd [#allocation5], 0
          %s4575 = smul.addr %s28, 8
          %s4576 = scalar_lea.hbm %s5, %s4575
          %s4578 = sshll.u32 [#allocation12], 4
          %s4579 = int_to_ptr.vmem [resolvable:$true] %s4578
          %s4580 = sshll.u32 %s4576, 4
          %s4581 = int_to_ptr.hbm [resolvable:$true] %s4580
          %4583 = dma.vmem_to_hbm [thread:$0]  %s4579, 128, %s4581, [#allocation5]
        $region72: #{tpu_custom_call.1} parent=39 // pred_fallthru
          _
        // Predicated region
        $region73: #{tpu_custom_call.1} parent=39 // pred_check
          %p4584 = pneg %p171
        $region74: #{tpu_custom_call.1} parent=39 // pred_check_branch
          %4586 = sbr.rel (%p4584) target = $region76
        $region75: #{tpu_custom_call.1} parent=39 // pred_region
          %4588 = dma.done [#allocation5], 128
        $region76: #{tpu_custom_call.1} parent=39 // pred_fallthru
          _
      $region40: #{tpu_custom_call.1} parent=5 // pred_fallthru
        _
      %p4589 = scmp.le.s32.totalorder 2, %s19
      // Predicated region
      $region77: #{tpu_custom_call.1} parent=5 // pred_check
        %p4590 = pneg %p4589
      $region78: #{tpu_custom_call.1} parent=5 // pred_check_branch
        %4592 = sbr.rel (%p4590) target = $region80
      $region79: #{tpu_custom_call.1} parent=5 // pred_region
        %s4593 = ssub.s32 %s19, 2
      $region80: #{tpu_custom_call.1} parent=5 // pred_fallthru
        _
    $region6: #{tpu_custom_call.1} parent=1 // loop_footer
      %s23 = sadd.s32 1, %s19
    $region7: #{tpu_custom_call.1} parent=1 // loop_footer_branch
      %18 = sbr.rel target = $region3
    $region8: #{tpu_custom_call.1} parent=1 // loop_exit
      _
    %4594 = vsyncpa [#allocation4], 1
    %s4595 = scalar_lea.sflag [#allocation4], 1
    %4596 = vsyncpa %s4595, 1
    %4597 = vsyncpa [#allocation7], 1
    %s4598 = scalar_lea.sflag [#allocation7], 1
    %4599 = vsyncpa %s4598, 1
    %4600 = vsyncpa [#allocation10], 1
    %4601 = vsyncpa [#allocation5], 1
    %s4602 = scalar_lea.sflag [#allocation5], 1
    %4603 = vsyncpa %s4602, 1

</llo_original>
